<compile_context>
chip_gen: v6e
topology: v6e:2x2x1
jax: 0.10.0
libtpu: 0.0.40
codegen_flags: <defaults>
</compile_context>

<pallas_src>
import jax
import jax.numpy as jnp
from jax import lax
from jax.experimental import pallas as pl
from jax.experimental.pallas import tpu as pltpu

NEG_SLOPE = 0.2
K = 3                     # conv kernel size (padding = K // 2 -> "same")
TAPS = K * K * K          # 27 taps of the 3x3x3 kernel


def _round_up(x, m):
    return (x + m - 1) // m * m


def _make_dense_block_kernel(num_layers, in_channels, growth_rate, D, H, W):
    Dp, Hp, Wp = D + 2, H + 2, W + 2
    Lp = Dp * Hp * Wp                          # flattened padded spatial extent
    # Guard so every shifted tap slice stays in bounds; rounded to 128 so the
    # writes into the feature scratch interior start lane-aligned.
    G = _round_up(Hp * Wp + Wp + 1, 128)
    LG = Lp + 2 * G
    # Static lane offsets of the 27 taps inside the guarded flat buffer:
    # reading column (G + q + off_tap) == x_pad[d+kd-1, h+kh-1, w+kw-1] for
    # flattened padded output position q = d*Hp*Wp + h*Wp + w.
    offs = [G + (kd - 1) * Hp * Wp + (kh - 1) * Wp + (kw - 1)
            for kd in range(K) for kh in range(K) for kw in range(K)]

    def kernel(*refs):
        x_ref, mask_ref = refs[0], refs[1]
        wb = refs[2:2 + 2 * num_layers]                # (w0, b0, w1, b1, ...)
        out_ref = refs[2 + 2 * num_layers]
        feat_ref = refs[3 + 2 * num_layers]

        # Hoisted (GR, Lp) interior mask (JAX does not CSE broadcasts).
        mask_b = jnp.broadcast_to(mask_ref[...], (growth_rate, Lp))

        # Guard + halo columns of the feature scratch must read as zero.
        # (Interior rows get overwritten before they are read.)
        feat_ref[...] = jnp.zeros_like(feat_ref)

        # Original input channels -> output (the outer torch.cat([x, block(x)])).
        out_ref[0, 0:in_channels, :] = x_ref[0, :, G:G + Lp]

        def conv_lrelu(read_tap, w_ref, b_ref):
            # In-kernel im2col: 27 statically shifted views concatenated along
            # the contraction dim -> a single (GR, 27*Cin) @ (27*Cin, Lp)
            # MXU matmul with a lane-dense (GR, Lp) result.
            xcol = jnp.concatenate([read_tap(off) for off in offs], axis=0)
            y = jnp.dot(w_ref[...], xcol, preferred_element_type=jnp.float32)
            y = y + b_ref[...]                          # (GR, 1) bias, lane bcast
            y = jnp.maximum(y, NEG_SLOPE * y)           # LeakyReLU(0.2)
            return y * mask_b                           # zero the halo columns

        for l in range(num_layers):
            if l == 0:
                # ConvLayer: reads the padded, guarded input block.
                read_tap = lambda off: x_ref[0, :, off:off + Lp]
            else:
                # DenseLayer l: reads every feature produced so far.
                cin_l = growth_rate * l
                read_tap = lambda off, c=cin_l: feat_ref[0:c, off:off + Lp]
            y = conv_lrelu(read_tap, wb[2 * l], wb[2 * l + 1])

            c0 = in_channels + growth_rate * l
            out_ref[0, c0:c0 + growth_rate, :] = y.astype(out_ref.dtype)
            if l < num_layers - 1:                      # only re-read layers kept
                feat_ref[growth_rate * l:growth_rate * (l + 1), G:G + Lp] = y

    return kernel, Lp, LG, G


def init_dense_block_params(key, in_channels, growth_rate, num_layers):
    """Conv3d-style params; layer l has Cin = in_channels (l==0) else
    growth_rate*l, Cout = growth_rate.  Stored as (27, Cin, Cout) + (Cout,)."""
    params = []
    for l in range(num_layers):
        cin_l = in_channels if l == 0 else growth_rate * l
        key, kw_key, kb_key = jax.random.split(key, 3)
        bound = 1.0 / jnp.sqrt(jnp.float32(cin_l * TAPS))
        w = jax.random.uniform(kw_key, (TAPS, cin_l, growth_rate),
                               minval=-bound, maxval=bound, dtype=jnp.float32)
        b = jax.random.uniform(kb_key, (growth_rate,),
                               minval=-bound, maxval=bound, dtype=jnp.float32)
        params.append((w, b))
    return params


@jax.jit
def dense_block_forward(x_ncdhw, params):
    """DenseBlock.forward on NCDHW input, fully fused into one Pallas kernel."""
    num_layers = len(params)
    N, Cin, D, H, W = x_ncdhw.shape
    GR = params[0][0].shape[-1]
    C_total = Cin + GR * num_layers
    dtype = x_ncdhw.dtype

    kernel, Lp, LG, G = _make_dense_block_kernel(num_layers, Cin, GR, D, H, W)
    Dp, Hp, Wp = D + 2, H + 2, W + 2

    # Pad the spatial dims once, flatten them (channel-first), add flat guard
    # zeros -- a single O(input) copy instead of a 27x im2col blow-up in HBM.
    xp = jnp.pad(x_ncdhw, ((0, 0), (0, 0), (1, 1), (1, 1), (1, 1)))
    xg = jnp.pad(xp.reshape(N, Cin, Lp), ((0, 0), (0, 0), (G, G)))

    # Interior mask over the flattened padded domain (1 = real voxel, 0 = halo).
    dmask = (jnp.arange(Dp) >= 1) & (jnp.arange(Dp) <= D)
    hmask = (jnp.arange(Hp) >= 1) & (jnp.arange(Hp) <= H)
    wmask = (jnp.arange(Wp) >= 1) & (jnp.arange(Wp) <= W)
    mask = (dmask[:, None, None] & hmask[None, :, None] & wmask[None, None, :])
    mask = mask.reshape(1, Lp).astype(dtype)

    # Fold the 27 taps into the matmul contraction dim: (GR, 27*Cin_l),
    # rows ordered tap-major / channel-minor to match the in-kernel im2col.
    flat_params = []
    in_specs = [
        pl.BlockSpec((1, Cin, LG), lambda n: (n, 0, 0)),   # guarded flat input
        pl.BlockSpec((1, Lp), lambda n: (0, 0)),           # interior mask
    ]
    for (w, b) in params:
        cin_l = w.shape[1]
        w_col = jnp.transpose(w, (2, 0, 1)).reshape(GR, TAPS * cin_l)
        b_col = b.reshape(GR, 1)
        flat_params += [w_col, b_col]
        in_specs.append(pl.BlockSpec((GR, TAPS * cin_l), lambda n: (0, 0)))
        in_specs.append(pl.BlockSpec((GR, 1), lambda n: (0, 0)))

    feat_rows = max(GR * (num_layers - 1), GR)   # guarded VMEM feature buffer

    out_flat = pl.pallas_call(
        kernel,
        out_shape=jax.ShapeDtypeStruct((N, C_total, Lp), dtype),
        grid_spec=pltpu.PrefetchScalarGridSpec(
            num_scalar_prefetch=0,
            grid=(N,),
            in_specs=in_specs,
            out_specs=pl.BlockSpec((1, C_total, Lp), lambda n: (n, 0, 0)),
            scratch_shapes=[pltpu.VMEM((feat_rows, LG), jnp.float32)],
        ),
        compiler_params=pltpu.CompilerParams(
            dimension_semantics=("parallel",)),
    )(xg, mask, *flat_params)

    # Un-flatten and drop the halo ring -> (N, C_total, D, H, W) in NCDHW.
    out = out_flat.reshape(N, C_total, Dp, Hp, Wp)
    return out[:, :, 1:1 + D, 1:1 + H, 1:1 + W]


# ---- pure-JAX reference (for correctness check only) ----
def _ref_conv_lrelu(x_ncdhw, w_taps, b):
    Cin, Cout = w_taps.shape[1], w_taps.shape[2]
    w = w_taps.reshape(K, K, K, Cin, Cout).transpose(4, 3, 0, 1, 2)  # OIDHW
    y = lax.conv_general_dilated(x_ncdhw, w, window_strides=(1, 1, 1),
                                 padding=[(1, 1)] * 3,
                                 dimension_numbers=('NCDHW', 'OIDHW', 'NCDHW'))
    y = y + b.reshape(1, Cout, 1, 1, 1)
    return jnp.where(y > 0.0, y, NEG_SLOPE * y)


def _ref_dense_block(x_ncdhw, params):
    feat = _ref_conv_lrelu(x_ncdhw, *params[0])
    for l in range(1, len(params)):
        new = _ref_conv_lrelu(feat, *params[l])
        feat = jnp.concatenate([feat, new], axis=1)
    return jnp.concatenate([x_ncdhw, feat], axis=1)


if __name__ == "__main__":
    import numpy as np

    in_channels, growth_rate, num_layers = 4, 4, 3
    N, D, H, W = 2, 8, 8, 8

    key = jax.random.PRNGKey(0)
    key, xk = jax.random.split(key)
    x = jax.random.normal(xk, (N, in_channels, D, H, W), dtype=jnp.float32)
    params = init_dense_block_params(key, in_channels, growth_rate, num_layers)

    out = jax.block_until_ready(dense_block_forward(x, params))

    expected_channels = in_channels + growth_rate * num_layers
    assert out.shape == (N, expected_channels, D, H, W), out.shape

    ref = _ref_dense_block(x, params)
    np.testing.assert_allclose(np.asarray(out), np.asarray(ref),
                               rtol=2e-4, atol=2e-4)
    print("KERNEL_OK")
</pallas_src>

<mosaic_0001>
module attributes {stable_mosaic.version = 11 : i64} {
  func.func @kernel(%arg0: i32, %arg1: memref<1x4x1256xf32, #tpu.memory_space<vmem>>, %arg2: memref<1x1000xf32, #tpu.memory_space<vmem>>, %arg3: memref<4x108xf32, #tpu.memory_space<vmem>>, %arg4: memref<4x1xf32, #tpu.memory_space<vmem>>, %arg5: memref<4x108xf32, #tpu.memory_space<vmem>>, %arg6: memref<4x1xf32, #tpu.memory_space<vmem>>, %arg7: memref<4x216xf32, #tpu.memory_space<vmem>>, %arg8: memref<4x1xf32, #tpu.memory_space<vmem>>, %arg9: memref<1x16x1000xf32, #tpu.memory_space<vmem>>, %arg10: memref<8x1256xf32, #tpu.memory_space<vmem>>) attributes {dimension_semantics = [#tpu.dimension_semantics<parallel>], iteration_bounds = array<i64: 2>, scalar_prefetch = 0 : i64, scratch_operands = 1 : i64, tpu.core_type = #tpu.core_type<tc>, window_params = [{transform_indices = @transform_0, window_bounds = array<i64: 1, 4, 1256>}, {pipeline_mode = #tpu.pipeline_mode<synchronous>, transform_indices = @transform_1, window_bounds = array<i64: 1, 1000>}, {pipeline_mode = #tpu.pipeline_mode<synchronous>, transform_indices = @transform_2, window_bounds = array<i64: 4, 108>}, {pipeline_mode = #tpu.pipeline_mode<synchronous>, transform_indices = @transform_3, window_bounds = array<i64: 4, 1>}, {pipeline_mode = #tpu.pipeline_mode<synchronous>, transform_indices = @transform_4, window_bounds = array<i64: 4, 108>}, {pipeline_mode = #tpu.pipeline_mode<synchronous>, transform_indices = @transform_5, window_bounds = array<i64: 4, 1>}, {pipeline_mode = #tpu.pipeline_mode<synchronous>, transform_indices = @transform_6, window_bounds = array<i64: 4, 216>}, {pipeline_mode = #tpu.pipeline_mode<synchronous>, transform_indices = @transform_7, window_bounds = array<i64: 4, 1>}, {transform_indices = @transform_8, window_bounds = array<i64: 1, 16, 1000>}]} {
    %c0 = arith.constant 0 : index
    %c0_0 = arith.constant 0 : index
    %0 = vector.load %arg2[%c0, %c0_0] : memref<1x1000xf32, #tpu.memory_space<vmem>>, vector<1x1000xf32>
    %1 = vector.shape_cast %0 : vector<1x1000xf32> to vector<1x1000xf32>
    %2 = vector.broadcast %1 : vector<1x1000xf32> to vector<4x1000xf32>
    %cst = arith.constant 0.000000e+00 : f32
    %3 = vector.broadcast %cst : f32 to vector<8x1256xf32>
    %c0_1 = arith.constant 0 : index
    %c0_2 = arith.constant 0 : index
    %4 = vector.load %arg10[%c0_1, %c0_2] : memref<8x1256xf32, #tpu.memory_space<vmem>>, vector<8x1256xf32>
    tpu.vector_store %arg10[%c0_1, %c0_2], %3 {strides = array<i32>} : memref<8x1256xf32, #tpu.memory_space<vmem>>, vector<8x1256xf32>,
    %c0_3 = arith.constant 0 : index
    %c0_4 = arith.constant 0 : index
    %c128 = arith.constant 128 : index
    %5 = vector.load %arg1[%c0_3, %c0_4, %c128] : memref<1x4x1256xf32, #tpu.memory_space<vmem>>, vector<1x4x1000xf32>
    %6 = vector.shape_cast %5 : vector<1x4x1000xf32> to vector<4x1000xf32>
    %c0_5 = arith.constant 0 : index
    %c0_6 = arith.constant 0 : index
    %c0_7 = arith.constant 0 : index
    %7 = vector.load %arg9[%c0_5, %c0_6, %c0_7] : memref<1x16x1000xf32, #tpu.memory_space<vmem>>, vector<1x4x1000xf32>
    %8 = vector.shape_cast %7 : vector<1x4x1000xf32> to vector<4x1000xf32>
    %9 = vector.shape_cast %6 : vector<4x1000xf32> to vector<1x4x1000xf32>
    tpu.vector_store %arg9[%c0_5, %c0_6, %c0_7], %9 {strides = array<i32>} : memref<1x16x1000xf32, #tpu.memory_space<vmem>>, vector<1x4x1000xf32>,
    %c0_8 = arith.constant 0 : index
    %c0_9 = arith.constant 0 : index
    %c17 = arith.constant 17 : index
    %10 = vector.load %arg1[%c0_8, %c0_9, %c17] : memref<1x4x1256xf32, #tpu.memory_space<vmem>>, vector<1x4x1000xf32>
    %11 = vector.shape_cast %10 : vector<1x4x1000xf32> to vector<4x1000xf32>
    %c0_10 = arith.constant 0 : index
    %c0_11 = arith.constant 0 : index
    %c18 = arith.constant 18 : index
    %12 = vector.load %arg1[%c0_10, %c0_11, %c18] : memref<1x4x1256xf32, #tpu.memory_space<vmem>>, vector<1x4x1000xf32>
    %13 = vector.shape_cast %12 : vector<1x4x1000xf32> to vector<4x1000xf32>
    %c0_12 = arith.constant 0 : index
    %c0_13 = arith.constant 0 : index
    %c19 = arith.constant 19 : index
    %14 = vector.load %arg1[%c0_12, %c0_13, %c19] : memref<1x4x1256xf32, #tpu.memory_space<vmem>>, vector<1x4x1000xf32>
    %15 = vector.shape_cast %14 : vector<1x4x1000xf32> to vector<4x1000xf32>
    %c0_14 = arith.constant 0 : index
    %c0_15 = arith.constant 0 : index
    %c27 = arith.constant 27 : index
    %16 = vector.load %arg1[%c0_14, %c0_15, %c27] : memref<1x4x1256xf32, #tpu.memory_space<vmem>>, vector<1x4x1000xf32>
    %17 = vector.shape_cast %16 : vector<1x4x1000xf32> to vector<4x1000xf32>
    %c0_16 = arith.constant 0 : index
    %c0_17 = arith.constant 0 : index
    %c28 = arith.constant 28 : index
    %18 = vector.load %arg1[%c0_16, %c0_17, %c28] : memref<1x4x1256xf32, #tpu.memory_space<vmem>>, vector<1x4x1000xf32>
    %19 = vector.shape_cast %18 : vector<1x4x1000xf32> to vector<4x1000xf32>
    %c0_18 = arith.constant 0 : index
    %c0_19 = arith.constant 0 : index
    %c29 = arith.constant 29 : index
    %20 = vector.load %arg1[%c0_18, %c0_19, %c29] : memref<1x4x1256xf32, #tpu.memory_space<vmem>>, vector<1x4x1000xf32>
    %21 = vector.shape_cast %20 : vector<1x4x1000xf32> to vector<4x1000xf32>
    %c0_20 = arith.constant 0 : index
    %c0_21 = arith.constant 0 : index
    %c37 = arith.constant 37 : index
    %22 = vector.load %arg1[%c0_20, %c0_21, %c37] : memref<1x4x1256xf32, #tpu.memory_space<vmem>>, vector<1x4x1000xf32>
    %23 = vector.shape_cast %22 : vector<1x4x1000xf32> to vector<4x1000xf32>
    %c0_22 = arith.constant 0 : index
    %c0_23 = arith.constant 0 : index
    %c38 = arith.constant 38 : index
    %24 = vector.load %arg1[%c0_22, %c0_23, %c38] : memref<1x4x1256xf32, #tpu.memory_space<vmem>>, vector<1x4x1000xf32>
    %25 = vector.shape_cast %24 : vector<1x4x1000xf32> to vector<4x1000xf32>
    %c0_24 = arith.constant 0 : index
    %c0_25 = arith.constant 0 : index
    %c39 = arith.constant 39 : index
    %26 = vector.load %arg1[%c0_24, %c0_25, %c39] : memref<1x4x1256xf32, #tpu.memory_space<vmem>>, vector<1x4x1000xf32>
    %27 = vector.shape_cast %26 : vector<1x4x1000xf32> to vector<4x1000xf32>
    %c0_26 = arith.constant 0 : index
    %c0_27 = arith.constant 0 : index
    %c117 = arith.constant 117 : index
    %28 = vector.load %arg1[%c0_26, %c0_27, %c117] : memref<1x4x1256xf32, #tpu.memory_space<vmem>>, vector<1x4x1000xf32>
    %29 = vector.shape_cast %28 : vector<1x4x1000xf32> to vector<4x1000xf32>
    %c0_28 = arith.constant 0 : index
    %c0_29 = arith.constant 0 : index
    %c118 = arith.constant 118 : index
    %30 = vector.load %arg1[%c0_28, %c0_29, %c118] : memref<1x4x1256xf32, #tpu.memory_space<vmem>>, vector<1x4x1000xf32>
    %31 = vector.shape_cast %30 : vector<1x4x1000xf32> to vector<4x1000xf32>
    %c0_30 = arith.constant 0 : index
    %c0_31 = arith.constant 0 : index
    %c119 = arith.constant 119 : index
    %32 = vector.load %arg1[%c0_30, %c0_31, %c119] : memref<1x4x1256xf32, #tpu.memory_space<vmem>>, vector<1x4x1000xf32>
    %33 = vector.shape_cast %32 : vector<1x4x1000xf32> to vector<4x1000xf32>
    %c0_32 = arith.constant 0 : index
    %c0_33 = arith.constant 0 : index
    %c127 = arith.constant 127 : index
    %34 = vector.load %arg1[%c0_32, %c0_33, %c127] : memref<1x4x1256xf32, #tpu.memory_space<vmem>>, vector<1x4x1000xf32>
    %35 = vector.shape_cast %34 : vector<1x4x1000xf32> to vector<4x1000xf32>
    %c0_34 = arith.constant 0 : index
    %c0_35 = arith.constant 0 : index
    %c128_36 = arith.constant 128 : index
    %36 = vector.load %arg1[%c0_34, %c0_35, %c128_36] : memref<1x4x1256xf32, #tpu.memory_space<vmem>>, vector<1x4x1000xf32>
    %37 = vector.shape_cast %36 : vector<1x4x1000xf32> to vector<4x1000xf32>
    %c0_37 = arith.constant 0 : index
    %c0_38 = arith.constant 0 : index
    %c129 = arith.constant 129 : index
    %38 = vector.load %arg1[%c0_37, %c0_38, %c129] : memref<1x4x1256xf32, #tpu.memory_space<vmem>>, vector<1x4x1000xf32>
    %39 = vector.shape_cast %38 : vector<1x4x1000xf32> to vector<4x1000xf32>
    %c0_39 = arith.constant 0 : index
    %c0_40 = arith.constant 0 : index
    %c137 = arith.constant 137 : index
    %40 = vector.load %arg1[%c0_39, %c0_40, %c137] : memref<1x4x1256xf32, #tpu.memory_space<vmem>>, vector<1x4x1000xf32>
    %41 = vector.shape_cast %40 : vector<1x4x1000xf32> to vector<4x1000xf32>
    %c0_41 = arith.constant 0 : index
    %c0_42 = arith.constant 0 : index
    %c138 = arith.constant 138 : index
    %42 = vector.load %arg1[%c0_41, %c0_42, %c138] : memref<1x4x1256xf32, #tpu.memory_space<vmem>>, vector<1x4x1000xf32>
    %43 = vector.shape_cast %42 : vector<1x4x1000xf32> to vector<4x1000xf32>
    %c0_43 = arith.constant 0 : index
    %c0_44 = arith.constant 0 : index
    %c139 = arith.constant 139 : index
    %44 = vector.load %arg1[%c0_43, %c0_44, %c139] : memref<1x4x1256xf32, #tpu.memory_space<vmem>>, vector<1x4x1000xf32>
    %45 = vector.shape_cast %44 : vector<1x4x1000xf32> to vector<4x1000xf32>
    %c0_45 = arith.constant 0 : index
    %c0_46 = arith.constant 0 : index
    %c217 = arith.constant 217 : index
    %46 = vector.load %arg1[%c0_45, %c0_46, %c217] : memref<1x4x1256xf32, #tpu.memory_space<vmem>>, vector<1x4x1000xf32>
    %47 = vector.shape_cast %46 : vector<1x4x1000xf32> to vector<4x1000xf32>
    %c0_47 = arith.constant 0 : index
    %c0_48 = arith.constant 0 : index
    %c218 = arith.constant 218 : index
    %48 = vector.load %arg1[%c0_47, %c0_48, %c218] : memref<1x4x1256xf32, #tpu.memory_space<vmem>>, vector<1x4x1000xf32>
    %49 = vector.shape_cast %48 : vector<1x4x1000xf32> to vector<4x1000xf32>
    %c0_49 = arith.constant 0 : index
    %c0_50 = arith.constant 0 : index
    %c219 = arith.constant 219 : index
    %50 = vector.load %arg1[%c0_49, %c0_50, %c219] : memref<1x4x1256xf32, #tpu.memory_space<vmem>>, vector<1x4x1000xf32>
    %51 = vector.shape_cast %50 : vector<1x4x1000xf32> to vector<4x1000xf32>
    %c0_51 = arith.constant 0 : index
    %c0_52 = arith.constant 0 : index
    %c227 = arith.constant 227 : index
    %52 = vector.load %arg1[%c0_51, %c0_52, %c227] : memref<1x4x1256xf32, #tpu.memory_space<vmem>>, vector<1x4x1000xf32>
    %53 = vector.shape_cast %52 : vector<1x4x1000xf32> to vector<4x1000xf32>
    %c0_53 = arith.constant 0 : index
    %c0_54 = arith.constant 0 : index
    %c228 = arith.constant 228 : index
    %54 = vector.load %arg1[%c0_53, %c0_54, %c228] : memref<1x4x1256xf32, #tpu.memory_space<vmem>>, vector<1x4x1000xf32>
    %55 = vector.shape_cast %54 : vector<1x4x1000xf32> to vector<4x1000xf32>
    %c0_55 = arith.constant 0 : index
    %c0_56 = arith.constant 0 : index
    %c229 = arith.constant 229 : index
    %56 = vector.load %arg1[%c0_55, %c0_56, %c229] : memref<1x4x1256xf32, #tpu.memory_space<vmem>>, vector<1x4x1000xf32>
    %57 = vector.shape_cast %56 : vector<1x4x1000xf32> to vector<4x1000xf32>
    %c0_57 = arith.constant 0 : index
    %c0_58 = arith.constant 0 : index
    %c237 = arith.constant 237 : index
    %58 = vector.load %arg1[%c0_57, %c0_58, %c237] : memref<1x4x1256xf32, #tpu.memory_space<vmem>>, vector<1x4x1000xf32>
    %59 = vector.shape_cast %58 : vector<1x4x1000xf32> to vector<4x1000xf32>
    %c0_59 = arith.constant 0 : index
    %c0_60 = arith.constant 0 : index
    %c238 = arith.constant 238 : index
    %60 = vector.load %arg1[%c0_59, %c0_60, %c238] : memref<1x4x1256xf32, #tpu.memory_space<vmem>>, vector<1x4x1000xf32>
    %61 = vector.shape_cast %60 : vector<1x4x1000xf32> to vector<4x1000xf32>
    %c0_61 = arith.constant 0 : index
    %c0_62 = arith.constant 0 : index
    %c239 = arith.constant 239 : index
    %62 = vector.load %arg1[%c0_61, %c0_62, %c239] : memref<1x4x1256xf32, #tpu.memory_space<vmem>>, vector<1x4x1000xf32>
    %63 = vector.shape_cast %62 : vector<1x4x1000xf32> to vector<4x1000xf32>
    %64 = tpu.concatenate %11, %13, %15, %17, %19, %21, %23, %25, %27, %29, %31, %33, %35, %37, %39, %41 in 0 : vector<4x1000xf32>, vector<4x1000xf32>, vector<4x1000xf32>, vector<4x1000xf32>, vector<4x1000xf32>, vector<4x1000xf32>, vector<4x1000xf32>, vector<4x1000xf32>, vector<4x1000xf32>, vector<4x1000xf32>, vector<4x1000xf32>, vector<4x1000xf32>, vector<4x1000xf32>, vector<4x1000xf32>, vector<4x1000xf32>, vector<4x1000xf32> -> vector<64x1000xf32>
    %65 = tpu.concatenate %43, %45, %47, %49, %51, %53, %55, %57, %59, %61, %63 in 0 : vector<4x1000xf32>, vector<4x1000xf32>, vector<4x1000xf32>, vector<4x1000xf32>, vector<4x1000xf32>, vector<4x1000xf32>, vector<4x1000xf32>, vector<4x1000xf32>, vector<4x1000xf32>, vector<4x1000xf32>, vector<4x1000xf32> -> vector<44x1000xf32>
    %66 = tpu.concatenate %64, %65 in 0 : vector<64x1000xf32>, vector<44x1000xf32> -> vector<108x1000xf32>
    %c0_63 = arith.constant 0 : index
    %c0_64 = arith.constant 0 : index
    %67 = vector.load %arg3[%c0_63, %c0_64] : memref<4x108xf32, #tpu.memory_space<vmem>>, vector<4x108xf32>
    %cst_65 = arith.constant dense<0.000000e+00> : vector<4x1000xf32>
    %68 = tpu.matmul %67, %66, %cst_65 {dimension_numbers = #tpu.dot_dimension_numbers<[1], [0], [0], [1], [0, 0, 1, 1], [], []>} : vector<4x108xf32>, vector<108x1000xf32>, vector<4x1000xf32> -> vector<4x1000xf32>
    %c0_66 = arith.constant 0 : index
    %c0_67 = arith.constant 0 : index
    %69 = vector.load %arg4[%c0_66, %c0_67] : memref<4x1xf32, #tpu.memory_space<vmem>>, vector<4x1xf32>
    %70 = vector.broadcast %69 : vector<4x1xf32> to vector<4x1000xf32>
    %71 = arith.addf %68, %70 : vector<4x1000xf32>
    %cst_68 = arith.constant 2.000000e-01 : f32
    %72 = vector.broadcast %cst_68 : f32 to vector<4x1000xf32>
    %73 = arith.mulf %72, %71 : vector<4x1000xf32>
    %74 = arith.maximumf %71, %73 : vector<4x1000xf32>
    %75 = arith.mulf %74, %2 : vector<4x1000xf32>
    %c0_69 = arith.constant 0 : index
    %c4 = arith.constant 4 : index
    %c0_70 = arith.constant 0 : index
    %76 = vector.load %arg9[%c0_69, %c4, %c0_70] : memref<1x16x1000xf32, #tpu.memory_space<vmem>>, vector<1x4x1000xf32>
    %77 = vector.shape_cast %76 : vector<1x4x1000xf32> to vector<4x1000xf32>
    %78 = vector.shape_cast %75 : vector<4x1000xf32> to vector<1x4x1000xf32>
    tpu.vector_store %arg9[%c0_69, %c4, %c0_70], %78 {strides = array<i32>} : memref<1x16x1000xf32, #tpu.memory_space<vmem>>, vector<1x4x1000xf32>,
    %c0_71 = arith.constant 0 : index
    %c128_72 = arith.constant 128 : index
    %79 = vector.load %arg10[%c0_71, %c128_72] : memref<8x1256xf32, #tpu.memory_space<vmem>>, vector<4x1000xf32>
    tpu.vector_store %arg10[%c0_71, %c128_72], %75 {strides = array<i32>} : memref<8x1256xf32, #tpu.memory_space<vmem>>, vector<4x1000xf32>,
    %c0_73 = arith.constant 0 : index
    %c17_74 = arith.constant 17 : index
    %80 = vector.load %arg10[%c0_73, %c17_74] : memref<8x1256xf32, #tpu.memory_space<vmem>>, vector<4x1000xf32>
    %c0_75 = arith.constant 0 : index
    %c18_76 = arith.constant 18 : index
    %81 = vector.load %arg10[%c0_75, %c18_76] : memref<8x1256xf32, #tpu.memory_space<vmem>>, vector<4x1000xf32>
    %c0_77 = arith.constant 0 : index
    %c19_78 = arith.constant 19 : index
    %82 = vector.load %arg10[%c0_77, %c19_78] : memref<8x1256xf32, #tpu.memory_space<vmem>>, vector<4x1000xf32>
    %c0_79 = arith.constant 0 : index
    %c27_80 = arith.constant 27 : index
    %83 = vector.load %arg10[%c0_79, %c27_80] : memref<8x1256xf32, #tpu.memory_space<vmem>>, vector<4x1000xf32>
    %c0_81 = arith.constant 0 : index
    %c28_82 = arith.constant 28 : index
    %84 = vector.load %arg10[%c0_81, %c28_82] : memref<8x1256xf32, #tpu.memory_space<vmem>>, vector<4x1000xf32>
    %c0_83 = arith.constant 0 : index
    %c29_84 = arith.constant 29 : index
    %85 = vector.load %arg10[%c0_83, %c29_84] : memref<8x1256xf32, #tpu.memory_space<vmem>>, vector<4x1000xf32>
    %c0_85 = arith.constant 0 : index
    %c37_86 = arith.constant 37 : index
    %86 = vector.load %arg10[%c0_85, %c37_86] : memref<8x1256xf32, #tpu.memory_space<vmem>>, vector<4x1000xf32>
    %c0_87 = arith.constant 0 : index
    %c38_88 = arith.constant 38 : index
    %87 = vector.load %arg10[%c0_87, %c38_88] : memref<8x1256xf32, #tpu.memory_space<vmem>>, vector<4x1000xf32>
    %c0_89 = arith.constant 0 : index
    %c39_90 = arith.constant 39 : index
    %88 = vector.load %arg10[%c0_89, %c39_90] : memref<8x1256xf32, #tpu.memory_space<vmem>>, vector<4x1000xf32>
    %c0_91 = arith.constant 0 : index
    %c117_92 = arith.constant 117 : index
    %89 = vector.load %arg10[%c0_91, %c117_92] : memref<8x1256xf32, #tpu.memory_space<vmem>>, vector<4x1000xf32>
    %c0_93 = arith.constant 0 : index
    %c118_94 = arith.constant 118 : index
    %90 = vector.load %arg10[%c0_93, %c118_94] : memref<8x1256xf32, #tpu.memory_space<vmem>>, vector<4x1000xf32>
    %c0_95 = arith.constant 0 : index
    %c119_96 = arith.constant 119 : index
    %91 = vector.load %arg10[%c0_95, %c119_96] : memref<8x1256xf32, #tpu.memory_space<vmem>>, vector<4x1000xf32>
    %c0_97 = arith.constant 0 : index
    %c127_98 = arith.constant 127 : index
    %92 = vector.load %arg10[%c0_97, %c127_98] : memref<8x1256xf32, #tpu.memory_space<vmem>>, vector<4x1000xf32>
    %c0_99 = arith.constant 0 : index
    %c128_100 = arith.constant 128 : index
    %93 = vector.load %arg10[%c0_99, %c128_100] : memref<8x1256xf32, #tpu.memory_space<vmem>>, vector<4x1000xf32>
    %c0_101 = arith.constant 0 : index
    %c129_102 = arith.constant 129 : index
    %94 = vector.load %arg10[%c0_101, %c129_102] : memref<8x1256xf32, #tpu.memory_space<vmem>>, vector<4x1000xf32>
    %c0_103 = arith.constant 0 : index
    %c137_104 = arith.constant 137 : index
    %95 = vector.load %arg10[%c0_103, %c137_104] : memref<8x1256xf32, #tpu.memory_space<vmem>>, vector<4x1000xf32>
    %c0_105 = arith.constant 0 : index
    %c138_106 = arith.constant 138 : index
    %96 = vector.load %arg10[%c0_105, %c138_106] : memref<8x1256xf32, #tpu.memory_space<vmem>>, vector<4x1000xf32>
    %c0_107 = arith.constant 0 : index
    %c139_108 = arith.constant 139 : index
    %97 = vector.load %arg10[%c0_107, %c139_108] : memref<8x1256xf32, #tpu.memory_space<vmem>>, vector<4x1000xf32>
    %c0_109 = arith.constant 0 : index
    %c217_110 = arith.constant 217 : index
    %98 = vector.load %arg10[%c0_109, %c217_110] : memref<8x1256xf32, #tpu.memory_space<vmem>>, vector<4x1000xf32>
    %c0_111 = arith.constant 0 : index
    %c218_112 = arith.constant 218 : index
    %99 = vector.load %arg10[%c0_111, %c218_112] : memref<8x1256xf32, #tpu.memory_space<vmem>>, vector<4x1000xf32>
    %c0_113 = arith.constant 0 : index
    %c219_114 = arith.constant 219 : index
    %100 = vector.load %arg10[%c0_113, %c219_114] : memref<8x1256xf32, #tpu.memory_space<vmem>>, vector<4x1000xf32>
    %c0_115 = arith.constant 0 : index
    %c227_116 = arith.constant 227 : index
    %101 = vector.load %arg10[%c0_115, %c227_116] : memref<8x1256xf32, #tpu.memory_space<vmem>>, vector<4x1000xf32>
    %c0_117 = arith.constant 0 : index
    %c228_118 = arith.constant 228 : index
    %102 = vector.load %arg10[%c0_117, %c228_118] : memref<8x1256xf32, #tpu.memory_space<vmem>>, vector<4x1000xf32>
    %c0_119 = arith.constant 0 : index
    %c229_120 = arith.constant 229 : index
    %103 = vector.load %arg10[%c0_119, %c229_120] : memref<8x1256xf32, #tpu.memory_space<vmem>>, vector<4x1000xf32>
    %c0_121 = arith.constant 0 : index
    %c237_122 = arith.constant 237 : index
    %104 = vector.load %arg10[%c0_121, %c237_122] : memref<8x1256xf32, #tpu.memory_space<vmem>>, vector<4x1000xf32>
    %c0_123 = arith.constant 0 : index
    %c238_124 = arith.constant 238 : index
    %105 = vector.load %arg10[%c0_123, %c238_124] : memref<8x1256xf32, #tpu.memory_space<vmem>>, vector<4x1000xf32>
    %c0_125 = arith.constant 0 : index
    %c239_126 = arith.constant 239 : index
    %106 = vector.load %arg10[%c0_125, %c239_126] : memref<8x1256xf32, #tpu.memory_space<vmem>>, vector<4x1000xf32>
    %107 = tpu.concatenate %80, %81, %82, %83, %84, %85, %86, %87, %88, %89, %90, %91, %92, %93, %94, %95 in 0 : vector<4x1000xf32>, vector<4x1000xf32>, vector<4x1000xf32>, vector<4x1000xf32>, vector<4x1000xf32>, vector<4x1000xf32>, vector<4x1000xf32>, vector<4x1000xf32>, vector<4x1000xf32>, vector<4x1000xf32>, vector<4x1000xf32>, vector<4x1000xf32>, vector<4x1000xf32>, vector<4x1000xf32>, vector<4x1000xf32>, vector<4x1000xf32> -> vector<64x1000xf32>
    %108 = tpu.concatenate %96, %97, %98, %99, %100, %101, %102, %103, %104, %105, %106 in 0 : vector<4x1000xf32>, vector<4x1000xf32>, vector<4x1000xf32>, vector<4x1000xf32>, vector<4x1000xf32>, vector<4x1000xf32>, vector<4x1000xf32>, vector<4x1000xf32>, vector<4x1000xf32>, vector<4x1000xf32>, vector<4x1000xf32> -> vector<44x1000xf32>
    %109 = tpu.concatenate %107, %108 in 0 : vector<64x1000xf32>, vector<44x1000xf32> -> vector<108x1000xf32>
    %c0_127 = arith.constant 0 : index
    %c0_128 = arith.constant 0 : index
    %110 = vector.load %arg5[%c0_127, %c0_128] : memref<4x108xf32, #tpu.memory_space<vmem>>, vector<4x108xf32>
    %cst_129 = arith.constant dense<0.000000e+00> : vector<4x1000xf32>
    %111 = tpu.matmul %110, %109, %cst_129 {dimension_numbers = #tpu.dot_dimension_numbers<[1], [0], [0], [1], [0, 0, 1, 1], [], []>} : vector<4x108xf32>, vector<108x1000xf32>, vector<4x1000xf32> -> vector<4x1000xf32>
    %c0_130 = arith.constant 0 : index
    %c0_131 = arith.constant 0 : index
    %112 = vector.load %arg6[%c0_130, %c0_131] : memref<4x1xf32, #tpu.memory_space<vmem>>, vector<4x1xf32>
    %113 = vector.broadcast %112 : vector<4x1xf32> to vector<4x1000xf32>
    %114 = arith.addf %111, %113 : vector<4x1000xf32>
    %cst_132 = arith.constant 2.000000e-01 : f32
    %115 = vector.broadcast %cst_132 : f32 to vector<4x1000xf32>
    %116 = arith.mulf %115, %114 : vector<4x1000xf32>
    %117 = arith.maximumf %114, %116 : vector<4x1000xf32>
    %118 = arith.mulf %117, %2 : vector<4x1000xf32>
    %c0_133 = arith.constant 0 : index
    %c8 = arith.constant 8 : index
    %c0_134 = arith.constant 0 : index
    %119 = vector.load %arg9[%c0_133, %c8, %c0_134] : memref<1x16x1000xf32, #tpu.memory_space<vmem>>, vector<1x4x1000xf32>
    %120 = vector.shape_cast %119 : vector<1x4x1000xf32> to vector<4x1000xf32>
    %121 = vector.shape_cast %118 : vector<4x1000xf32> to vector<1x4x1000xf32>
    tpu.vector_store %arg9[%c0_133, %c8, %c0_134], %121 {strides = array<i32>} : memref<1x16x1000xf32, #tpu.memory_space<vmem>>, vector<1x4x1000xf32>,
    %c4_135 = arith.constant 4 : index
    %c128_136 = arith.constant 128 : index
    %122 = vector.load %arg10[%c4_135, %c128_136] : memref<8x1256xf32, #tpu.memory_space<vmem>>, vector<4x1000xf32>
    tpu.vector_store %arg10[%c4_135, %c128_136], %118 {strides = array<i32>} : memref<8x1256xf32, #tpu.memory_space<vmem>>, vector<4x1000xf32>,
    %c0_137 = arith.constant 0 : index
    %c17_138 = arith.constant 17 : index
    %123 = vector.load %arg10[%c0_137, %c17_138] : memref<8x1256xf32, #tpu.memory_space<vmem>>, vector<8x1000xf32>
    %c0_139 = arith.constant 0 : index
    %c18_140 = arith.constant 18 : index
    %124 = vector.load %arg10[%c0_139, %c18_140] : memref<8x1256xf32, #tpu.memory_space<vmem>>, vector<8x1000xf32>
    %c0_141 = arith.constant 0 : index
    %c19_142 = arith.constant 19 : index
    %125 = vector.load %arg10[%c0_141, %c19_142] : memref<8x1256xf32, #tpu.memory_space<vmem>>, vector<8x1000xf32>
    %c0_143 = arith.constant 0 : index
    %c27_144 = arith.constant 27 : index
    %126 = vector.load %arg10[%c0_143, %c27_144] : memref<8x1256xf32, #tpu.memory_space<vmem>>, vector<8x1000xf32>
    %c0_145 = arith.constant 0 : index
    %c28_146 = arith.constant 28 : index
    %127 = vector.load %arg10[%c0_145, %c28_146] : memref<8x1256xf32, #tpu.memory_space<vmem>>, vector<8x1000xf32>
    %c0_147 = arith.constant 0 : index
    %c29_148 = arith.constant 29 : index
    %128 = vector.load %arg10[%c0_147, %c29_148] : memref<8x1256xf32, #tpu.memory_space<vmem>>, vector<8x1000xf32>
    %c0_149 = arith.constant 0 : index
    %c37_150 = arith.constant 37 : index
    %129 = vector.load %arg10[%c0_149, %c37_150] : memref<8x1256xf32, #tpu.memory_space<vmem>>, vector<8x1000xf32>
    %c0_151 = arith.constant 0 : index
    %c38_152 = arith.constant 38 : index
    %130 = vector.load %arg10[%c0_151, %c38_152] : memref<8x1256xf32, #tpu.memory_space<vmem>>, vector<8x1000xf32>
    %c0_153 = arith.constant 0 : index
    %c39_154 = arith.constant 39 : index
    %131 = vector.load %arg10[%c0_153, %c39_154] : memref<8x1256xf32, #tpu.memory_space<vmem>>, vector<8x1000xf32>
    %c0_155 = arith.constant 0 : index
    %c117_156 = arith.constant 117 : index
    %132 = vector.load %arg10[%c0_155, %c117_156] : memref<8x1256xf32, #tpu.memory_space<vmem>>, vector<8x1000xf32>
    %c0_157 = arith.constant 0 : index
    %c118_158 = arith.constant 118 : index
    %133 = vector.load %arg10[%c0_157, %c118_158] : memref<8x1256xf32, #tpu.memory_space<vmem>>, vector<8x1000xf32>
    %c0_159 = arith.constant 0 : index
    %c119_160 = arith.constant 119 : index
    %134 = vector.load %arg10[%c0_159, %c119_160] : memref<8x1256xf32, #tpu.memory_space<vmem>>, vector<8x1000xf32>
    %c0_161 = arith.constant 0 : index
    %c127_162 = arith.constant 127 : index
    %135 = vector.load %arg10[%c0_161, %c127_162] : memref<8x1256xf32, #tpu.memory_space<vmem>>, vector<8x1000xf32>
    %c0_163 = arith.constant 0 : index
    %c128_164 = arith.constant 128 : index
    %136 = vector.load %arg10[%c0_163, %c128_164] : memref<8x1256xf32, #tpu.memory_space<vmem>>, vector<8x1000xf32>
    %c0_165 = arith.constant 0 : index
    %c129_166 = arith.constant 129 : index
    %137 = vector.load %arg10[%c0_165, %c129_166] : memref<8x1256xf32, #tpu.memory_space<vmem>>, vector<8x1000xf32>
    %c0_167 = arith.constant 0 : index
    %c137_168 = arith.constant 137 : index
    %138 = vector.load %arg10[%c0_167, %c137_168] : memref<8x1256xf32, #tpu.memory_space<vmem>>, vector<8x1000xf32>
    %c0_169 = arith.constant 0 : index
    %c138_170 = arith.constant 138 : index
    %139 = vector.load %arg10[%c0_169, %c138_170] : memref<8x1256xf32, #tpu.memory_space<vmem>>, vector<8x1000xf32>
    %c0_171 = arith.constant 0 : index
    %c139_172 = arith.constant 139 : index
    %140 = vector.load %arg10[%c0_171, %c139_172] : memref<8x1256xf32, #tpu.memory_space<vmem>>, vector<8x1000xf32>
    %c0_173 = arith.constant 0 : index
    %c217_174 = arith.constant 217 : index
    %141 = vector.load %arg10[%c0_173, %c217_174] : memref<8x1256xf32, #tpu.memory_space<vmem>>, vector<8x1000xf32>
    %c0_175 = arith.constant 0 : index
    %c218_176 = arith.constant 218 : index
    %142 = vector.load %arg10[%c0_175, %c218_176] : memref<8x1256xf32, #tpu.memory_space<vmem>>, vector<8x1000xf32>
    %c0_177 = arith.constant 0 : index
    %c219_178 = arith.constant 219 : index
    %143 = vector.load %arg10[%c0_177, %c219_178] : memref<8x1256xf32, #tpu.memory_space<vmem>>, vector<8x1000xf32>
    %c0_179 = arith.constant 0 : index
    %c227_180 = arith.constant 227 : index
    %144 = vector.load %arg10[%c0_179, %c227_180] : memref<8x1256xf32, #tpu.memory_space<vmem>>, vector<8x1000xf32>
    %c0_181 = arith.constant 0 : index
    %c228_182 = arith.constant 228 : index
    %145 = vector.load %arg10[%c0_181, %c228_182] : memref<8x1256xf32, #tpu.memory_space<vmem>>, vector<8x1000xf32>
    %c0_183 = arith.constant 0 : index
    %c229_184 = arith.constant 229 : index
    %146 = vector.load %arg10[%c0_183, %c229_184] : memref<8x1256xf32, #tpu.memory_space<vmem>>, vector<8x1000xf32>
    %c0_185 = arith.constant 0 : index
    %c237_186 = arith.constant 237 : index
    %147 = vector.load %arg10[%c0_185, %c237_186] : memref<8x1256xf32, #tpu.memory_space<vmem>>, vector<8x1000xf32>
    %c0_187 = arith.constant 0 : index
    %c238_188 = arith.constant 238 : index
    %148 = vector.load %arg10[%c0_187, %c238_188] : memref<8x1256xf32, #tpu.memory_space<vmem>>, vector<8x1000xf32>
    %c0_189 = arith.constant 0 : index
    %c239_190 = arith.constant 239 : index
    %149 = vector.load %arg10[%c0_189, %c239_190] : memref<8x1256xf32, #tpu.memory_space<vmem>>, vector<8x1000xf32>
    %150 = tpu.concatenate %123, %124, %125, %126, %127, %128, %129, %130, %131, %132, %133, %134, %135, %136, %137, %138 in 0 : vector<8x1000xf32>, vector<8x1000xf32>, vector<8x1000xf32>, vector<8x1000xf32>, vector<8x1000xf32>, vector<8x1000xf32>, vector<8x1000xf32>, vector<8x1000xf32>, vector<8x1000xf32>, vector<8x1000xf32>, vector<8x1000xf32>, vector<8x1000xf32>, vector<8x1000xf32>, vector<8x1000xf32>, vector<8x1000xf32>, vector<8x1000xf32> -> vector<128x1000xf32>
    %151 = tpu.concatenate %139, %140, %141, %142, %143, %144, %145, %146, %147, %148, %149 in 0 : vector<8x1000xf32>, vector<8x1000xf32>, vector<8x1000xf32>, vector<8x1000xf32>, vector<8x1000xf32>, vector<8x1000xf32>, vector<8x1000xf32>, vector<8x1000xf32>, vector<8x1000xf32>, vector<8x1000xf32>, vector<8x1000xf32> -> vector<88x1000xf32>
    %152 = tpu.concatenate %150, %151 in 0 : vector<128x1000xf32>, vector<88x1000xf32> -> vector<216x1000xf32>
    %c0_191 = arith.constant 0 : index
    %c0_192 = arith.constant 0 : index
    %153 = vector.load %arg7[%c0_191, %c0_192] : memref<4x216xf32, #tpu.memory_space<vmem>>, vector<4x216xf32>
    %cst_193 = arith.constant dense<0.000000e+00> : vector<4x1000xf32>
    %154 = tpu.matmul %153, %152, %cst_193 {dimension_numbers = #tpu.dot_dimension_numbers<[1], [0], [0], [1], [0, 0, 1, 1], [], []>} : vector<4x216xf32>, vector<216x1000xf32>, vector<4x1000xf32> -> vector<4x1000xf32>
    %c0_194 = arith.constant 0 : index
    %c0_195 = arith.constant 0 : index
    %155 = vector.load %arg8[%c0_194, %c0_195] : memref<4x1xf32, #tpu.memory_space<vmem>>, vector<4x1xf32>
    %156 = vector.broadcast %155 : vector<4x1xf32> to vector<4x1000xf32>
    %157 = arith.addf %154, %156 : vector<4x1000xf32>
    %cst_196 = arith.constant 2.000000e-01 : f32
    %158 = vector.broadcast %cst_196 : f32 to vector<4x1000xf32>
    %159 = arith.mulf %158, %157 : vector<4x1000xf32>
    %160 = arith.maximumf %157, %159 : vector<4x1000xf32>
    %161 = arith.mulf %160, %2 : vector<4x1000xf32>
    %c0_197 = arith.constant 0 : index
    %c12 = arith.constant 12 : index
    %c0_198 = arith.constant 0 : index
    %162 = vector.load %arg9[%c0_197, %c12, %c0_198] : memref<1x16x1000xf32, #tpu.memory_space<vmem>>, vector<1x4x1000xf32>
    %163 = vector.shape_cast %162 : vector<1x4x1000xf32> to vector<4x1000xf32>
    %164 = vector.shape_cast %161 : vector<4x1000xf32> to vector<1x4x1000xf32>
    tpu.vector_store %arg9[%c0_197, %c12, %c0_198], %164 {strides = array<i32>} : memref<1x16x1000xf32, #tpu.memory_space<vmem>>, vector<1x4x1000xf32>,
    return
  }
  func.func @transform_0(%arg0: i32) -> (i32, i32, i32) {
    %c0_i32 = arith.constant 0 : i32
    %c0_i32_0 = arith.constant 0 : i32
    %c0_i32_1 = arith.constant 0 : i32
    return %arg0, %c0_i32, %c0_i32_0 : i32, i32, i32
  }
  func.func @transform_1(%arg0: i32) -> (i32, i32) {
    %c0_i32 = arith.constant 0 : i32
    %c0_i32_0 = arith.constant 0 : i32
    %c0_i32_1 = arith.constant 0 : i32
    return %c0_i32, %c0_i32_0 : i32, i32
  }
  func.func @transform_2(%arg0: i32) -> (i32, i32) {
    %c0_i32 = arith.constant 0 : i32
    %c0_i32_0 = arith.constant 0 : i32
    %c0_i32_1 = arith.constant 0 : i32
    return %c0_i32, %c0_i32_0 : i32, i32
  }
  func.func @transform_3(%arg0: i32) -> (i32, i32) {
    %c0_i32 = arith.constant 0 : i32
    %c0_i32_0 = arith.constant 0 : i32
    %c0_i32_1 = arith.constant 0 : i32
    return %c0_i32, %c0_i32_0 : i32, i32
  }
  func.func @transform_4(%arg0: i32) -> (i32, i32) {
    %c0_i32 = arith.constant 0 : i32
    %c0_i32_0 = arith.constant 0 : i32
    %c0_i32_1 = arith.constant 0 : i32
    return %c0_i32, %c0_i32_0 : i32, i32
  }
  func.func @transform_5(%arg0: i32) -> (i32, i32) {
    %c0_i32 = arith.constant 0 : i32
    %c0_i32_0 = arith.constant 0 : i32
    %c0_i32_1 = arith.constant 0 : i32
    return %c0_i32, %c0_i32_0 : i32, i32
  }
  func.func @transform_6(%arg0: i32) -> (i32, i32) {
    %c0_i32 = arith.constant 0 : i32
    %c0_i32_0 = arith.constant 0 : i32
    %c0_i32_1 = arith.constant 0 : i32
    return %c0_i32, %c0_i32_0 : i32, i32
  }
  func.func @transform_7(%arg0: i32) -> (i32, i32) {
    %c0_i32 = arith.constant 0 : i32
    %c0_i32_0 = arith.constant 0 : i32
    %c0_i32_1 = arith.constant 0 : i32
    return %c0_i32, %c0_i32_0 : i32, i32
  }
  func.func @transform_8(%arg0: i32) -> (i32, i32, i32) {
    %c0_i32 = arith.constant 0 : i32
    %c0_i32_0 = arith.constant 0 : i32
    %c0_i32_1 = arith.constant 0 : i32
    return %arg0, %c0_i32, %c0_i32_0 : i32, i32, i32
  }
}

</mosaic_0001>

<llo_original>
// kernel: dense_block_forward.1
$region0: #{dense_block_forward.1}
  #allocation0 [shape = 'u32[]', space=smem, size = 0x4, offset = 0x4, fixed_abs, tag = 'smem constant byte address 0x4 - core index']
  #allocation1 [shape = 'u32[144,128]{1,0:T(1,128)}', space=vmem, size = 0x12000, scoped, tag = 'internal scratch']
  #allocation2 [shape = 'f32[8,1256]{1,0:T(8,128)}', space=vmem, size = 0xa000, scoped, tag = 'scratch operand']
  %s0 = inlined_call_operand.vmem [shape: f32[2,4,1256], index: 0, kind: input, shape index: {}]
  %s1 = inlined_call_operand.vmem [shape: f32[1,1000], index: 1, kind: input, shape index: {}]
  %s2 = inlined_call_operand.vmem [shape: f32[4,108], index: 2, kind: input, shape index: {}]
  %s3 = inlined_call_operand.vmem [shape: f32[4,1], index: 3, kind: input, shape index: {}]
  %s4 = inlined_call_operand.vmem [shape: f32[4,108], index: 4, kind: input, shape index: {}]
  %s5 = inlined_call_operand.vmem [shape: f32[4,1], index: 5, kind: input, shape index: {}]
  %s6 = inlined_call_operand.vmem [shape: f32[4,216], index: 6, kind: input, shape index: {}]
  %s7 = inlined_call_operand.vmem [shape: f32[4,1], index: 7, kind: input, shape index: {}]
  %s8 = inlined_call_operand.vmem [shape: f32[2,16,1000], index: 8, kind: output, shape index: {}]
  %s9 = sld [smem:[#allocation0]]
  $region65: #{dense_block_forward.1} parent=0
    _
  %s11 = ssub.s32 1, %s9
  %s12 = scalar_select 0, %s11, %s9
  loop: start=0, step=1, limit=4
  $region2: #{dense_block_forward.1} parent=0 // loop_pre_header
    _
  $region3: #{dense_block_forward.1} parent=0 // loop_header
    %s14 = sphi 0, %s18
    %p15 = scmp.ge.s32.totalorder %s14, 4
    %s24 = sphi 0, %s26
    %s27 = sphi 0, %s24
    %s28 = sphi 0, %s27
    %s44 = sphi 0, %s28
    %s48 = sphi 0, %s48
    %s50 = sphi 0, %s48
    %s51 = sphi 0, %s50
    %s65 = sphi 0, %s51
    %s69 = sphi 0, %s69
    %s71 = sphi 0, %s69
    %s72 = sphi 0, %s71
    %s86 = sphi 0, %s72
    %s90 = sphi 0, %s90
    %s92 = sphi 0, %s90
    %s93 = sphi 0, %s92
    %s107 = sphi 0, %s93
    %s111 = sphi 0, %s111
    %s113 = sphi 0, %s111
    %s114 = sphi 0, %s113
    %s128 = sphi 0, %s114
    %s132 = sphi 0, %s132
    %s134 = sphi 0, %s132
    %s135 = sphi 0, %s134
    %s149 = sphi 0, %s135
    %s153 = sphi 0, %s153
    %s155 = sphi 0, %s153
    %s156 = sphi 0, %s155
    %s170 = sphi 0, %s156
    %s174 = sphi 0, %s174
    %s176 = sphi 0, %s174
    %s177 = sphi 0, %s176
    %s191 = sphi 0, %s177
    %s197 = sphi 0, %s199
    %s200 = sphi 0, %s197
    %s201 = sphi 0, %s200
    %s217 = sphi 0, %s201
  $region4: #{dense_block_forward.1} parent=0 // loop_header_branch
    %17 = sbr.rel (%p15) target = $region8
  $region5: #{dense_block_forward.1} parent=0 // loop_body
    %s19 = ssub.s32 %s14, 1
    %s20 = ssub.s32 %s14, 2
    %s21 = sadd.s32 %s14, 1
    %s22 = ssub.s32 %s14, %s21
    %p23 = scmp.eq.s32.totalorder %s22, 0
    %s25 = sadd.s32 %s24, 1
    %s26 = scalar_select %p23, %s24, %s25
    %p29 = pneg %p23
    %p30 = scmp.eq.s32.totalorder %s14, 1
    %p31 = por %p29, %p30
    %p32 = scmp.ne.s32.totalorder %s24, %s27
    %p33 = scmp.eq.s32.totalorder %s14, 0
    %p34 = por %p32, %p33
    %p35 = scmp.ne.s32.totalorder %s24, %s27
    %p36 = scmp.eq.s32.totalorder %s19, 1
    %p37 = por %p35, %p36
    %p38 = scmp.ne.s32.totalorder %s27, %s28
    %p39 = scmp.eq.s32.totalorder %s19, 0
    %p40 = por %p38, %p39
    %p41 = scmp.ne.s32.totalorder %s27, %s28
    %p42 = scmp.eq.s32.totalorder %s20, 1
    %p43 = por %p41, %p42
    %p45 = scmp.ne.s32.totalorder %s28, %s44
    %p46 = scmp.eq.s32.totalorder %s20, 0
    %p47 = por %p45, %p46
    %s49 = sadd.s32 %s48, 1
    %p52 = scmp.eq.s32.totalorder %s14, 1
    %p53 = scmp.ne.s32.totalorder %s48, %s50
    %p54 = scmp.eq.s32.totalorder %s14, 0
    %p55 = por %p53, %p54
    %p56 = scmp.ne.s32.totalorder %s48, %s50
    %p57 = scmp.eq.s32.totalorder %s19, 1
    %p58 = por %p56, %p57
    %p59 = scmp.ne.s32.totalorder %s50, %s51
    %p60 = scmp.eq.s32.totalorder %s19, 0
    %p61 = por %p59, %p60
    %p62 = scmp.ne.s32.totalorder %s50, %s51
    %p63 = scmp.eq.s32.totalorder %s20, 1
    %p64 = por %p62, %p63
    %p66 = scmp.ne.s32.totalorder %s51, %s65
    %p67 = scmp.eq.s32.totalorder %s20, 0
    %p68 = por %p66, %p67
    %s70 = sadd.s32 %s69, 1
    %p73 = scmp.eq.s32.totalorder %s14, 1
    %p74 = scmp.ne.s32.totalorder %s69, %s71
    %p75 = scmp.eq.s32.totalorder %s14, 0
    %p76 = por %p74, %p75
    %p77 = scmp.ne.s32.totalorder %s69, %s71
    %p78 = scmp.eq.s32.totalorder %s19, 1
    %p79 = por %p77, %p78
    %p80 = scmp.ne.s32.totalorder %s71, %s72
    %p81 = scmp.eq.s32.totalorder %s19, 0
    %p82 = por %p80, %p81
    %p83 = scmp.ne.s32.totalorder %s71, %s72
    %p84 = scmp.eq.s32.totalorder %s20, 1
    %p85 = por %p83, %p84
    %p87 = scmp.ne.s32.totalorder %s72, %s86
    %p88 = scmp.eq.s32.totalorder %s20, 0
    %p89 = por %p87, %p88
    %s91 = sadd.s32 %s90, 1
    %p94 = scmp.eq.s32.totalorder %s14, 1
    %p95 = scmp.ne.s32.totalorder %s90, %s92
    %p96 = scmp.eq.s32.totalorder %s14, 0
    %p97 = por %p95, %p96
    %p98 = scmp.ne.s32.totalorder %s90, %s92
    %p99 = scmp.eq.s32.totalorder %s19, 1
    %p100 = por %p98, %p99
    %p101 = scmp.ne.s32.totalorder %s92, %s93
    %p102 = scmp.eq.s32.totalorder %s19, 0
    %p103 = por %p101, %p102
    %p104 = scmp.ne.s32.totalorder %s92, %s93
    %p105 = scmp.eq.s32.totalorder %s20, 1
    %p106 = por %p104, %p105
    %p108 = scmp.ne.s32.totalorder %s93, %s107
    %p109 = scmp.eq.s32.totalorder %s20, 0
    %p110 = por %p108, %p109
    %s112 = sadd.s32 %s111, 1
    %p115 = scmp.eq.s32.totalorder %s14, 1
    %p116 = scmp.ne.s32.totalorder %s111, %s113
    %p117 = scmp.eq.s32.totalorder %s14, 0
    %p118 = por %p116, %p117
    %p119 = scmp.ne.s32.totalorder %s111, %s113
    %p120 = scmp.eq.s32.totalorder %s19, 1
    %p121 = por %p119, %p120
    %p122 = scmp.ne.s32.totalorder %s113, %s114
    %p123 = scmp.eq.s32.totalorder %s19, 0
    %p124 = por %p122, %p123
    %p125 = scmp.ne.s32.totalorder %s113, %s114
    %p126 = scmp.eq.s32.totalorder %s20, 1
    %p127 = por %p125, %p126
    %p129 = scmp.ne.s32.totalorder %s114, %s128
    %p130 = scmp.eq.s32.totalorder %s20, 0
    %p131 = por %p129, %p130
    %s133 = sadd.s32 %s132, 1
    %p136 = scmp.eq.s32.totalorder %s14, 1
    %p137 = scmp.ne.s32.totalorder %s132, %s134
    %p138 = scmp.eq.s32.totalorder %s14, 0
    %p139 = por %p137, %p138
    %p140 = scmp.ne.s32.totalorder %s132, %s134
    %p141 = scmp.eq.s32.totalorder %s19, 1
    %p142 = por %p140, %p141
    %p143 = scmp.ne.s32.totalorder %s134, %s135
    %p144 = scmp.eq.s32.totalorder %s19, 0
    %p145 = por %p143, %p144
    %p146 = scmp.ne.s32.totalorder %s134, %s135
    %p147 = scmp.eq.s32.totalorder %s20, 1
    %p148 = por %p146, %p147
    %p150 = scmp.ne.s32.totalorder %s135, %s149
    %p151 = scmp.eq.s32.totalorder %s20, 0
    %p152 = por %p150, %p151
    %s154 = sadd.s32 %s153, 1
    %p157 = scmp.eq.s32.totalorder %s14, 1
    %p158 = scmp.ne.s32.totalorder %s153, %s155
    %p159 = scmp.eq.s32.totalorder %s14, 0
    %p160 = por %p158, %p159
    %p161 = scmp.ne.s32.totalorder %s153, %s155
    %p162 = scmp.eq.s32.totalorder %s19, 1
    %p163 = por %p161, %p162
    %p164 = scmp.ne.s32.totalorder %s155, %s156
    %p165 = scmp.eq.s32.totalorder %s19, 0
    %p166 = por %p164, %p165
    %p167 = scmp.ne.s32.totalorder %s155, %s156
    %p168 = scmp.eq.s32.totalorder %s20, 1
    %p169 = por %p167, %p168
    %p171 = scmp.ne.s32.totalorder %s156, %s170
    %p172 = scmp.eq.s32.totalorder %s20, 0
    %p173 = por %p171, %p172
    %s175 = sadd.s32 %s174, 1
    %p178 = scmp.eq.s32.totalorder %s14, 1
    %p179 = scmp.ne.s32.totalorder %s174, %s176
    %p180 = scmp.eq.s32.totalorder %s14, 0
    %p181 = por %p179, %p180
    %p182 = scmp.ne.s32.totalorder %s174, %s176
    %p183 = scmp.eq.s32.totalorder %s19, 1
    %p184 = por %p182, %p183
    %p185 = scmp.ne.s32.totalorder %s176, %s177
    %p186 = scmp.eq.s32.totalorder %s19, 0
    %p187 = por %p185, %p186
    %p188 = scmp.ne.s32.totalorder %s176, %s177
    %p189 = scmp.eq.s32.totalorder %s20, 1
    %p190 = por %p188, %p189
    %p192 = scmp.ne.s32.totalorder %s177, %s191
    %p193 = scmp.eq.s32.totalorder %s20, 0
    %p194 = por %p192, %p193
    %s195 = ssub.s32 %s14, %s21
    %p196 = scmp.eq.s32.totalorder %s195, 0
    %s198 = sadd.s32 %s197, 1
    %s199 = scalar_select %p196, %s197, %s198
    %p202 = pneg %p196
    %p203 = scmp.eq.s32.totalorder %s14, 1
    %p204 = por %p202, %p203
    %p205 = scmp.ne.s32.totalorder %s197, %s200
    %p206 = scmp.eq.s32.totalorder %s14, 0
    %p207 = por %p205, %p206
    %p208 = scmp.ne.s32.totalorder %s197, %s200
    %p209 = scmp.eq.s32.totalorder %s19, 1
    %p210 = por %p208, %p209
    %p211 = scmp.ne.s32.totalorder %s200, %s201
    %p212 = scmp.eq.s32.totalorder %s19, 0
    %p213 = por %p211, %p212
    %p214 = scmp.ne.s32.totalorder %s200, %s201
    %p215 = scmp.eq.s32.totalorder %s20, 1
    %p216 = por %p214, %p215
    %p218 = scmp.ne.s32.totalorder %s201, %s217
    %p219 = scmp.eq.s32.totalorder %s20, 0
    %p220 = por %p218, %p219
    %p221 = scmp.le.s32.totalorder 1, %s14
    %p222 = scmp.lt.s32.totalorder %s14, 3
    %p223 = pnand %p221, %p222
    %p224 = pneg %p223
    // Predicated region
    $region9: #{dense_block_forward.1} parent=5 // pred_check
      _
    $region10: #{dense_block_forward.1} parent=5 // pred_check_branch
      %226 = sbr.rel (%p223) target = $region12
    $region11: #{dense_block_forward.1} parent=5 // pred_region
      %s227 = ssub.s32 %s14, 1
      // Predicated region
      $region13: #{dense_block_forward.1} parent=11 // pred_check
        %p228 = pneg %p61
      $region14: #{dense_block_forward.1} parent=11 // pred_check_branch
        %230 = sbr.rel (%p228) target = $region16
      $region15: #{dense_block_forward.1} parent=11 // pred_region
        _
      $region16: #{dense_block_forward.1} parent=11 // pred_fallthru
        _
      // Predicated region
      $region17: #{dense_block_forward.1} parent=11 // pred_check
        %p231 = pneg %p82
      $region18: #{dense_block_forward.1} parent=11 // pred_check_branch
        %233 = sbr.rel (%p231) target = $region20
      $region19: #{dense_block_forward.1} parent=11 // pred_region
        _
      $region20: #{dense_block_forward.1} parent=11 // pred_fallthru
        _
      // Predicated region
      $region21: #{dense_block_forward.1} parent=11 // pred_check
        %p234 = pneg %p103
      $region22: #{dense_block_forward.1} parent=11 // pred_check_branch
        %236 = sbr.rel (%p234) target = $region24
      $region23: #{dense_block_forward.1} parent=11 // pred_region
        _
      $region24: #{dense_block_forward.1} parent=11 // pred_fallthru
        _
      // Predicated region
      $region25: #{dense_block_forward.1} parent=11 // pred_check
        %p237 = pneg %p124
      $region26: #{dense_block_forward.1} parent=11 // pred_check_branch
        %239 = sbr.rel (%p237) target = $region28
      $region27: #{dense_block_forward.1} parent=11 // pred_region
        _
      $region28: #{dense_block_forward.1} parent=11 // pred_fallthru
        _
      // Predicated region
      $region29: #{dense_block_forward.1} parent=11 // pred_check
        %p240 = pneg %p145
      $region30: #{dense_block_forward.1} parent=11 // pred_check_branch
        %242 = sbr.rel (%p240) target = $region32
      $region31: #{dense_block_forward.1} parent=11 // pred_region
        _
      $region32: #{dense_block_forward.1} parent=11 // pred_fallthru
        _
      // Predicated region
      $region33: #{dense_block_forward.1} parent=11 // pred_check
        %p243 = pneg %p166
      $region34: #{dense_block_forward.1} parent=11 // pred_check_branch
        %245 = sbr.rel (%p243) target = $region36
      $region35: #{dense_block_forward.1} parent=11 // pred_region
        _
      $region36: #{dense_block_forward.1} parent=11 // pred_fallthru
        _
      // Predicated region
      $region37: #{dense_block_forward.1} parent=11 // pred_check
        %p246 = pneg %p187
      $region38: #{dense_block_forward.1} parent=11 // pred_check_branch
        %248 = sbr.rel (%p246) target = $region40
      $region39: #{dense_block_forward.1} parent=11 // pred_region
        _
      $region40: #{dense_block_forward.1} parent=11 // pred_fallthru
        _
    $region12: #{dense_block_forward.1} parent=5 // pred_fallthru
      _
    %p249 = scmp.lt.s32.totalorder %s14, 2
    // Predicated region
    $region41: #{dense_block_forward.1} parent=5 // pred_check
      %p250 = pneg %p249
    $region42: #{dense_block_forward.1} parent=5 // pred_check_branch
      %252 = sbr.rel (%p250) target = $region44
    $region43: #{dense_block_forward.1} parent=5 // pred_region
      // Predicated region
      $region45: #{dense_block_forward.1} parent=43 // pred_check
        %p253 = pneg %p34
      $region46: #{dense_block_forward.1} parent=43 // pred_check_branch
        %255 = sbr.rel (%p253) target = $region48
      $region47: #{dense_block_forward.1} parent=43 // pred_region
        %p256 = scmp.lt.s32.totalorder %s14, 1
        %s257 = scalar_select %p256, %s14, 1
        %s258 = smul.addr %s257, 10
        %s259 = smul.addr %s258, 4
        %s260 = scalar_lea.vmem %s0, %s259
      $region48: #{dense_block_forward.1} parent=43 // pred_fallthru
        _
    $region44: #{dense_block_forward.1} parent=5 // pred_fallthru
      _
    %p261 = scmp.le.s32.totalorder 1, %s14
    %p262 = scmp.lt.s32.totalorder %s14, 3
    %p263 = pnand %p261, %p262
    %p264 = pneg %p263
    // Predicated region
    $region49: #{dense_block_forward.1} parent=5 // pred_check
      _
    $region50: #{dense_block_forward.1} parent=5 // pred_check_branch
      %266 = sbr.rel (%p263) target = $region52
    $region51: #{dense_block_forward.1} parent=5 // pred_region
      %s267 = ssub.s32 %s14, 1
      %p268 = scmp.lt.s32.totalorder %s19, 1
      %s269 = scalar_select %p268, %s19, 1
      %s270 = smul.addr %s269, 10
      %s271 = smul.addr %s270, 4
      %s272 = scalar_lea.vmem %s0, %s271
      %p273 = pneg %p40
      %p274 = pneg %p37
      %p275 = pneg %p61
      %p276 = pneg %p58
      %p277 = pneg %p82
      %p278 = pneg %p79
      %p279 = pneg %p103
      %p280 = pneg %p100
      %p281 = pneg %p124
      %p282 = pneg %p121
      %p283 = pneg %p145
      %p284 = pneg %p142
      %p285 = pneg %p166
      %p286 = pneg %p163
      %p287 = pneg %p187
      %p288 = pneg %p184
      %p289 = pneg %p213
      %p290 = pneg %p210
      %p291 = scmp.lt.s32.totalorder %s19, 1
      %s292 = scalar_select %p291, %s19, 1
      %s293 = smul.addr %s292, 16
      %s294 = smul.addr %s293, 8
      %s295 = scalar_lea.vmem %s8, %s294
      %p296 = scmp.lt.s32.totalorder %s19, 1
      %s297 = scalar_select %p296, %s19, 1
      %s298 = smul.addr %s297, 10
      %s299 = smul.addr %s298, 4
      %s300 = scalar_lea.vmem %s0, %s299
      %p301 = scmp.lt.s32.totalorder %s19, 1
      %s302 = scalar_select %p301, %s19, 1
      %s303 = smul.addr %s302, 16
      %s304 = smul.addr %s303, 8
      %s305 = scalar_lea.vmem %s8, %s304
      %v306 = vld [vmem:[%s1] sm:$0xff]
      %v308 = vlaneseq
      %v309 = vshrl.u32 %v308, 7
      %v310 = vsub.s32 0, %v309
      %v311 = vrot.slane %v306, %v310
      %v312 = vlaneseq
      %v313 = vshrl.u32 %v312, 7
      %v314 = vsub.s32 1, %v313
      %v315 = vrot.slane %v306, %v314
      %v316 = vlaneseq
      %v317 = vshrl.u32 %v316, 7
      %v318 = vsub.s32 2, %v317
      %v319 = vrot.slane %v306, %v318
      %v320 = vlaneseq
      %v321 = vshrl.u32 %v320, 7
      %v322 = vsub.s32 3, %v321
      %v323 = vrot.slane %v306, %v322
      %v324 = vlaneseq
      %v325 = vshrl.u32 %v324, 7
      %v326 = vsub.s32 4, %v325
      %v327 = vrot.slane %v306, %v326
      %v328 = vlaneseq
      %v329 = vshrl.u32 %v328, 7
      %v330 = vsub.s32 5, %v329
      %v331 = vrot.slane %v306, %v330
      %v332 = vlaneseq
      %v333 = vshrl.u32 %v332, 7
      %v334 = vsub.s32 6, %v333
      %v335 = vrot.slane %v306, %v334
      %v336 = vlaneseq
      %v337 = vshrl.u32 %v336, 7
      %v338 = vsub.s32 7, %v337
      %v339 = vrot.slane %v306, %v338
      %348 = vst [vmem:[#allocation2] sm:$0xff] 0.0
      %349 = vst [vmem:[#allocation2 + $0x8] sm:$0xff] 0.0
      %350 = vst [vmem:[#allocation2 + $0x10] sm:$0xff] 0.0
      %351 = vst [vmem:[#allocation2 + $0x18] sm:$0xff] 0.0
      %352 = vst [vmem:[#allocation2 + $0x20] sm:$0xff] 0.0
      %353 = vst [vmem:[#allocation2 + $0x28] sm:$0xff] 0.0
      %354 = vst [vmem:[#allocation2 + $0x30] sm:$0xff] 0.0
      %355 = vst [vmem:[#allocation2 + $0x38] sm:$0xff] 0.0
      %356 = vst [vmem:[#allocation2 + $0x40] sm:$0xff] 0.0
      %vm357 = vcmask 850944
      %358 = vst.msk [vmem:[#allocation2 + $0x48] sm:$0xff] %vm357, 0.0
      %v359 = vld [vmem:[%s300 + $0x4] sm:$0xff]
      %v360 = vld [vmem:[%s300 + $0xc] sm:$0xff]
      %v361 = vld [vmem:[%s300 + $0x14] sm:$0xff]
      %v362 = vld [vmem:[%s300 + $0x1c] sm:$0xff]
      %v367 = vcombine.high %v359, %v359
      %v368 = vcombine.high %v360, %v360
      %v369 = vcombine.high %v361, %v361
      %v370 = vcombine.high %v362, %v362
      %375 = vst [vmem:[%s305] sm:$0xf] %v359
      %376 = vst [vmem:[%s305 + $0x8] sm:$0xf] %v367
      %377 = vst [vmem:[%s305 + $0x10] sm:$0xf] %v360
      %378 = vst [vmem:[%s305 + $0x18] sm:$0xf] %v368
      %379 = vst [vmem:[%s305 + $0x20] sm:$0xf] %v361
      %380 = vst [vmem:[%s305 + $0x28] sm:$0xf] %v369
      %381 = vst [vmem:[%s305 + $0x30] sm:$0xf] %v362
      %vm382 = vcmask 846848
      %383 = vst.msk [vmem:[%s305 + $0x38] sm:$0xf] %vm382, %v370
      %v384 = vld [vmem:[%s300] sm:$0xff]
      %v385 = vld [vmem:[%s300 + $0x8] sm:$0xff]
      %v386 = vld [vmem:[%s300 + $0x10] sm:$0xff]
      %v387 = vld [vmem:[%s300 + $0x18] sm:$0xff]
      %v388 = vld [vmem:[%s300 + $0x20] sm:$0xf]
      %v389 = vld [vmem:[%s300 + $0x4] sm:$0xff]
      %v390 = vld [vmem:[%s300 + $0xc] sm:$0xff]
      %v391 = vld [vmem:[%s300 + $0x14] sm:$0xff]
      %v392 = vld [vmem:[%s300 + $0x1c] sm:$0xff]
      %v393 = vld [vmem:[%s300 + $0x24] sm:$0xf]
      %v398 = vcombine.high %v384, %v384
      %v399 = vcombine.high %v385, %v385
      %v400 = vcombine.high %v386, %v386
      %v401 = vcombine.high %v387, %v387
      %v406 = vcombine.low %v384, %v384
      %v407 = vcombine.low %v385, %v385
      %v408 = vcombine.low %v386, %v386
      %v409 = vcombine.low %v387, %v387
      %410 = vrot.lane.b32.xlu0 %v406, 127
      %v411 = vpop.permute.xlu0 %410
      %412 = vrot.lane.b32.xlu0 %v384, 127
      %v413 = vpop.permute.xlu0 %412
      %414 = vrot.lane.b32.xlu0 %v407, 127
      %v415 = vpop.permute.xlu0 %414
      %416 = vrot.lane.b32.xlu0 %v385, 127
      %v417 = vpop.permute.xlu0 %416
      %418 = vrot.lane.b32.xlu0 %v408, 127
      %v419 = vpop.permute.xlu0 %418
      %420 = vrot.lane.b32.xlu0 %v386, 127
      %v421 = vpop.permute.xlu0 %420
      %422 = vrot.lane.b32.xlu0 %v409, 127
      %v423 = vpop.permute.xlu0 %422
      %424 = vrot.lane.b32.xlu0 %v387, 127
      %v425 = vpop.permute.xlu0 %424
      %vm426 = vcmask 1039360
      %v427 = vsel %vm426, %v411, %v413
      %v428 = vsel %vm426, %v413, %v415
      %v429 = vsel %vm426, %v415, %v417
      %v430 = vsel %vm426, %v417, %v419
      %v431 = vsel %vm426, %v419, %v421
      %v432 = vsel %vm426, %v421, %v423
      %v433 = vsel %vm426, %v423, %v425
      %442 = vrot.lane.b32.xlu0 %v384, 126
      %v443 = vpop.permute.xlu0 %442
      %444 = vrot.lane.b32.xlu0 %v398, 126
      %v445 = vpop.permute.xlu0 %444
      %446 = vrot.lane.b32.xlu0 %v385, 126
      %v447 = vpop.permute.xlu0 %446
      %448 = vrot.lane.b32.xlu0 %v399, 126
      %v449 = vpop.permute.xlu0 %448
      %450 = vrot.lane.b32.xlu0 %v386, 126
      %v451 = vpop.permute.xlu0 %450
      %452 = vrot.lane.b32.xlu0 %v400, 126
      %v453 = vpop.permute.xlu0 %452
      %454 = vrot.lane.b32.xlu0 %v387, 126
      %v455 = vpop.permute.xlu0 %454
      %456 = vrot.lane.b32.xlu0 %v401, 126
      %v457 = vpop.permute.xlu0 %456
      %vm458 = vcmask 1031168
      %v459 = vsel %vm458, %v443, %v445
      %v460 = vsel %vm458, %v445, %v447
      %v461 = vsel %vm458, %v447, %v449
      %v462 = vsel %vm458, %v449, %v451
      %v463 = vsel %vm458, %v451, %v453
      %v464 = vsel %vm458, %v453, %v455
      %v465 = vsel %vm458, %v455, %v457
      %v475 = vcombine.low %v388, %v388
      %476 = vrot.lane.b32.xlu0 %v406, 118
      %v477 = vpop.permute.xlu0 %476
      %478 = vrot.lane.b32.xlu0 %v384, 118
      %v479 = vpop.permute.xlu0 %478
      %480 = vrot.lane.b32.xlu0 %v407, 118
      %v481 = vpop.permute.xlu0 %480
      %482 = vrot.lane.b32.xlu0 %v385, 118
      %v483 = vpop.permute.xlu0 %482
      %484 = vrot.lane.b32.xlu0 %v408, 118
      %v485 = vpop.permute.xlu0 %484
      %486 = vrot.lane.b32.xlu0 %v386, 118
      %v487 = vpop.permute.xlu0 %486
      %488 = vrot.lane.b32.xlu0 %v409, 118
      %v489 = vpop.permute.xlu0 %488
      %490 = vrot.lane.b32.xlu0 %v387, 118
      %v491 = vpop.permute.xlu0 %490
      %492 = vrot.lane.b32.xlu0 %v475, 118
      %v493 = vpop.permute.xlu0 %492
      %vm494 = vcmask 965632
      %v495 = vsel %vm494, %v477, %v479
      %v496 = vsel %vm494, %v479, %v481
      %v497 = vsel %vm494, %v481, %v483
      %v498 = vsel %vm494, %v483, %v485
      %v499 = vsel %vm494, %v485, %v487
      %v500 = vsel %vm494, %v487, %v489
      %v501 = vsel %vm494, %v489, %v491
      %v502 = vsel %vm494, %v491, %v493
      %511 = vrot.lane.b32.xlu0 %v384, 117
      %v512 = vpop.permute.xlu0 %511
      %513 = vrot.lane.b32.xlu0 %v398, 117
      %v514 = vpop.permute.xlu0 %513
      %515 = vrot.lane.b32.xlu0 %v385, 117
      %v516 = vpop.permute.xlu0 %515
      %517 = vrot.lane.b32.xlu0 %v399, 117
      %v518 = vpop.permute.xlu0 %517
      %519 = vrot.lane.b32.xlu0 %v386, 117
      %v520 = vpop.permute.xlu0 %519
      %521 = vrot.lane.b32.xlu0 %v400, 117
      %v522 = vpop.permute.xlu0 %521
      %523 = vrot.lane.b32.xlu0 %v387, 117
      %v524 = vpop.permute.xlu0 %523
      %525 = vrot.lane.b32.xlu0 %v401, 117
      %v526 = vpop.permute.xlu0 %525
      %527 = vrot.lane.b32.xlu0 %v388, 117
      %v528 = vpop.permute.xlu0 %527
      %vm529 = vcmask 957440
      %v530 = vsel %vm529, %v512, %v514
      %v531 = vsel %vm529, %v514, %v516
      %v532 = vsel %vm529, %v516, %v518
      %v533 = vsel %vm529, %v518, %v520
      %v534 = vsel %vm529, %v520, %v522
      %v535 = vsel %vm529, %v522, %v524
      %v536 = vsel %vm529, %v524, %v526
      %v537 = vsel %vm529, %v526, %v528
      %546 = vrot.lane.b32.xlu0 %v406, 116
      %v547 = vpop.permute.xlu0 %546
      %548 = vrot.lane.b32.xlu0 %v384, 116
      %v549 = vpop.permute.xlu0 %548
      %550 = vrot.lane.b32.xlu0 %v407, 116
      %v551 = vpop.permute.xlu0 %550
      %552 = vrot.lane.b32.xlu0 %v385, 116
      %v553 = vpop.permute.xlu0 %552
      %554 = vrot.lane.b32.xlu0 %v408, 116
      %v555 = vpop.permute.xlu0 %554
      %556 = vrot.lane.b32.xlu0 %v386, 116
      %v557 = vpop.permute.xlu0 %556
      %558 = vrot.lane.b32.xlu0 %v409, 116
      %v559 = vpop.permute.xlu0 %558
      %560 = vrot.lane.b32.xlu0 %v387, 116
      %v561 = vpop.permute.xlu0 %560
      %562 = vrot.lane.b32.xlu0 %v475, 116
      %v563 = vpop.permute.xlu0 %562
      %vm564 = vcmask 949248
      %v565 = vsel %vm564, %v547, %v549
      %v566 = vsel %vm564, %v549, %v551
      %v567 = vsel %vm564, %v551, %v553
      %v568 = vsel %vm564, %v553, %v555
      %v569 = vsel %vm564, %v555, %v557
      %v570 = vsel %vm564, %v557, %v559
      %v571 = vsel %vm564, %v559, %v561
      %v572 = vsel %vm564, %v561, %v563
      %581 = vrot.lane.b32.xlu0 %v384, 108
      %v582 = vpop.permute.xlu0 %581
      %583 = vrot.lane.b32.xlu0 %v398, 108
      %v584 = vpop.permute.xlu0 %583
      %585 = vrot.lane.b32.xlu0 %v385, 108
      %v586 = vpop.permute.xlu0 %585
      %587 = vrot.lane.b32.xlu0 %v399, 108
      %v588 = vpop.permute.xlu0 %587
      %589 = vrot.lane.b32.xlu0 %v386, 108
      %v590 = vpop.permute.xlu0 %589
      %591 = vrot.lane.b32.xlu0 %v400, 108
      %v592 = vpop.permute.xlu0 %591
      %593 = vrot.lane.b32.xlu0 %v387, 108
      %v594 = vpop.permute.xlu0 %593
      %595 = vrot.lane.b32.xlu0 %v401, 108
      %v596 = vpop.permute.xlu0 %595
      %597 = vrot.lane.b32.xlu0 %v388, 108
      %v598 = vpop.permute.xlu0 %597
      %vm599 = vcmask 883712
      %v600 = vsel %vm599, %v582, %v584
      %v601 = vsel %vm599, %v584, %v586
      %v602 = vsel %vm599, %v586, %v588
      %v603 = vsel %vm599, %v588, %v590
      %v604 = vsel %vm599, %v590, %v592
      %v605 = vsel %vm599, %v592, %v594
      %v606 = vsel %vm599, %v594, %v596
      %v607 = vsel %vm599, %v596, %v598
      %616 = vrot.lane.b32.xlu0 %v406, 107
      %v617 = vpop.permute.xlu0 %616
      %618 = vrot.lane.b32.xlu0 %v384, 107
      %v619 = vpop.permute.xlu0 %618
      %620 = vrot.lane.b32.xlu0 %v407, 107
      %v621 = vpop.permute.xlu0 %620
      %622 = vrot.lane.b32.xlu0 %v385, 107
      %v623 = vpop.permute.xlu0 %622
      %624 = vrot.lane.b32.xlu0 %v408, 107
      %v625 = vpop.permute.xlu0 %624
      %626 = vrot.lane.b32.xlu0 %v386, 107
      %v627 = vpop.permute.xlu0 %626
      %628 = vrot.lane.b32.xlu0 %v409, 107
      %v629 = vpop.permute.xlu0 %628
      %630 = vrot.lane.b32.xlu0 %v387, 107
      %v631 = vpop.permute.xlu0 %630
      %632 = vrot.lane.b32.xlu0 %v475, 107
      %v633 = vpop.permute.xlu0 %632
      %vm634 = vcmask 875520
      %v635 = vsel %vm634, %v617, %v619
      %v636 = vsel %vm634, %v619, %v621
      %v637 = vsel %vm634, %v621, %v623
      %v638 = vsel %vm634, %v623, %v625
      %v639 = vsel %vm634, %v625, %v627
      %v640 = vsel %vm634, %v627, %v629
      %v641 = vsel %vm634, %v629, %v631
      %v642 = vsel %vm634, %v631, %v633
      %651 = vrot.lane.b32.xlu0 %v384, 106
      %v652 = vpop.permute.xlu0 %651
      %653 = vrot.lane.b32.xlu0 %v398, 106
      %v654 = vpop.permute.xlu0 %653
      %655 = vrot.lane.b32.xlu0 %v385, 106
      %v656 = vpop.permute.xlu0 %655
      %657 = vrot.lane.b32.xlu0 %v399, 106
      %v658 = vpop.permute.xlu0 %657
      %659 = vrot.lane.b32.xlu0 %v386, 106
      %v660 = vpop.permute.xlu0 %659
      %661 = vrot.lane.b32.xlu0 %v400, 106
      %v662 = vpop.permute.xlu0 %661
      %663 = vrot.lane.b32.xlu0 %v387, 106
      %v664 = vpop.permute.xlu0 %663
      %665 = vrot.lane.b32.xlu0 %v401, 106
      %v666 = vpop.permute.xlu0 %665
      %667 = vrot.lane.b32.xlu0 %v388, 106
      %v668 = vpop.permute.xlu0 %667
      %vm669 = vcmask 867328
      %v670 = vsel %vm669, %v652, %v654
      %v671 = vsel %vm669, %v654, %v656
      %v672 = vsel %vm669, %v656, %v658
      %v673 = vsel %vm669, %v658, %v660
      %v674 = vsel %vm669, %v660, %v662
      %v675 = vsel %vm669, %v662, %v664
      %v676 = vsel %vm669, %v664, %v666
      %v677 = vsel %vm669, %v666, %v668
      %686 = vrot.lane.b32.xlu0 %v406, 28
      %v687 = vpop.permute.xlu0 %686
      %688 = vrot.lane.b32.xlu0 %v384, 28
      %v689 = vpop.permute.xlu0 %688
      %690 = vrot.lane.b32.xlu0 %v407, 28
      %v691 = vpop.permute.xlu0 %690
      %692 = vrot.lane.b32.xlu0 %v385, 28
      %v693 = vpop.permute.xlu0 %692
      %694 = vrot.lane.b32.xlu0 %v408, 28
      %v695 = vpop.permute.xlu0 %694
      %696 = vrot.lane.b32.xlu0 %v386, 28
      %v697 = vpop.permute.xlu0 %696
      %698 = vrot.lane.b32.xlu0 %v409, 28
      %v699 = vpop.permute.xlu0 %698
      %700 = vrot.lane.b32.xlu0 %v387, 28
      %v701 = vpop.permute.xlu0 %700
      %702 = vrot.lane.b32.xlu0 %v475, 28
      %v703 = vpop.permute.xlu0 %702
      %vm704 = vcmask 228352
      %v705 = vsel %vm704, %v687, %v689
      %v706 = vsel %vm704, %v689, %v691
      %v707 = vsel %vm704, %v691, %v693
      %v708 = vsel %vm704, %v693, %v695
      %v709 = vsel %vm704, %v695, %v697
      %v710 = vsel %vm704, %v697, %v699
      %v711 = vsel %vm704, %v699, %v701
      %v712 = vsel %vm704, %v701, %v703
      %721 = vrot.lane.b32.xlu0 %v384, 27
      %v722 = vpop.permute.xlu0 %721
      %723 = vrot.lane.b32.xlu0 %v398, 27
      %v724 = vpop.permute.xlu0 %723
      %725 = vrot.lane.b32.xlu0 %v385, 27
      %v726 = vpop.permute.xlu0 %725
      %727 = vrot.lane.b32.xlu0 %v399, 27
      %v728 = vpop.permute.xlu0 %727
      %729 = vrot.lane.b32.xlu0 %v386, 27
      %v730 = vpop.permute.xlu0 %729
      %731 = vrot.lane.b32.xlu0 %v400, 27
      %v732 = vpop.permute.xlu0 %731
      %733 = vrot.lane.b32.xlu0 %v387, 27
      %v734 = vpop.permute.xlu0 %733
      %735 = vrot.lane.b32.xlu0 %v401, 27
      %v736 = vpop.permute.xlu0 %735
      %737 = vrot.lane.b32.xlu0 %v388, 27
      %v738 = vpop.permute.xlu0 %737
      %vm739 = vcmask 220160
      %v740 = vsel %vm739, %v722, %v724
      %v741 = vsel %vm739, %v724, %v726
      %v742 = vsel %vm739, %v726, %v728
      %v743 = vsel %vm739, %v728, %v730
      %v744 = vsel %vm739, %v730, %v732
      %v745 = vsel %vm739, %v732, %v734
      %v746 = vsel %vm739, %v734, %v736
      %v747 = vsel %vm739, %v736, %v738
      %756 = vrot.lane.b32.xlu0 %v406, 26
      %v757 = vpop.permute.xlu0 %756
      %758 = vrot.lane.b32.xlu0 %v384, 26
      %v759 = vpop.permute.xlu0 %758
      %760 = vrot.lane.b32.xlu0 %v407, 26
      %v761 = vpop.permute.xlu0 %760
      %762 = vrot.lane.b32.xlu0 %v385, 26
      %v763 = vpop.permute.xlu0 %762
      %764 = vrot.lane.b32.xlu0 %v408, 26
      %v765 = vpop.permute.xlu0 %764
      %766 = vrot.lane.b32.xlu0 %v386, 26
      %v767 = vpop.permute.xlu0 %766
      %768 = vrot.lane.b32.xlu0 %v409, 26
      %v769 = vpop.permute.xlu0 %768
      %770 = vrot.lane.b32.xlu0 %v387, 26
      %v771 = vpop.permute.xlu0 %770
      %772 = vrot.lane.b32.xlu0 %v475, 26
      %v773 = vpop.permute.xlu0 %772
      %vm774 = vcmask 211968
      %v775 = vsel %vm774, %v757, %v759
      %v776 = vsel %vm774, %v759, %v761
      %v777 = vsel %vm774, %v761, %v763
      %v778 = vsel %vm774, %v763, %v765
      %v779 = vsel %vm774, %v765, %v767
      %v780 = vsel %vm774, %v767, %v769
      %v781 = vsel %vm774, %v769, %v771
      %v782 = vsel %vm774, %v771, %v773
      %791 = vrot.lane.b32.xlu0 %v384, 18
      %v792 = vpop.permute.xlu0 %791
      %793 = vrot.lane.b32.xlu0 %v398, 18
      %v794 = vpop.permute.xlu0 %793
      %795 = vrot.lane.b32.xlu0 %v385, 18
      %v796 = vpop.permute.xlu0 %795
      %797 = vrot.lane.b32.xlu0 %v399, 18
      %v798 = vpop.permute.xlu0 %797
      %799 = vrot.lane.b32.xlu0 %v386, 18
      %v800 = vpop.permute.xlu0 %799
      %801 = vrot.lane.b32.xlu0 %v400, 18
      %v802 = vpop.permute.xlu0 %801
      %803 = vrot.lane.b32.xlu0 %v387, 18
      %v804 = vpop.permute.xlu0 %803
      %805 = vrot.lane.b32.xlu0 %v401, 18
      %v806 = vpop.permute.xlu0 %805
      %807 = vrot.lane.b32.xlu0 %v388, 18
      %v808 = vpop.permute.xlu0 %807
      %vm809 = vcmask 146432
      %v810 = vsel %vm809, %v792, %v794
      %v811 = vsel %vm809, %v794, %v796
      %v812 = vsel %vm809, %v796, %v798
      %v813 = vsel %vm809, %v798, %v800
      %v814 = vsel %vm809, %v800, %v802
      %v815 = vsel %vm809, %v802, %v804
      %v816 = vsel %vm809, %v804, %v806
      %v817 = vsel %vm809, %v806, %v808
      %v830 = vcombine.low %v389, %v389
      %v831 = vcombine.low %v390, %v390
      %v832 = vcombine.low %v391, %v391
      %v833 = vcombine.low %v392, %v392
      %834 = vrot.lane.b32.xlu0 %v830, 17
      %v835 = vpop.permute.xlu0 %834
      %836 = vrot.lane.b32.xlu0 %v389, 17
      %v837 = vpop.permute.xlu0 %836
      %838 = vrot.lane.b32.xlu0 %v831, 17
      %v839 = vpop.permute.xlu0 %838
      %840 = vrot.lane.b32.xlu0 %v390, 17
      %v841 = vpop.permute.xlu0 %840
      %842 = vrot.lane.b32.xlu0 %v832, 17
      %v843 = vpop.permute.xlu0 %842
      %844 = vrot.lane.b32.xlu0 %v391, 17
      %v845 = vpop.permute.xlu0 %844
      %846 = vrot.lane.b32.xlu0 %v833, 17
      %v847 = vpop.permute.xlu0 %846
      %848 = vrot.lane.b32.xlu0 %v392, 17
      %v849 = vpop.permute.xlu0 %848
      %vm850 = vcmask 138240
      %v851 = vsel %vm850, %v835, %v837
      %v852 = vsel %vm850, %v837, %v839
      %v853 = vsel %vm850, %v839, %v841
      %v854 = vsel %vm850, %v841, %v843
      %v855 = vsel %vm850, %v843, %v845
      %v856 = vsel %vm850, %v845, %v847
      %v857 = vsel %vm850, %v847, %v849
      %v866 = vcombine.high %v389, %v389
      %v867 = vcombine.high %v390, %v390
      %v868 = vcombine.high %v391, %v391
      %v869 = vcombine.high %v392, %v392
      %870 = vrot.lane.b32.xlu0 %v389, 16
      %v871 = vpop.permute.xlu0 %870
      %872 = vrot.lane.b32.xlu0 %v866, 16
      %v873 = vpop.permute.xlu0 %872
      %874 = vrot.lane.b32.xlu0 %v390, 16
      %v875 = vpop.permute.xlu0 %874
      %876 = vrot.lane.b32.xlu0 %v867, 16
      %v877 = vpop.permute.xlu0 %876
      %878 = vrot.lane.b32.xlu0 %v391, 16
      %v879 = vpop.permute.xlu0 %878
      %880 = vrot.lane.b32.xlu0 %v868, 16
      %v881 = vpop.permute.xlu0 %880
      %882 = vrot.lane.b32.xlu0 %v392, 16
      %v883 = vpop.permute.xlu0 %882
      %884 = vrot.lane.b32.xlu0 %v869, 16
      %v885 = vpop.permute.xlu0 %884
      %vm886 = vcmask 130048
      %v887 = vsel %vm886, %v871, %v873
      %v888 = vsel %vm886, %v873, %v875
      %v889 = vsel %vm886, %v875, %v877
      %v890 = vsel %vm886, %v877, %v879
      %v891 = vsel %vm886, %v879, %v881
      %v892 = vsel %vm886, %v881, %v883
      %v893 = vsel %vm886, %v883, %v885
      %902 = vrot.lane.b32.xlu0 %v830, 8
      %v903 = vpop.permute.xlu0 %902
      %904 = vrot.lane.b32.xlu0 %v389, 8
      %v905 = vpop.permute.xlu0 %904
      %906 = vrot.lane.b32.xlu0 %v831, 8
      %v907 = vpop.permute.xlu0 %906
      %908 = vrot.lane.b32.xlu0 %v390, 8
      %v909 = vpop.permute.xlu0 %908
      %910 = vrot.lane.b32.xlu0 %v832, 8
      %v911 = vpop.permute.xlu0 %910
      %912 = vrot.lane.b32.xlu0 %v391, 8
      %v913 = vpop.permute.xlu0 %912
      %914 = vrot.lane.b32.xlu0 %v833, 8
      %v915 = vpop.permute.xlu0 %914
      %916 = vrot.lane.b32.xlu0 %v392, 8
      %v917 = vpop.permute.xlu0 %916
      %vm918 = vcmask 64512
      %v919 = vsel %vm918, %v903, %v905
      %v920 = vsel %vm918, %v905, %v907
      %v921 = vsel %vm918, %v907, %v909
      %v922 = vsel %vm918, %v909, %v911
      %v923 = vsel %vm918, %v911, %v913
      %v924 = vsel %vm918, %v913, %v915
      %v925 = vsel %vm918, %v915, %v917
      %vm934 = vcmask 1043456
      %v935 = vsel %vm934, %v384, %v427
      %v936 = vsel %vm934, %v398, %v428
      %v937 = vsel %vm934, %v385, %v429
      %v938 = vsel %vm934, %v399, %v430
      %v939 = vsel %vm934, %v386, %v431
      %v940 = vsel %vm934, %v400, %v432
      %v941 = vsel %vm934, %v387, %v433
      %v942 = vsel %vm934, %v401, %v425
      %v943 = vsel %vm934, %v459, %v495
      %v944 = vsel %vm934, %v460, %v496
      %v945 = vsel %vm934, %v461, %v497
      %v946 = vsel %vm934, %v462, %v498
      %v947 = vsel %vm934, %v463, %v499
      %v948 = vsel %vm934, %v464, %v500
      %v949 = vsel %vm934, %v465, %v501
      %v950 = vsel %vm934, %v457, %v502
      %v951 = vsel %vm934, %v530, %v565
      %v952 = vsel %vm934, %v531, %v566
      %v953 = vsel %vm934, %v532, %v567
      %v954 = vsel %vm934, %v533, %v568
      %v955 = vsel %vm934, %v534, %v569
      %v956 = vsel %vm934, %v535, %v570
      %v957 = vsel %vm934, %v536, %v571
      %v958 = vsel %vm934, %v537, %v572
      %v959 = vsel %vm934, %v600, %v635
      %v960 = vsel %vm934, %v601, %v636
      %v961 = vsel %vm934, %v602, %v637
      %v962 = vsel %vm934, %v603, %v638
      %v963 = vsel %vm934, %v604, %v639
      %v964 = vsel %vm934, %v605, %v640
      %v965 = vsel %vm934, %v606, %v641
      %v966 = vsel %vm934, %v607, %v642
      %v967 = vsel %vm934, %v670, %v705
      %v968 = vsel %vm934, %v671, %v706
      %v969 = vsel %vm934, %v672, %v707
      %v970 = vsel %vm934, %v673, %v708
      %v971 = vsel %vm934, %v674, %v709
      %v972 = vsel %vm934, %v675, %v710
      %v973 = vsel %vm934, %v676, %v711
      %v974 = vsel %vm934, %v677, %v712
      %v975 = vsel %vm934, %v740, %v775
      %v976 = vsel %vm934, %v741, %v776
      %v977 = vsel %vm934, %v742, %v777
      %v978 = vsel %vm934, %v743, %v778
      %v979 = vsel %vm934, %v744, %v779
      %v980 = vsel %vm934, %v745, %v780
      %v981 = vsel %vm934, %v746, %v781
      %v982 = vsel %vm934, %v747, %v782
      %v983 = vsel %vm934, %v810, %v835
      %v984 = vsel %vm934, %v811, %v851
      %v985 = vsel %vm934, %v812, %v852
      %v986 = vsel %vm934, %v813, %v853
      %v987 = vsel %vm934, %v814, %v854
      %v988 = vsel %vm934, %v815, %v855
      %v989 = vsel %vm934, %v816, %v856
      %v990 = vsel %vm934, %v817, %v857
      %v991 = vsel %vm934, %v871, %v903
      %v992 = vsel %vm934, %v887, %v919
      %v993 = vsel %vm934, %v888, %v920
      %v994 = vsel %vm934, %v889, %v921
      %v995 = vsel %vm934, %v890, %v922
      %v996 = vsel %vm934, %v891, %v923
      %v997 = vsel %vm934, %v892, %v924
      %v998 = vsel %vm934, %v893, %v925
      %1003 = vrot.lane.b32.xlu0 %v830, 127
      %v1004 = vpop.permute.xlu0 %1003
      %1005 = vrot.lane.b32.xlu0 %v389, 127
      %v1006 = vpop.permute.xlu0 %1005
      %1007 = vrot.lane.b32.xlu0 %v831, 127
      %v1008 = vpop.permute.xlu0 %1007
      %1009 = vrot.lane.b32.xlu0 %v390, 127
      %v1010 = vpop.permute.xlu0 %1009
      %1011 = vrot.lane.b32.xlu0 %v832, 127
      %v1012 = vpop.permute.xlu0 %1011
      %1013 = vrot.lane.b32.xlu0 %v391, 127
      %v1014 = vpop.permute.xlu0 %1013
      %1015 = vrot.lane.b32.xlu0 %v833, 127
      %v1016 = vpop.permute.xlu0 %1015
      %1017 = vrot.lane.b32.xlu0 %v392, 127
      %v1018 = vpop.permute.xlu0 %1017
      %v1019 = vsel %vm426, %v1004, %v1006
      %v1020 = vsel %vm426, %v1006, %v1008
      %v1021 = vsel %vm426, %v1008, %v1010
      %v1022 = vsel %vm426, %v1010, %v1012
      %v1023 = vsel %vm426, %v1012, %v1014
      %v1024 = vsel %vm426, %v1014, %v1016
      %v1025 = vsel %vm426, %v1016, %v1018
      %1035 = vrot.lane.b32.xlu0 %v389, 49
      %v1036 = vpop.permute.xlu0 %1035
      %1037 = vrot.lane.b32.xlu0 %v866, 49
      %v1038 = vpop.permute.xlu0 %1037
      %1039 = vrot.lane.b32.xlu0 %v390, 49
      %v1040 = vpop.permute.xlu0 %1039
      %1041 = vrot.lane.b32.xlu0 %v867, 49
      %v1042 = vpop.permute.xlu0 %1041
      %1043 = vrot.lane.b32.xlu0 %v391, 49
      %v1044 = vpop.permute.xlu0 %1043
      %1045 = vrot.lane.b32.xlu0 %v868, 49
      %v1046 = vpop.permute.xlu0 %1045
      %1047 = vrot.lane.b32.xlu0 %v392, 49
      %v1048 = vpop.permute.xlu0 %1047
      %1049 = vrot.lane.b32.xlu0 %v869, 49
      %v1050 = vpop.permute.xlu0 %1049
      %1051 = vrot.lane.b32.xlu0 %v393, 49
      %v1052 = vpop.permute.xlu0 %1051
      %vm1053 = vcmask 400384
      %v1054 = vsel %vm1053, %v1036, %v1038
      %v1055 = vsel %vm1053, %v1038, %v1040
      %v1056 = vsel %vm1053, %v1040, %v1042
      %v1057 = vsel %vm1053, %v1042, %v1044
      %v1058 = vsel %vm1053, %v1044, %v1046
      %v1059 = vsel %vm1053, %v1046, %v1048
      %v1060 = vsel %vm1053, %v1048, %v1050
      %v1061 = vsel %vm1053, %v1050, %v1052
      %v1070 = vcombine.low %v393, %v393
      %1071 = vrot.lane.b32.xlu0 %v830, 48
      %v1072 = vpop.permute.xlu0 %1071
      %1073 = vrot.lane.b32.xlu0 %v389, 48
      %v1074 = vpop.permute.xlu0 %1073
      %1075 = vrot.lane.b32.xlu0 %v831, 48
      %v1076 = vpop.permute.xlu0 %1075
      %1077 = vrot.lane.b32.xlu0 %v390, 48
      %v1078 = vpop.permute.xlu0 %1077
      %1079 = vrot.lane.b32.xlu0 %v832, 48
      %v1080 = vpop.permute.xlu0 %1079
      %1081 = vrot.lane.b32.xlu0 %v391, 48
      %v1082 = vpop.permute.xlu0 %1081
      %1083 = vrot.lane.b32.xlu0 %v833, 48
      %v1084 = vpop.permute.xlu0 %1083
      %1085 = vrot.lane.b32.xlu0 %v392, 48
      %v1086 = vpop.permute.xlu0 %1085
      %1087 = vrot.lane.b32.xlu0 %v1070, 48
      %v1088 = vpop.permute.xlu0 %1087
      %vm1089 = vcmask 392192
      %v1090 = vsel %vm1089, %v1072, %v1074
      %v1091 = vsel %vm1089, %v1074, %v1076
      %v1092 = vsel %vm1089, %v1076, %v1078
      %v1093 = vsel %vm1089, %v1078, %v1080
      %v1094 = vsel %vm1089, %v1080, %v1082
      %v1095 = vsel %vm1089, %v1082, %v1084
      %v1096 = vsel %vm1089, %v1084, %v1086
      %v1097 = vsel %vm1089, %v1086, %v1088
      %1106 = vrot.lane.b32.xlu0 %v389, 47
      %v1107 = vpop.permute.xlu0 %1106
      %1108 = vrot.lane.b32.xlu0 %v866, 47
      %v1109 = vpop.permute.xlu0 %1108
      %1110 = vrot.lane.b32.xlu0 %v390, 47
      %v1111 = vpop.permute.xlu0 %1110
      %1112 = vrot.lane.b32.xlu0 %v867, 47
      %v1113 = vpop.permute.xlu0 %1112
      %1114 = vrot.lane.b32.xlu0 %v391, 47
      %v1115 = vpop.permute.xlu0 %1114
      %1116 = vrot.lane.b32.xlu0 %v868, 47
      %v1117 = vpop.permute.xlu0 %1116
      %1118 = vrot.lane.b32.xlu0 %v392, 47
      %v1119 = vpop.permute.xlu0 %1118
      %1120 = vrot.lane.b32.xlu0 %v869, 47
      %v1121 = vpop.permute.xlu0 %1120
      %1122 = vrot.lane.b32.xlu0 %v393, 47
      %v1123 = vpop.permute.xlu0 %1122
      %vm1124 = vcmask 384000
      %v1125 = vsel %vm1124, %v1107, %v1109
      %v1126 = vsel %vm1124, %v1109, %v1111
      %v1127 = vsel %vm1124, %v1111, %v1113
      %v1128 = vsel %vm1124, %v1113, %v1115
      %v1129 = vsel %vm1124, %v1115, %v1117
      %v1130 = vsel %vm1124, %v1117, %v1119
      %v1131 = vsel %vm1124, %v1119, %v1121
      %v1132 = vsel %vm1124, %v1121, %v1123
      %1141 = vrot.lane.b32.xlu0 %v830, 39
      %v1142 = vpop.permute.xlu0 %1141
      %1143 = vrot.lane.b32.xlu0 %v389, 39
      %v1144 = vpop.permute.xlu0 %1143
      %1145 = vrot.lane.b32.xlu0 %v831, 39
      %v1146 = vpop.permute.xlu0 %1145
      %1147 = vrot.lane.b32.xlu0 %v390, 39
      %v1148 = vpop.permute.xlu0 %1147
      %1149 = vrot.lane.b32.xlu0 %v832, 39
      %v1150 = vpop.permute.xlu0 %1149
      %1151 = vrot.lane.b32.xlu0 %v391, 39
      %v1152 = vpop.permute.xlu0 %1151
      %1153 = vrot.lane.b32.xlu0 %v833, 39
      %v1154 = vpop.permute.xlu0 %1153
      %1155 = vrot.lane.b32.xlu0 %v392, 39
      %v1156 = vpop.permute.xlu0 %1155
      %1157 = vrot.lane.b32.xlu0 %v1070, 39
      %v1158 = vpop.permute.xlu0 %1157
      %vm1159 = vcmask 318464
      %v1160 = vsel %vm1159, %v1142, %v1144
      %v1161 = vsel %vm1159, %v1144, %v1146
      %v1162 = vsel %vm1159, %v1146, %v1148
      %v1163 = vsel %vm1159, %v1148, %v1150
      %v1164 = vsel %vm1159, %v1150, %v1152
      %v1165 = vsel %vm1159, %v1152, %v1154
      %v1166 = vsel %vm1159, %v1154, %v1156
      %v1167 = vsel %vm1159, %v1156, %v1158
      %1176 = vrot.lane.b32.xlu0 %v389, 38
      %v1177 = vpop.permute.xlu0 %1176
      %1178 = vrot.lane.b32.xlu0 %v866, 38
      %v1179 = vpop.permute.xlu0 %1178
      %1180 = vrot.lane.b32.xlu0 %v390, 38
      %v1181 = vpop.permute.xlu0 %1180
      %1182 = vrot.lane.b32.xlu0 %v867, 38
      %v1183 = vpop.permute.xlu0 %1182
      %1184 = vrot.lane.b32.xlu0 %v391, 38
      %v1185 = vpop.permute.xlu0 %1184
      %1186 = vrot.lane.b32.xlu0 %v868, 38
      %v1187 = vpop.permute.xlu0 %1186
      %1188 = vrot.lane.b32.xlu0 %v392, 38
      %v1189 = vpop.permute.xlu0 %1188
      %1190 = vrot.lane.b32.xlu0 %v869, 38
      %v1191 = vpop.permute.xlu0 %1190
      %1192 = vrot.lane.b32.xlu0 %v393, 38
      %v1193 = vpop.permute.xlu0 %1192
      %vm1194 = vcmask 310272
      %v1195 = vsel %vm1194, %v1177, %v1179
      %v1196 = vsel %vm1194, %v1179, %v1181
      %v1197 = vsel %vm1194, %v1181, %v1183
      %v1198 = vsel %vm1194, %v1183, %v1185
      %v1199 = vsel %vm1194, %v1185, %v1187
      %v1200 = vsel %vm1194, %v1187, %v1189
      %v1201 = vsel %vm1194, %v1189, %v1191
      %v1202 = vsel %vm1194, %v1191, %v1193
      %1211 = vrot.lane.b32.xlu0 %v830, 37
      %v1212 = vpop.permute.xlu0 %1211
      %1213 = vrot.lane.b32.xlu0 %v389, 37
      %v1214 = vpop.permute.xlu0 %1213
      %1215 = vrot.lane.b32.xlu0 %v831, 37
      %v1216 = vpop.permute.xlu0 %1215
      %1217 = vrot.lane.b32.xlu0 %v390, 37
      %v1218 = vpop.permute.xlu0 %1217
      %1219 = vrot.lane.b32.xlu0 %v832, 37
      %v1220 = vpop.permute.xlu0 %1219
      %1221 = vrot.lane.b32.xlu0 %v391, 37
      %v1222 = vpop.permute.xlu0 %1221
      %1223 = vrot.lane.b32.xlu0 %v833, 37
      %v1224 = vpop.permute.xlu0 %1223
      %1225 = vrot.lane.b32.xlu0 %v392, 37
      %v1226 = vpop.permute.xlu0 %1225
      %1227 = vrot.lane.b32.xlu0 %v1070, 37
      %v1228 = vpop.permute.xlu0 %1227
      %vm1229 = vcmask 302080
      %v1230 = vsel %vm1229, %v1212, %v1214
      %v1231 = vsel %vm1229, %v1214, %v1216
      %v1232 = vsel %vm1229, %v1216, %v1218
      %v1233 = vsel %vm1229, %v1218, %v1220
      %v1234 = vsel %vm1229, %v1220, %v1222
      %v1235 = vsel %vm1229, %v1222, %v1224
      %v1236 = vsel %vm1229, %v1224, %v1226
      %v1237 = vsel %vm1229, %v1226, %v1228
      %1246 = vrot.lane.b32.xlu0 %v389, 29
      %v1247 = vpop.permute.xlu0 %1246
      %1248 = vrot.lane.b32.xlu0 %v866, 29
      %v1249 = vpop.permute.xlu0 %1248
      %1250 = vrot.lane.b32.xlu0 %v390, 29
      %v1251 = vpop.permute.xlu0 %1250
      %1252 = vrot.lane.b32.xlu0 %v867, 29
      %v1253 = vpop.permute.xlu0 %1252
      %1254 = vrot.lane.b32.xlu0 %v391, 29
      %v1255 = vpop.permute.xlu0 %1254
      %1256 = vrot.lane.b32.xlu0 %v868, 29
      %v1257 = vpop.permute.xlu0 %1256
      %1258 = vrot.lane.b32.xlu0 %v392, 29
      %v1259 = vpop.permute.xlu0 %1258
      %1260 = vrot.lane.b32.xlu0 %v869, 29
      %v1261 = vpop.permute.xlu0 %1260
      %1262 = vrot.lane.b32.xlu0 %v393, 29
      %v1263 = vpop.permute.xlu0 %1262
      %vm1264 = vcmask 236544
      %v1265 = vsel %vm1264, %v1247, %v1249
      %v1266 = vsel %vm1264, %v1249, %v1251
      %v1267 = vsel %vm1264, %v1251, %v1253
      %v1268 = vsel %vm1264, %v1253, %v1255
      %v1269 = vsel %vm1264, %v1255, %v1257
      %v1270 = vsel %vm1264, %v1257, %v1259
      %v1271 = vsel %vm1264, %v1259, %v1261
      %v1272 = vsel %vm1264, %v1261, %v1263
      %1281 = vrot.lane.b32.xlu0 %v830, 28
      %v1282 = vpop.permute.xlu0 %1281
      %1283 = vrot.lane.b32.xlu0 %v389, 28
      %v1284 = vpop.permute.xlu0 %1283
      %1285 = vrot.lane.b32.xlu0 %v831, 28
      %v1286 = vpop.permute.xlu0 %1285
      %1287 = vrot.lane.b32.xlu0 %v390, 28
      %v1288 = vpop.permute.xlu0 %1287
      %1289 = vrot.lane.b32.xlu0 %v832, 28
      %v1290 = vpop.permute.xlu0 %1289
      %1291 = vrot.lane.b32.xlu0 %v391, 28
      %v1292 = vpop.permute.xlu0 %1291
      %1293 = vrot.lane.b32.xlu0 %v833, 28
      %v1294 = vpop.permute.xlu0 %1293
      %1295 = vrot.lane.b32.xlu0 %v392, 28
      %v1296 = vpop.permute.xlu0 %1295
      %1297 = vrot.lane.b32.xlu0 %v1070, 28
      %v1298 = vpop.permute.xlu0 %1297
      %v1299 = vsel %vm704, %v1282, %v1284
      %v1300 = vsel %vm704, %v1284, %v1286
      %v1301 = vsel %vm704, %v1286, %v1288
      %v1302 = vsel %vm704, %v1288, %v1290
      %v1303 = vsel %vm704, %v1290, %v1292
      %v1304 = vsel %vm704, %v1292, %v1294
      %v1305 = vsel %vm704, %v1294, %v1296
      %v1306 = vsel %vm704, %v1296, %v1298
      %1315 = vrot.lane.b32.xlu0 %v389, 27
      %v1316 = vpop.permute.xlu0 %1315
      %1317 = vrot.lane.b32.xlu0 %v866, 27
      %v1318 = vpop.permute.xlu0 %1317
      %1319 = vrot.lane.b32.xlu0 %v390, 27
      %v1320 = vpop.permute.xlu0 %1319
      %1321 = vrot.lane.b32.xlu0 %v867, 27
      %v1322 = vpop.permute.xlu0 %1321
      %1323 = vrot.lane.b32.xlu0 %v391, 27
      %v1324 = vpop.permute.xlu0 %1323
      %1325 = vrot.lane.b32.xlu0 %v868, 27
      %v1326 = vpop.permute.xlu0 %1325
      %1327 = vrot.lane.b32.xlu0 %v392, 27
      %v1328 = vpop.permute.xlu0 %1327
      %1329 = vrot.lane.b32.xlu0 %v869, 27
      %v1330 = vpop.permute.xlu0 %1329
      %1331 = vrot.lane.b32.xlu0 %v393, 27
      %v1332 = vpop.permute.xlu0 %1331
      %v1333 = vsel %vm739, %v1316, %v1318
      %v1334 = vsel %vm739, %v1318, %v1320
      %v1335 = vsel %vm739, %v1320, %v1322
      %v1336 = vsel %vm739, %v1322, %v1324
      %v1337 = vsel %vm739, %v1324, %v1326
      %v1338 = vsel %vm739, %v1326, %v1328
      %v1339 = vsel %vm739, %v1328, %v1330
      %v1340 = vsel %vm739, %v1330, %v1332
      %v1341 = vsel %vm934, %v389, %v1019
      %v1342 = vsel %vm934, %v866, %v1020
      %v1343 = vsel %vm934, %v390, %v1021
      %v1344 = vsel %vm934, %v867, %v1022
      %v1345 = vsel %vm934, %v391, %v1023
      %v1346 = vsel %vm934, %v868, %v1024
      %v1347 = vsel %vm934, %v392, %v1025
      %v1348 = vsel %vm934, %v869, %v1018
      %v1349 = vsel %vm934, %v1054, %v1090
      %v1350 = vsel %vm934, %v1055, %v1091
      %v1351 = vsel %vm934, %v1056, %v1092
      %v1352 = vsel %vm934, %v1057, %v1093
      %v1353 = vsel %vm934, %v1058, %v1094
      %v1354 = vsel %vm934, %v1059, %v1095
      %v1355 = vsel %vm934, %v1060, %v1096
      %v1356 = vsel %vm934, %v1061, %v1097
      %v1357 = vsel %vm934, %v1125, %v1160
      %v1358 = vsel %vm934, %v1126, %v1161
      %v1359 = vsel %vm934, %v1127, %v1162
      %v1360 = vsel %vm934, %v1128, %v1163
      %v1361 = vsel %vm934, %v1129, %v1164
      %v1362 = vsel %vm934, %v1130, %v1165
      %v1363 = vsel %vm934, %v1131, %v1166
      %v1364 = vsel %vm934, %v1132, %v1167
      %v1365 = vsel %vm934, %v1195, %v1230
      %v1366 = vsel %vm934, %v1196, %v1231
      %v1367 = vsel %vm934, %v1197, %v1232
      %v1368 = vsel %vm934, %v1198, %v1233
      %v1369 = vsel %vm934, %v1199, %v1234
      %v1370 = vsel %vm934, %v1200, %v1235
      %v1371 = vsel %vm934, %v1201, %v1236
      %v1372 = vsel %vm934, %v1202, %v1237
      %v1373 = vsel %vm934, %v1265, %v1299
      %v1374 = vsel %vm934, %v1266, %v1300
      %v1375 = vsel %vm934, %v1267, %v1301
      %v1376 = vsel %vm934, %v1268, %v1302
      %v1377 = vsel %vm934, %v1269, %v1303
      %v1378 = vsel %vm934, %v1270, %v1304
      %v1379 = vsel %vm934, %v1271, %v1305
      %v1380 = vsel %vm934, %v1272, %v1306
      %1421 = vrot.lane.b32.xlu0 %v1341, 7
      %v1422 = vpop.permute.xlu0 %1421
      %1423 = vrot.lane.b32.xlu0 %v1342, 7
      %v1424 = vpop.permute.xlu0 %1423
      %1425 = vrot.lane.b32.xlu0 %v1343, 7
      %v1426 = vpop.permute.xlu0 %1425
      %1427 = vrot.lane.b32.xlu0 %v1344, 7
      %v1428 = vpop.permute.xlu0 %1427
      %1429 = vrot.lane.b32.xlu0 %v1345, 7
      %v1430 = vpop.permute.xlu0 %1429
      %1431 = vrot.lane.b32.xlu0 %v1346, 7
      %v1432 = vpop.permute.xlu0 %1431
      %1433 = vrot.lane.b32.xlu0 %v1347, 7
      %v1434 = vpop.permute.xlu0 %1433
      %1435 = vrot.lane.b32.xlu0 %v1348, 7
      %v1436 = vpop.permute.xlu0 %1435
      %1437 = vrot.lane.b32.xlu0 %v1349, 7
      %v1438 = vpop.permute.xlu0 %1437
      %1439 = vrot.lane.b32.xlu0 %v1350, 7
      %v1440 = vpop.permute.xlu0 %1439
      %1441 = vrot.lane.b32.xlu0 %v1351, 7
      %v1442 = vpop.permute.xlu0 %1441
      %1443 = vrot.lane.b32.xlu0 %v1352, 7
      %v1444 = vpop.permute.xlu0 %1443
      %1445 = vrot.lane.b32.xlu0 %v1353, 7
      %v1446 = vpop.permute.xlu0 %1445
      %1447 = vrot.lane.b32.xlu0 %v1354, 7
      %v1448 = vpop.permute.xlu0 %1447
      %1449 = vrot.lane.b32.xlu0 %v1355, 7
      %v1450 = vpop.permute.xlu0 %1449
      %1451 = vrot.lane.b32.xlu0 %v1356, 7
      %v1452 = vpop.permute.xlu0 %1451
      %1453 = vrot.lane.b32.xlu0 %v1357, 7
      %v1454 = vpop.permute.xlu0 %1453
      %1455 = vrot.lane.b32.xlu0 %v1358, 7
      %v1456 = vpop.permute.xlu0 %1455
      %1457 = vrot.lane.b32.xlu0 %v1359, 7
      %v1458 = vpop.permute.xlu0 %1457
      %1459 = vrot.lane.b32.xlu0 %v1360, 7
      %v1460 = vpop.permute.xlu0 %1459
      %1461 = vrot.lane.b32.xlu0 %v1361, 7
      %v1462 = vpop.permute.xlu0 %1461
      %1463 = vrot.lane.b32.xlu0 %v1362, 7
      %v1464 = vpop.permute.xlu0 %1463
      %1465 = vrot.lane.b32.xlu0 %v1363, 7
      %v1466 = vpop.permute.xlu0 %1465
      %1467 = vrot.lane.b32.xlu0 %v1364, 7
      %v1468 = vpop.permute.xlu0 %1467
      %1469 = vrot.lane.b32.xlu0 %v1365, 7
      %v1470 = vpop.permute.xlu0 %1469
      %1471 = vrot.lane.b32.xlu0 %v1366, 7
      %v1472 = vpop.permute.xlu0 %1471
      %1473 = vrot.lane.b32.xlu0 %v1367, 7
      %v1474 = vpop.permute.xlu0 %1473
      %1475 = vrot.lane.b32.xlu0 %v1368, 7
      %v1476 = vpop.permute.xlu0 %1475
      %1477 = vrot.lane.b32.xlu0 %v1369, 7
      %v1478 = vpop.permute.xlu0 %1477
      %1479 = vrot.lane.b32.xlu0 %v1370, 7
      %v1480 = vpop.permute.xlu0 %1479
      %1481 = vrot.lane.b32.xlu0 %v1371, 7
      %v1482 = vpop.permute.xlu0 %1481
      %1483 = vrot.lane.b32.xlu0 %v1372, 7
      %v1484 = vpop.permute.xlu0 %1483
      %1485 = vrot.lane.b32.xlu0 %v1373, 7
      %v1486 = vpop.permute.xlu0 %1485
      %1487 = vrot.lane.b32.xlu0 %v1374, 7
      %v1488 = vpop.permute.xlu0 %1487
      %1489 = vrot.lane.b32.xlu0 %v1375, 7
      %v1490 = vpop.permute.xlu0 %1489
      %1491 = vrot.lane.b32.xlu0 %v1376, 7
      %v1492 = vpop.permute.xlu0 %1491
      %1493 = vrot.lane.b32.xlu0 %v1377, 7
      %v1494 = vpop.permute.xlu0 %1493
      %1495 = vrot.lane.b32.xlu0 %v1378, 7
      %v1496 = vpop.permute.xlu0 %1495
      %1497 = vrot.lane.b32.xlu0 %v1379, 7
      %v1498 = vpop.permute.xlu0 %1497
      %1499 = vrot.lane.b32.xlu0 %v1380, 7
      %v1500 = vpop.permute.xlu0 %1499
      %1501 = vrot.lane.b32.xlu0 %v1333, 7
      %v1502 = vpop.permute.xlu0 %1501
      %1503 = vrot.lane.b32.xlu0 %v1334, 7
      %v1504 = vpop.permute.xlu0 %1503
      %1505 = vrot.lane.b32.xlu0 %v1335, 7
      %v1506 = vpop.permute.xlu0 %1505
      %1507 = vrot.lane.b32.xlu0 %v1336, 7
      %v1508 = vpop.permute.xlu0 %1507
      %1509 = vrot.lane.b32.xlu0 %v1337, 7
      %v1510 = vpop.permute.xlu0 %1509
      %1511 = vrot.lane.b32.xlu0 %v1338, 7
      %v1512 = vpop.permute.xlu0 %1511
      %1513 = vrot.lane.b32.xlu0 %v1339, 7
      %v1514 = vpop.permute.xlu0 %1513
      %1515 = vrot.lane.b32.xlu0 %v1340, 7
      %v1516 = vpop.permute.xlu0 %1515
      %vm1517 = vcmask 56320
      %v1518 = vsel %vm1517, %v1422, %v1424
      %v1519 = vsel %vm1517, %v1424, %v1426
      %v1520 = vsel %vm1517, %v1426, %v1428
      %v1521 = vsel %vm1517, %v1428, %v1430
      %v1522 = vsel %vm1517, %v1430, %v1432
      %v1523 = vsel %vm1517, %v1432, %v1434
      %v1524 = vsel %vm1517, %v1434, %v1436
      %v1525 = vsel %vm1517, %v1438, %v1440
      %v1526 = vsel %vm1517, %v1440, %v1442
      %v1527 = vsel %vm1517, %v1442, %v1444
      %v1528 = vsel %vm1517, %v1444, %v1446
      %v1529 = vsel %vm1517, %v1446, %v1448
      %v1530 = vsel %vm1517, %v1448, %v1450
      %v1531 = vsel %vm1517, %v1450, %v1452
      %v1532 = vsel %vm1517, %v1454, %v1456
      %v1533 = vsel %vm1517, %v1456, %v1458
      %v1534 = vsel %vm1517, %v1458, %v1460
      %v1535 = vsel %vm1517, %v1460, %v1462
      %v1536 = vsel %vm1517, %v1462, %v1464
      %v1537 = vsel %vm1517, %v1464, %v1466
      %v1538 = vsel %vm1517, %v1466, %v1468
      %v1539 = vsel %vm1517, %v1470, %v1472
      %v1540 = vsel %vm1517, %v1472, %v1474
      %v1541 = vsel %vm1517, %v1474, %v1476
      %v1542 = vsel %vm1517, %v1476, %v1478
      %v1543 = vsel %vm1517, %v1478, %v1480
      %v1544 = vsel %vm1517, %v1480, %v1482
      %v1545 = vsel %vm1517, %v1482, %v1484
      %v1546 = vsel %vm1517, %v1486, %v1488
      %v1547 = vsel %vm1517, %v1488, %v1490
      %v1548 = vsel %vm1517, %v1490, %v1492
      %v1549 = vsel %vm1517, %v1492, %v1494
      %v1550 = vsel %vm1517, %v1494, %v1496
      %v1551 = vsel %vm1517, %v1496, %v1498
      %v1552 = vsel %vm1517, %v1498, %v1500
      %v1553 = vsel %vm1517, %v1502, %v1504
      %v1554 = vsel %vm1517, %v1504, %v1506
      %v1555 = vsel %vm1517, %v1506, %v1508
      %v1556 = vsel %vm1517, %v1508, %v1510
      %v1557 = vsel %vm1517, %v1510, %v1512
      %v1558 = vsel %vm1517, %v1512, %v1514
      %v1559 = vsel %vm1517, %v1514, %v1516
      %v1560 = vld [vmem:[%s2] sm:$0xf]
      %v1561 = vld [vmem:[%s3] sm:$0xf]
      %1563 = vset.pattern.permute.xlu0 0
      %1564 = vperm.xlu0 %1563, %v1561
      %v1565 = vpop.permute.xlu0 %1564
      %1631 = vrot.lane.b32.xlu0 %v935, 111
      %v1632 = vpop.permute.xlu0 %1631
      %1633 = vrot.lane.b32.xlu0 %v936, 111
      %v1634 = vpop.permute.xlu0 %1633
      %1635 = vrot.lane.b32.xlu0 %v937, 111
      %v1636 = vpop.permute.xlu0 %1635
      %1637 = vrot.lane.b32.xlu0 %v938, 111
      %v1638 = vpop.permute.xlu0 %1637
      %1639 = vrot.lane.b32.xlu0 %v939, 111
      %v1640 = vpop.permute.xlu0 %1639
      %1641 = vrot.lane.b32.xlu0 %v940, 111
      %v1642 = vpop.permute.xlu0 %1641
      %1643 = vrot.lane.b32.xlu0 %v941, 111
      %v1644 = vpop.permute.xlu0 %1643
      %1645 = vrot.lane.b32.xlu0 %v942, 111
      %v1646 = vpop.permute.xlu0 %1645
      %1647 = vrot.lane.b32.xlu0 %v943, 111
      %v1648 = vpop.permute.xlu0 %1647
      %1649 = vrot.lane.b32.xlu0 %v944, 111
      %v1650 = vpop.permute.xlu0 %1649
      %1651 = vrot.lane.b32.xlu0 %v945, 111
      %v1652 = vpop.permute.xlu0 %1651
      %1653 = vrot.lane.b32.xlu0 %v946, 111
      %v1654 = vpop.permute.xlu0 %1653
      %1655 = vrot.lane.b32.xlu0 %v947, 111
      %v1656 = vpop.permute.xlu0 %1655
      %1657 = vrot.lane.b32.xlu0 %v948, 111
      %v1658 = vpop.permute.xlu0 %1657
      %1659 = vrot.lane.b32.xlu0 %v949, 111
      %v1660 = vpop.permute.xlu0 %1659
      %1661 = vrot.lane.b32.xlu0 %v950, 111
      %v1662 = vpop.permute.xlu0 %1661
      %1663 = vrot.lane.b32.xlu0 %v951, 111
      %v1664 = vpop.permute.xlu0 %1663
      %1665 = vrot.lane.b32.xlu0 %v952, 111
      %v1666 = vpop.permute.xlu0 %1665
      %1667 = vrot.lane.b32.xlu0 %v953, 111
      %v1668 = vpop.permute.xlu0 %1667
      %1669 = vrot.lane.b32.xlu0 %v954, 111
      %v1670 = vpop.permute.xlu0 %1669
      %1671 = vrot.lane.b32.xlu0 %v955, 111
      %v1672 = vpop.permute.xlu0 %1671
      %1673 = vrot.lane.b32.xlu0 %v956, 111
      %v1674 = vpop.permute.xlu0 %1673
      %1675 = vrot.lane.b32.xlu0 %v957, 111
      %v1676 = vpop.permute.xlu0 %1675
      %1677 = vrot.lane.b32.xlu0 %v958, 111
      %v1678 = vpop.permute.xlu0 %1677
      %1679 = vrot.lane.b32.xlu0 %v959, 111
      %v1680 = vpop.permute.xlu0 %1679
      %1681 = vrot.lane.b32.xlu0 %v960, 111
      %v1682 = vpop.permute.xlu0 %1681
      %1683 = vrot.lane.b32.xlu0 %v961, 111
      %v1684 = vpop.permute.xlu0 %1683
      %1685 = vrot.lane.b32.xlu0 %v962, 111
      %v1686 = vpop.permute.xlu0 %1685
      %1687 = vrot.lane.b32.xlu0 %v963, 111
      %v1688 = vpop.permute.xlu0 %1687
      %1689 = vrot.lane.b32.xlu0 %v964, 111
      %v1690 = vpop.permute.xlu0 %1689
      %1691 = vrot.lane.b32.xlu0 %v965, 111
      %v1692 = vpop.permute.xlu0 %1691
      %1693 = vrot.lane.b32.xlu0 %v966, 111
      %v1694 = vpop.permute.xlu0 %1693
      %1695 = vrot.lane.b32.xlu0 %v967, 111
      %v1696 = vpop.permute.xlu0 %1695
      %1697 = vrot.lane.b32.xlu0 %v968, 111
      %v1698 = vpop.permute.xlu0 %1697
      %1699 = vrot.lane.b32.xlu0 %v969, 111
      %v1700 = vpop.permute.xlu0 %1699
      %1701 = vrot.lane.b32.xlu0 %v970, 111
      %v1702 = vpop.permute.xlu0 %1701
      %1703 = vrot.lane.b32.xlu0 %v971, 111
      %v1704 = vpop.permute.xlu0 %1703
      %1705 = vrot.lane.b32.xlu0 %v972, 111
      %v1706 = vpop.permute.xlu0 %1705
      %1707 = vrot.lane.b32.xlu0 %v973, 111
      %v1708 = vpop.permute.xlu0 %1707
      %1709 = vrot.lane.b32.xlu0 %v974, 111
      %v1710 = vpop.permute.xlu0 %1709
      %1711 = vrot.lane.b32.xlu0 %v975, 111
      %v1712 = vpop.permute.xlu0 %1711
      %1713 = vrot.lane.b32.xlu0 %v976, 111
      %v1714 = vpop.permute.xlu0 %1713
      %1715 = vrot.lane.b32.xlu0 %v977, 111
      %v1716 = vpop.permute.xlu0 %1715
      %1717 = vrot.lane.b32.xlu0 %v978, 111
      %v1718 = vpop.permute.xlu0 %1717
      %1719 = vrot.lane.b32.xlu0 %v979, 111
      %v1720 = vpop.permute.xlu0 %1719
      %1721 = vrot.lane.b32.xlu0 %v980, 111
      %v1722 = vpop.permute.xlu0 %1721
      %1723 = vrot.lane.b32.xlu0 %v981, 111
      %v1724 = vpop.permute.xlu0 %1723
      %1725 = vrot.lane.b32.xlu0 %v982, 111
      %v1726 = vpop.permute.xlu0 %1725
      %1727 = vrot.lane.b32.xlu0 %v983, 111
      %v1728 = vpop.permute.xlu0 %1727
      %1729 = vrot.lane.b32.xlu0 %v984, 111
      %v1730 = vpop.permute.xlu0 %1729
      %1731 = vrot.lane.b32.xlu0 %v985, 111
      %v1732 = vpop.permute.xlu0 %1731
      %1733 = vrot.lane.b32.xlu0 %v986, 111
      %v1734 = vpop.permute.xlu0 %1733
      %1735 = vrot.lane.b32.xlu0 %v987, 111
      %v1736 = vpop.permute.xlu0 %1735
      %1737 = vrot.lane.b32.xlu0 %v988, 111
      %v1738 = vpop.permute.xlu0 %1737
      %1739 = vrot.lane.b32.xlu0 %v989, 111
      %v1740 = vpop.permute.xlu0 %1739
      %1741 = vrot.lane.b32.xlu0 %v990, 111
      %v1742 = vpop.permute.xlu0 %1741
      %1743 = vrot.lane.b32.xlu0 %v991, 111
      %v1744 = vpop.permute.xlu0 %1743
      %1745 = vrot.lane.b32.xlu0 %v992, 111
      %v1746 = vpop.permute.xlu0 %1745
      %1747 = vrot.lane.b32.xlu0 %v993, 111
      %v1748 = vpop.permute.xlu0 %1747
      %1749 = vrot.lane.b32.xlu0 %v994, 111
      %v1750 = vpop.permute.xlu0 %1749
      %1751 = vrot.lane.b32.xlu0 %v995, 111
      %v1752 = vpop.permute.xlu0 %1751
      %1753 = vrot.lane.b32.xlu0 %v996, 111
      %v1754 = vpop.permute.xlu0 %1753
      %1755 = vrot.lane.b32.xlu0 %v997, 111
      %v1756 = vpop.permute.xlu0 %1755
      %1757 = vrot.lane.b32.xlu0 %v998, 111
      %v1758 = vpop.permute.xlu0 %1757
      %1759 = vrot.lane.b32.xlu0 %v1422, 111
      %v1760 = vpop.permute.xlu0 %1759
      %1761 = vrot.lane.b32.xlu0 %v1518, 111
      %v1762 = vpop.permute.xlu0 %1761
      %1763 = vrot.lane.b32.xlu0 %v1519, 111
      %v1764 = vpop.permute.xlu0 %1763
      %1765 = vrot.lane.b32.xlu0 %v1520, 111
      %v1766 = vpop.permute.xlu0 %1765
      %1767 = vrot.lane.b32.xlu0 %v1521, 111
      %v1768 = vpop.permute.xlu0 %1767
      %1769 = vrot.lane.b32.xlu0 %v1522, 111
      %v1770 = vpop.permute.xlu0 %1769
      %1771 = vrot.lane.b32.xlu0 %v1523, 111
      %v1772 = vpop.permute.xlu0 %1771
      %1773 = vrot.lane.b32.xlu0 %v1524, 111
      %v1774 = vpop.permute.xlu0 %1773
      %1775 = vrot.lane.b32.xlu0 %v1438, 111
      %v1776 = vpop.permute.xlu0 %1775
      %1777 = vrot.lane.b32.xlu0 %v1525, 111
      %v1778 = vpop.permute.xlu0 %1777
      %1779 = vrot.lane.b32.xlu0 %v1526, 111
      %v1780 = vpop.permute.xlu0 %1779
      %1781 = vrot.lane.b32.xlu0 %v1527, 111
      %v1782 = vpop.permute.xlu0 %1781
      %1783 = vrot.lane.b32.xlu0 %v1528, 111
      %v1784 = vpop.permute.xlu0 %1783
      %1785 = vrot.lane.b32.xlu0 %v1529, 111
      %v1786 = vpop.permute.xlu0 %1785
      %1787 = vrot.lane.b32.xlu0 %v1530, 111
      %v1788 = vpop.permute.xlu0 %1787
      %1789 = vrot.lane.b32.xlu0 %v1531, 111
      %v1790 = vpop.permute.xlu0 %1789
      %1791 = vrot.lane.b32.xlu0 %v1454, 111
      %v1792 = vpop.permute.xlu0 %1791
      %1793 = vrot.lane.b32.xlu0 %v1532, 111
      %v1794 = vpop.permute.xlu0 %1793
      %1795 = vrot.lane.b32.xlu0 %v1533, 111
      %v1796 = vpop.permute.xlu0 %1795
      %1797 = vrot.lane.b32.xlu0 %v1534, 111
      %v1798 = vpop.permute.xlu0 %1797
      %1799 = vrot.lane.b32.xlu0 %v1535, 111
      %v1800 = vpop.permute.xlu0 %1799
      %1801 = vrot.lane.b32.xlu0 %v1536, 111
      %v1802 = vpop.permute.xlu0 %1801
      %1803 = vrot.lane.b32.xlu0 %v1537, 111
      %v1804 = vpop.permute.xlu0 %1803
      %1805 = vrot.lane.b32.xlu0 %v1538, 111
      %v1806 = vpop.permute.xlu0 %1805
      %1807 = vrot.lane.b32.xlu0 %v1470, 111
      %v1808 = vpop.permute.xlu0 %1807
      %1809 = vrot.lane.b32.xlu0 %v1539, 111
      %v1810 = vpop.permute.xlu0 %1809
      %1811 = vrot.lane.b32.xlu0 %v1540, 111
      %v1812 = vpop.permute.xlu0 %1811
      %1813 = vrot.lane.b32.xlu0 %v1541, 111
      %v1814 = vpop.permute.xlu0 %1813
      %1815 = vrot.lane.b32.xlu0 %v1542, 111
      %v1816 = vpop.permute.xlu0 %1815
      %1817 = vrot.lane.b32.xlu0 %v1543, 111
      %v1818 = vpop.permute.xlu0 %1817
      %1819 = vrot.lane.b32.xlu0 %v1544, 111
      %v1820 = vpop.permute.xlu0 %1819
      %1821 = vrot.lane.b32.xlu0 %v1545, 111
      %v1822 = vpop.permute.xlu0 %1821
      %1823 = vrot.lane.b32.xlu0 %v1486, 111
      %v1824 = vpop.permute.xlu0 %1823
      %1825 = vrot.lane.b32.xlu0 %v1546, 111
      %v1826 = vpop.permute.xlu0 %1825
      %1827 = vrot.lane.b32.xlu0 %v1547, 111
      %v1828 = vpop.permute.xlu0 %1827
      %1829 = vrot.lane.b32.xlu0 %v1548, 111
      %v1830 = vpop.permute.xlu0 %1829
      %1831 = vrot.lane.b32.xlu0 %v1549, 111
      %v1832 = vpop.permute.xlu0 %1831
      %1833 = vrot.lane.b32.xlu0 %v1550, 111
      %v1834 = vpop.permute.xlu0 %1833
      %1835 = vrot.lane.b32.xlu0 %v1551, 111
      %v1836 = vpop.permute.xlu0 %1835
      %1837 = vrot.lane.b32.xlu0 %v1552, 111
      %v1838 = vpop.permute.xlu0 %1837
      %1839 = vrot.lane.b32.xlu0 %v1502, 111
      %v1840 = vpop.permute.xlu0 %1839
      %1841 = vrot.lane.b32.xlu0 %v1553, 111
      %v1842 = vpop.permute.xlu0 %1841
      %1843 = vrot.lane.b32.xlu0 %v1554, 111
      %v1844 = vpop.permute.xlu0 %1843
      %1845 = vrot.lane.b32.xlu0 %v1555, 111
      %v1846 = vpop.permute.xlu0 %1845
      %1847 = vrot.lane.b32.xlu0 %v1556, 111
      %v1848 = vpop.permute.xlu0 %1847
      %1849 = vrot.lane.b32.xlu0 %v1557, 111
      %v1850 = vpop.permute.xlu0 %1849
      %1851 = vrot.lane.b32.xlu0 %v1558, 111
      %v1852 = vpop.permute.xlu0 %1851
      %1853 = vrot.lane.b32.xlu0 %v1559, 111
      %v1854 = vpop.permute.xlu0 %1853
      %vm1855 = vcmask 908288
      %v1856 = vsel %vm1855, %v1632, %v1634
      %v1857 = vsel %vm1855, %v1634, %v1636
      %v1858 = vsel %vm1855, %v1636, %v1638
      %v1859 = vsel %vm1855, %v1638, %v1640
      %v1860 = vsel %vm1855, %v1640, %v1642
      %v1861 = vsel %vm1855, %v1642, %v1644
      %v1862 = vsel %vm1855, %v1644, %v1646
      %v1863 = vsel %vm1855, %v1648, %v1650
      %v1864 = vsel %vm1855, %v1650, %v1652
      %v1865 = vsel %vm1855, %v1652, %v1654
      %v1866 = vsel %vm1855, %v1654, %v1656
      %v1867 = vsel %vm1855, %v1656, %v1658
      %v1868 = vsel %vm1855, %v1658, %v1660
      %v1869 = vsel %vm1855, %v1660, %v1662
      %v1870 = vsel %vm1855, %v1664, %v1666
      %v1871 = vsel %vm1855, %v1666, %v1668
      %v1872 = vsel %vm1855, %v1668, %v1670
      %v1873 = vsel %vm1855, %v1670, %v1672
      %v1874 = vsel %vm1855, %v1672, %v1674
      %v1875 = vsel %vm1855, %v1674, %v1676
      %v1876 = vsel %vm1855, %v1676, %v1678
      %v1877 = vsel %vm1855, %v1680, %v1682
      %v1878 = vsel %vm1855, %v1682, %v1684
      %v1879 = vsel %vm1855, %v1684, %v1686
      %v1880 = vsel %vm1855, %v1686, %v1688
      %v1881 = vsel %vm1855, %v1688, %v1690
      %v1882 = vsel %vm1855, %v1690, %v1692
      %v1883 = vsel %vm1855, %v1692, %v1694
      %v1884 = vsel %vm1855, %v1696, %v1698
      %v1885 = vsel %vm1855, %v1698, %v1700
      %v1886 = vsel %vm1855, %v1700, %v1702
      %v1887 = vsel %vm1855, %v1702, %v1704
      %v1888 = vsel %vm1855, %v1704, %v1706
      %v1889 = vsel %vm1855, %v1706, %v1708
      %v1890 = vsel %vm1855, %v1708, %v1710
      %v1891 = vsel %vm1855, %v1712, %v1714
      %v1892 = vsel %vm1855, %v1714, %v1716
      %v1893 = vsel %vm1855, %v1716, %v1718
      %v1894 = vsel %vm1855, %v1718, %v1720
      %v1895 = vsel %vm1855, %v1720, %v1722
      %v1896 = vsel %vm1855, %v1722, %v1724
      %v1897 = vsel %vm1855, %v1724, %v1726
      %v1898 = vsel %vm1855, %v1728, %v1730
      %v1899 = vsel %vm1855, %v1730, %v1732
      %v1900 = vsel %vm1855, %v1732, %v1734
      %v1901 = vsel %vm1855, %v1734, %v1736
      %v1902 = vsel %vm1855, %v1736, %v1738
      %v1903 = vsel %vm1855, %v1738, %v1740
      %v1904 = vsel %vm1855, %v1740, %v1742
      %v1905 = vsel %vm1855, %v1744, %v1746
      %v1906 = vsel %vm1855, %v1746, %v1748
      %v1907 = vsel %vm1855, %v1748, %v1750
      %v1908 = vsel %vm1855, %v1750, %v1752
      %v1909 = vsel %vm1855, %v1752, %v1754
      %v1910 = vsel %vm1855, %v1754, %v1756
      %v1911 = vsel %vm1855, %v1756, %v1758
      %v1912 = vsel %vm1855, %v1760, %v1762
      %v1913 = vsel %vm1855, %v1762, %v1764
      %v1914 = vsel %vm1855, %v1764, %v1766
      %v1915 = vsel %vm1855, %v1766, %v1768
      %v1916 = vsel %vm1855, %v1768, %v1770
      %v1917 = vsel %vm1855, %v1770, %v1772
      %v1918 = vsel %vm1855, %v1772, %v1774
      %v1919 = vsel %vm1855, %v1776, %v1778
      %v1920 = vsel %vm1855, %v1778, %v1780
      %v1921 = vsel %vm1855, %v1780, %v1782
      %v1922 = vsel %vm1855, %v1782, %v1784
      %v1923 = vsel %vm1855, %v1784, %v1786
      %v1924 = vsel %vm1855, %v1786, %v1788
      %v1925 = vsel %vm1855, %v1788, %v1790
      %v1926 = vsel %vm1855, %v1792, %v1794
      %v1927 = vsel %vm1855, %v1794, %v1796
      %v1928 = vsel %vm1855, %v1796, %v1798
      %v1929 = vsel %vm1855, %v1798, %v1800
      %v1930 = vsel %vm1855, %v1800, %v1802
      %v1931 = vsel %vm1855, %v1802, %v1804
      %v1932 = vsel %vm1855, %v1804, %v1806
      %v1933 = vsel %vm1855, %v1808, %v1810
      %v1934 = vsel %vm1855, %v1810, %v1812
      %v1935 = vsel %vm1855, %v1812, %v1814
      %v1936 = vsel %vm1855, %v1814, %v1816
      %v1937 = vsel %vm1855, %v1816, %v1818
      %v1938 = vsel %vm1855, %v1818, %v1820
      %v1939 = vsel %vm1855, %v1820, %v1822
      %v1940 = vsel %vm1855, %v1824, %v1826
      %v1941 = vsel %vm1855, %v1826, %v1828
      %v1942 = vsel %vm1855, %v1828, %v1830
      %v1943 = vsel %vm1855, %v1830, %v1832
      %v1944 = vsel %vm1855, %v1832, %v1834
      %v1945 = vsel %vm1855, %v1834, %v1836
      %v1946 = vsel %vm1855, %v1836, %v1838
      %v1947 = vsel %vm1855, %v1840, %v1842
      %v1948 = vsel %vm1855, %v1842, %v1844
      %v1949 = vsel %vm1855, %v1844, %v1846
      %v1950 = vsel %vm1855, %v1846, %v1848
      %v1951 = vsel %vm1855, %v1848, %v1850
      %v1952 = vsel %vm1855, %v1850, %v1852
      %v1953 = vsel %vm1855, %v1852, %v1854
      %v2059 = vsel %vm599, %v1560, 0
      %v2061 = vsel %vm934, %v1947, 0
      %v2063 = vsel %vm934, %v1948, 0
      %v2065 = vsel %vm934, %v1949, 0
      %v2067 = vsel %vm934, %v1950, 0
      %v2069 = vsel %vm934, %v1951, 0
      %v2071 = vsel %vm934, %v1952, 0
      %v2073 = vsel %vm934, %v1953, 0
      %v2075 = vsel %vm934, %v1854, 0
      %2077 = vmatprep.subr.mxu0 0.0
      %2078 = vmatpush1.msra.mxu0 0.0
      %2079 = vmatprep.subr.mxu0 0.0
      %2080 = vmatpush1.msra.mxu0 0.0
      %2081 = vmatprep.subr.mxu0 %v2063
      %2082 = vmatpush1.msra.mxu0 %v2061
      %2083 = vmatprep.subr.mxu0 %v1941
      %2084 = vmatpush1.msra.mxu0 %v1940
      %2085 = vmatprep.subr.mxu0 %v1934
      %2086 = vmatpush1.msra.mxu0 %v1933
      %2087 = vmatprep.subr.mxu0 %v1927
      %2088 = vmatpush1.msra.mxu0 %v1926
      %2089 = vmatprep.subr.mxu0 %v1920
      %2090 = vmatpush1.msra.mxu0 %v1919
      %2091 = vmatprep.subr.mxu0 %v1913
      %2092 = vmatpush1.msra.mxu0 %v1912
      %2093 = vmatprep.subr.mxu0 %v1906
      %2094 = vmatpush1.msra.mxu0 %v1905
      %2095 = vmatprep.subr.mxu0 %v1899
      %2096 = vmatpush1.msra.mxu0 %v1898
      %2097 = vmatprep.subr.mxu0 %v1892
      %2098 = vmatpush1.msra.mxu0 %v1891
      %2099 = vmatprep.subr.mxu0 %v1885
      %2100 = vmatpush1.msra.mxu0 %v1884
      %2101 = vmatprep.subr.mxu0 %v1878
      %2102 = vmatpush1.msra.mxu0 %v1877
      %2103 = vmatprep.subr.mxu0 %v1871
      %2104 = vmatpush1.msra.mxu0 %v1870
      %2105 = vmatprep.subr.mxu0 %v1864
      %2106 = vmatpush1.msra.mxu0 %v1863
      %2107 = vmatprep.subr.mxu0 %v1857
      %2108 = vmatpush1.msra.mxu0 %v1856
      %2109 = vmatprep.subr.mxu0 0.0
      %2110 = vmatpush2.msra.mxu0 0.0
      %2111 = vmatprep.subr.mxu0 0.0
      %2112 = vmatpush2.msra.mxu0 0.0
      %2113 = vmatprep.subr.mxu0 0.0
      %2114 = vmatpush2.msra.mxu0 0.0
      %2115 = vmatprep.subr.mxu0 0.0
      %2116 = vmatpush2.msra.mxu0 0.0
      %2117 = vmatprep.subr.mxu0 0.0
      %2118 = vmatpush2.msra.mxu0 0.0
      %2119 = vmatprep.subr.mxu0 0.0
      %2120 = vmatpush2.msra.mxu0 0.0
      %2121 = vmatprep.subr.mxu0 0.0
      %2122 = vmatpush2.msra.mxu0 0.0
      %2123 = vmatprep.subr.mxu0 0.0
      %2124 = vmatpush2.msra.mxu0 0.0
      %2125 = vmatprep.subr.mxu0 0.0
      %2126 = vmatpush2.msra.mxu0 0.0
      %2127 = vmatprep.subr.mxu0 0.0
      %2128 = vmatpush2.msra.mxu0 0.0
      %2129 = vmatprep.subr.mxu0 0.0
      %2130 = vmatpush2.msra.mxu0 0.0
      %2131 = vmatprep.subr.mxu0 0.0
      %2132 = vmatpush2.msra.mxu0 0.0
      %2133 = vmatprep.subr.mxu0 0.0
      %2134 = vmatpush2.msra.mxu0 0.0
      %2135 = vmatprep.subr.mxu0 0.0
      %2136 = vmatpush2.msra.mxu0 0.0
      %2137 = vmatprep.subr.mxu0 0.0
      %2138 = vmatpush2.msra.mxu0 0.0
      %2139 = vmatprep.subr.mxu0 0.0
      %2140 = vmatpush2.msra.mxu0 0.0
      %2141 = vmatprep.mubr.f32.mxu0 0.0
      %2142 = vmatmul.mubr.f32.gmra.mxu0 %v2059
      %v2143 = vpop.f32.mrf.mxu0
      %v2144 = vadd.f32 %v1565, %v2143
      %v2145 = vpop.f32.mrf.mxu0
      %v2146 = vadd.f32 %v1565, %v2145
      %2147 = vdwg.mxu0
      %2148 = vmatprep.subr.mxu0 0.0
      %2149 = vmatpush1.msra.mxu0 0.0
      %2150 = vmatprep.subr.mxu0 0.0
      %2151 = vmatpush1.msra.mxu0 0.0
      %2152 = vmatprep.subr.mxu0 %v2067
      %2153 = vmatpush1.msra.mxu0 %v2065
      %2154 = vmatprep.subr.mxu0 %v1943
      %2155 = vmatpush1.msra.mxu0 %v1942
      %2156 = vmatprep.subr.mxu0 %v1936
      %2157 = vmatpush1.msra.mxu0 %v1935
      %2158 = vmatprep.subr.mxu0 %v1929
      %2159 = vmatpush1.msra.mxu0 %v1928
      %2160 = vmatprep.subr.mxu0 %v1922
      %2161 = vmatpush1.msra.mxu0 %v1921
      %2162 = vmatprep.subr.mxu0 %v1915
      %2163 = vmatpush1.msra.mxu0 %v1914
      %2164 = vmatprep.subr.mxu0 %v1908
      %2165 = vmatpush1.msra.mxu0 %v1907
      %2166 = vmatprep.subr.mxu0 %v1901
      %2167 = vmatpush1.msra.mxu0 %v1900
      %2168 = vmatprep.subr.mxu0 %v1894
      %2169 = vmatpush1.msra.mxu0 %v1893
      %2170 = vmatprep.subr.mxu0 %v1887
      %2171 = vmatpush1.msra.mxu0 %v1886
      %2172 = vmatprep.subr.mxu0 %v1880
      %2173 = vmatpush1.msra.mxu0 %v1879
      %2174 = vmatprep.subr.mxu0 %v1873
      %2175 = vmatpush1.msra.mxu0 %v1872
      %2176 = vmatprep.subr.mxu0 %v1866
      %2177 = vmatpush1.msra.mxu0 %v1865
      %2178 = vmatprep.subr.mxu0 %v1859
      %2179 = vmatpush1.msra.mxu0 %v1858
      %2180 = vmatprep.subr.mxu0 0.0
      %2181 = vmatpush2.msra.mxu0 0.0
      %2182 = vmatprep.subr.mxu0 0.0
      %2183 = vmatpush2.msra.mxu0 0.0
      %2184 = vmatprep.subr.mxu0 0.0
      %2185 = vmatpush2.msra.mxu0 0.0
      %2186 = vmatprep.subr.mxu0 0.0
      %2187 = vmatpush2.msra.mxu0 0.0
      %2188 = vmatprep.subr.mxu0 0.0
      %2189 = vmatpush2.msra.mxu0 0.0
      %2190 = vmatprep.subr.mxu0 0.0
      %2191 = vmatpush2.msra.mxu0 0.0
      %2192 = vmatprep.subr.mxu0 0.0
      %2193 = vmatpush2.msra.mxu0 0.0
      %2194 = vmatprep.subr.mxu0 0.0
      %2195 = vmatpush2.msra.mxu0 0.0
      %2196 = vmatprep.subr.mxu0 0.0
      %2197 = vmatpush2.msra.mxu0 0.0
      %2198 = vmatprep.subr.mxu0 0.0
      %2199 = vmatpush2.msra.mxu0 0.0
      %2200 = vmatprep.subr.mxu0 0.0
      %2201 = vmatpush2.msra.mxu0 0.0
      %2202 = vmatprep.subr.mxu0 0.0
      %2203 = vmatpush2.msra.mxu0 0.0
      %2204 = vmatprep.subr.mxu0 0.0
      %2205 = vmatpush2.msra.mxu0 0.0
      %2206 = vmatprep.subr.mxu0 0.0
      %2207 = vmatpush2.msra.mxu0 0.0
      %2208 = vmatprep.subr.mxu0 0.0
      %2209 = vmatpush2.msra.mxu0 0.0
      %2210 = vmatprep.subr.mxu0 0.0
      %2211 = vmatpush2.msra.mxu0 0.0
      %2212 = vmatprep.mubr.f32.mxu0 0.0
      %2213 = vmatmul.mubr.f32.gmra.mxu0 %v2059
      %v2214 = vpop.f32.mrf.mxu0
      %v2215 = vadd.f32 %v1565, %v2214
      %v2216 = vpop.f32.mrf.mxu0
      %v2217 = vadd.f32 %v1565, %v2216
      %2218 = vdwg.mxu0
      %2219 = vmatprep.subr.mxu0 0.0
      %2220 = vmatpush1.msra.mxu0 0.0
      %2221 = vmatprep.subr.mxu0 0.0
      %2222 = vmatpush1.msra.mxu0 0.0
      %2223 = vmatprep.subr.mxu0 %v2071
      %2224 = vmatpush1.msra.mxu0 %v2069
      %2225 = vmatprep.subr.mxu0 %v1945
      %2226 = vmatpush1.msra.mxu0 %v1944
      %2227 = vmatprep.subr.mxu0 %v1938
      %2228 = vmatpush1.msra.mxu0 %v1937
      %2229 = vmatprep.subr.mxu0 %v1931
      %2230 = vmatpush1.msra.mxu0 %v1930
      %2231 = vmatprep.subr.mxu0 %v1924
      %2232 = vmatpush1.msra.mxu0 %v1923
      %2233 = vmatprep.subr.mxu0 %v1917
      %2234 = vmatpush1.msra.mxu0 %v1916
      %2235 = vmatprep.subr.mxu0 %v1910
      %2236 = vmatpush1.msra.mxu0 %v1909
      %2237 = vmatprep.subr.mxu0 %v1903
      %2238 = vmatpush1.msra.mxu0 %v1902
      %2239 = vmatprep.subr.mxu0 %v1896
      %2240 = vmatpush1.msra.mxu0 %v1895
      %2241 = vmatprep.subr.mxu0 %v1889
      %2242 = vmatpush1.msra.mxu0 %v1888
      %2243 = vmatprep.subr.mxu0 %v1882
      %2244 = vmatpush1.msra.mxu0 %v1881
      %2245 = vmatprep.subr.mxu0 %v1875
      %2246 = vmatpush1.msra.mxu0 %v1874
      %2247 = vmatprep.subr.mxu0 %v1868
      %2248 = vmatpush1.msra.mxu0 %v1867
      %2249 = vmatprep.subr.mxu0 %v1861
      %2250 = vmatpush1.msra.mxu0 %v1860
      %2251 = vmatprep.subr.mxu0 0.0
      %2252 = vmatpush2.msra.mxu0 0.0
      %2253 = vmatprep.subr.mxu0 0.0
      %2254 = vmatpush2.msra.mxu0 0.0
      %2255 = vmatprep.subr.mxu0 0.0
      %2256 = vmatpush2.msra.mxu0 0.0
      %2257 = vmatprep.subr.mxu0 0.0
      %2258 = vmatpush2.msra.mxu0 0.0
      %2259 = vmatprep.subr.mxu0 0.0
      %2260 = vmatpush2.msra.mxu0 0.0
      %2261 = vmatprep.subr.mxu0 0.0
      %2262 = vmatpush2.msra.mxu0 0.0
      %2263 = vmatprep.subr.mxu0 0.0
      %2264 = vmatpush2.msra.mxu0 0.0
      %2265 = vmatprep.subr.mxu0 0.0
      %2266 = vmatpush2.msra.mxu0 0.0
      %2267 = vmatprep.subr.mxu0 0.0
      %2268 = vmatpush2.msra.mxu0 0.0
      %2269 = vmatprep.subr.mxu0 0.0
      %2270 = vmatpush2.msra.mxu0 0.0
      %2271 = vmatprep.subr.mxu0 0.0
      %2272 = vmatpush2.msra.mxu0 0.0
      %2273 = vmatprep.subr.mxu0 0.0
      %2274 = vmatpush2.msra.mxu0 0.0
      %2275 = vmatprep.subr.mxu0 0.0
      %2276 = vmatpush2.msra.mxu0 0.0
      %2277 = vmatprep.subr.mxu0 0.0
      %2278 = vmatpush2.msra.mxu0 0.0
      %2279 = vmatprep.subr.mxu0 0.0
      %2280 = vmatpush2.msra.mxu0 0.0
      %2281 = vmatprep.subr.mxu0 0.0
      %2282 = vmatpush2.msra.mxu0 0.0
      %2283 = vmatprep.mubr.f32.mxu0 0.0
      %2284 = vmatmul.mubr.f32.gmra.mxu0 %v2059
      %v2285 = vpop.f32.mrf.mxu0
      %v2286 = vadd.f32 %v1565, %v2285
      %v2287 = vpop.f32.mrf.mxu0
      %v2288 = vadd.f32 %v1565, %v2287
      %2289 = vdwg.mxu0
      %2290 = vmatprep.subr.mxu0 0.0
      %2291 = vmatpush1.msra.mxu0 0.0
      %2292 = vmatprep.subr.mxu0 0.0
      %2293 = vmatpush1.msra.mxu0 0.0
      %2294 = vmatprep.subr.mxu0 %v2075
      %2295 = vmatpush1.msra.mxu0 %v2073
      %2296 = vmatprep.subr.mxu0 %v1838
      %2297 = vmatpush1.msra.mxu0 %v1946
      %2298 = vmatprep.subr.mxu0 %v1822
      %2299 = vmatpush1.msra.mxu0 %v1939
      %2300 = vmatprep.subr.mxu0 %v1806
      %2301 = vmatpush1.msra.mxu0 %v1932
      %2302 = vmatprep.subr.mxu0 %v1790
      %2303 = vmatpush1.msra.mxu0 %v1925
      %2304 = vmatprep.subr.mxu0 %v1774
      %2305 = vmatpush1.msra.mxu0 %v1918
      %2306 = vmatprep.subr.mxu0 %v1758
      %2307 = vmatpush1.msra.mxu0 %v1911
      %2308 = vmatprep.subr.mxu0 %v1742
      %2309 = vmatpush1.msra.mxu0 %v1904
      %2310 = vmatprep.subr.mxu0 %v1726
      %2311 = vmatpush1.msra.mxu0 %v1897
      %2312 = vmatprep.subr.mxu0 %v1710
      %2313 = vmatpush1.msra.mxu0 %v1890
      %2314 = vmatprep.subr.mxu0 %v1694
      %2315 = vmatpush1.msra.mxu0 %v1883
      %2316 = vmatprep.subr.mxu0 %v1678
      %2317 = vmatpush1.msra.mxu0 %v1876
      %2318 = vmatprep.subr.mxu0 %v1662
      %2319 = vmatpush1.msra.mxu0 %v1869
      %2320 = vmatprep.subr.mxu0 %v1646
      %2321 = vmatpush1.msra.mxu0 %v1862
      %2322 = vmatprep.subr.mxu0 0.0
      %2323 = vmatpush2.msra.mxu0 0.0
      %2324 = vmatprep.subr.mxu0 0.0
      %2325 = vmatpush2.msra.mxu0 0.0
      %2326 = vmatprep.subr.mxu0 0.0
      %2327 = vmatpush2.msra.mxu0 0.0
      %2328 = vmatprep.subr.mxu0 0.0
      %2329 = vmatpush2.msra.mxu0 0.0
      %2330 = vmatprep.subr.mxu0 0.0
      %2331 = vmatpush2.msra.mxu0 0.0
      %2332 = vmatprep.subr.mxu0 0.0
      %2333 = vmatpush2.msra.mxu0 0.0
      %2334 = vmatprep.subr.mxu0 0.0
      %2335 = vmatpush2.msra.mxu0 0.0
      %2336 = vmatprep.subr.mxu0 0.0
      %2337 = vmatpush2.msra.mxu0 0.0
      %2338 = vmatprep.subr.mxu0 0.0
      %2339 = vmatpush2.msra.mxu0 0.0
      %2340 = vmatprep.subr.mxu0 0.0
      %2341 = vmatpush2.msra.mxu0 0.0
      %2342 = vmatprep.subr.mxu0 0.0
      %2343 = vmatpush2.msra.mxu0 0.0
      %2344 = vmatprep.subr.mxu0 0.0
      %2345 = vmatpush2.msra.mxu0 0.0
      %2346 = vmatprep.subr.mxu0 0.0
      %2347 = vmatpush2.msra.mxu0 0.0
      %2348 = vmatprep.subr.mxu0 0.0
      %2349 = vmatpush2.msra.mxu0 0.0
      %2350 = vmatprep.subr.mxu0 0.0
      %2351 = vmatpush2.msra.mxu0 0.0
      %2352 = vmatprep.subr.mxu0 0.0
      %2353 = vmatpush2.msra.mxu0 0.0
      %2354 = vmatprep.mubr.f32.mxu0 0.0
      %2355 = vmatmul.mubr.f32.gmra.mxu0 %v2059
      %v2356 = vpop.f32.mrf.mxu0
      %v2357 = vadd.f32 %v1565, %v2356
      %v2358 = vpop.f32.mrf.mxu0
      %v2359 = vadd.f32 %v1565, %v2358
      %2360 = vdwg.mxu0
      %v2361 = vmul.f32 %v2144, 0.2
      %v2362 = vmul.f32 %v2146, 0.2
      %v2363 = vmul.f32 %v2215, 0.2
      %v2364 = vmul.f32 %v2217, 0.2
      %v2365 = vmul.f32 %v2286, 0.2
      %v2366 = vmul.f32 %v2288, 0.2
      %v2367 = vmul.f32 %v2357, 0.2
      %v2368 = vmul.f32 %v2359, 0.2
      %v2369 = vmax.f32 %v2144, %v2361
      %v2370 = vmax.f32 %v2146, %v2362
      %v2371 = vmax.f32 %v2215, %v2363
      %v2372 = vmax.f32 %v2217, %v2364
      %v2373 = vmax.f32 %v2286, %v2365
      %v2374 = vmax.f32 %v2288, %v2366
      %v2375 = vmax.f32 %v2357, %v2367
      %v2376 = vmax.f32 %v2359, %v2368
      %v2377 = vmul.f32 %v2369, %v311
      %v2378 = vmul.f32 %v2370, %v315
      %v2379 = vmul.f32 %v2371, %v319
      %v2380 = vmul.f32 %v2372, %v323
      %v2381 = vmul.f32 %v2373, %v327
      %v2382 = vmul.f32 %v2374, %v331
      %v2383 = vmul.f32 %v2375, %v335
      %v2384 = vmul.f32 %v2376, %v339
      %v2393 = vrot.slane %v2377, 4
      %v2394 = vrot.slane %v2378, 4
      %v2395 = vrot.slane %v2379, 4
      %v2396 = vrot.slane %v2380, 4
      %v2397 = vrot.slane %v2381, 4
      %v2398 = vrot.slane %v2382, 4
      %v2399 = vrot.slane %v2383, 4
      %v2400 = vrot.slane %v2384, 4
      %2409 = vst [vmem:[%s305] sm:$0xf0] %v2393
      %2410 = vst [vmem:[%s305 + $0x8] sm:$0xf0] %v2394
      %2411 = vst [vmem:[%s305 + $0x10] sm:$0xf0] %v2395
      %2412 = vst [vmem:[%s305 + $0x18] sm:$0xf0] %v2396
      %2413 = vst [vmem:[%s305 + $0x20] sm:$0xf0] %v2397
      %2414 = vst [vmem:[%s305 + $0x28] sm:$0xf0] %v2398
      %2415 = vst [vmem:[%s305 + $0x30] sm:$0xf0] %v2399
      %vm2416 = vcmask 850948
      %2417 = vst.msk [vmem:[%s305 + $0x38] sm:$0xf0] %vm2416, %v2400
      %2418 = vst [vmem:[#allocation2 + $0x8] sm:$0xf] %v2377
      %2419 = vst [vmem:[#allocation2 + $0x10] sm:$0xf] %v2378
      %2420 = vst [vmem:[#allocation2 + $0x18] sm:$0xf] %v2379
      %2421 = vst [vmem:[#allocation2 + $0x20] sm:$0xf] %v2380
      %2422 = vst [vmem:[#allocation2 + $0x28] sm:$0xf] %v2381
      %2423 = vst [vmem:[#allocation2 + $0x30] sm:$0xf] %v2382
      %2424 = vst [vmem:[#allocation2 + $0x38] sm:$0xf] %v2383
      %2425 = vst.msk [vmem:[#allocation2 + $0x40] sm:$0xf] %vm382, %v2384
      %v2426 = vld [vmem:[#allocation2] sm:$0xf]
      %v2427 = vld [vmem:[#allocation2 + $0x8] sm:$0xf]
      %v2428 = vld [vmem:[#allocation2 + $0x10] sm:$0xf]
      %v2429 = vld [vmem:[#allocation2 + $0x18] sm:$0xf]
      %v2430 = vld [vmem:[#allocation2 + $0x20] sm:$0xf]
      %v2431 = vld [vmem:[#allocation2 + $0x28] sm:$0xf]
      %v2432 = vld [vmem:[#allocation2 + $0x30] sm:$0xf]
      %v2433 = vld [vmem:[#allocation2 + $0x38] sm:$0xf]
      %v2434 = vld [vmem:[#allocation2 + $0x40] sm:$0xf]
      %v2435 = vld [vmem:[#allocation2 + $0x48] sm:$0xf]
      %v2444 = vrot.slane %v2426, 4
      %v2445 = vrot.slane %v2427, 4
      %v2446 = vrot.slane %v2428, 4
      %v2447 = vrot.slane %v2429, 4
      %v2448 = vrot.slane %v2430, 4
      %v2449 = vrot.slane %v2431, 4
      %v2450 = vrot.slane %v2432, 4
      %v2451 = vrot.slane %v2433, 4
      %2452 = vrot.lane.b32.xlu0 %v2444, 127
      %v2453 = vpop.permute.xlu0 %2452
      %2454 = vrot.lane.b32.xlu0 %v2445, 127
      %v2455 = vpop.permute.xlu0 %2454
      %2456 = vrot.lane.b32.xlu0 %v2446, 127
      %v2457 = vpop.permute.xlu0 %2456
      %2458 = vrot.lane.b32.xlu0 %v2447, 127
      %v2459 = vpop.permute.xlu0 %2458
      %2460 = vrot.lane.b32.xlu0 %v2448, 127
      %v2461 = vpop.permute.xlu0 %2460
      %2462 = vrot.lane.b32.xlu0 %v2449, 127
      %v2463 = vpop.permute.xlu0 %2462
      %2464 = vrot.lane.b32.xlu0 %v2450, 127
      %v2465 = vpop.permute.xlu0 %2464
      %2466 = vrot.lane.b32.xlu0 %v2451, 127
      %v2467 = vpop.permute.xlu0 %2466
      %v2468 = vsel %vm426, %v2453, %v2455
      %v2469 = vsel %vm426, %v2455, %v2457
      %v2470 = vsel %vm426, %v2457, %v2459
      %v2471 = vsel %vm426, %v2459, %v2461
      %v2472 = vsel %vm426, %v2461, %v2463
      %v2473 = vsel %vm426, %v2463, %v2465
      %v2474 = vsel %vm426, %v2465, %v2467
      %2483 = vrot.lane.b32.xlu0 %v2426, 126
      %v2484 = vpop.permute.xlu0 %2483
      %2485 = vrot.lane.b32.xlu0 %v2427, 126
      %v2486 = vpop.permute.xlu0 %2485
      %2487 = vrot.lane.b32.xlu0 %v2428, 126
      %v2488 = vpop.permute.xlu0 %2487
      %2489 = vrot.lane.b32.xlu0 %v2429, 126
      %v2490 = vpop.permute.xlu0 %2489
      %2491 = vrot.lane.b32.xlu0 %v2430, 126
      %v2492 = vpop.permute.xlu0 %2491
      %2493 = vrot.lane.b32.xlu0 %v2431, 126
      %v2494 = vpop.permute.xlu0 %2493
      %2495 = vrot.lane.b32.xlu0 %v2432, 126
      %v2496 = vpop.permute.xlu0 %2495
      %2497 = vrot.lane.b32.xlu0 %v2433, 126
      %v2498 = vpop.permute.xlu0 %2497
      %v2499 = vsel %vm458, %v2484, %v2486
      %v2500 = vsel %vm458, %v2486, %v2488
      %v2501 = vsel %vm458, %v2488, %v2490
      %v2502 = vsel %vm458, %v2490, %v2492
      %v2503 = vsel %vm458, %v2492, %v2494
      %v2504 = vsel %vm458, %v2494, %v2496
      %v2505 = vsel %vm458, %v2496, %v2498
      %v2515 = vrot.slane %v2434, 4
      %2516 = vrot.lane.b32.xlu0 %v2444, 118
      %v2517 = vpop.permute.xlu0 %2516
      %2518 = vrot.lane.b32.xlu0 %v2445, 118
      %v2519 = vpop.permute.xlu0 %2518
      %2520 = vrot.lane.b32.xlu0 %v2446, 118
      %v2521 = vpop.permute.xlu0 %2520
      %2522 = vrot.lane.b32.xlu0 %v2447, 118
      %v2523 = vpop.permute.xlu0 %2522
      %2524 = vrot.lane.b32.xlu0 %v2448, 118
      %v2525 = vpop.permute.xlu0 %2524
      %2526 = vrot.lane.b32.xlu0 %v2449, 118
      %v2527 = vpop.permute.xlu0 %2526
      %2528 = vrot.lane.b32.xlu0 %v2450, 118
      %v2529 = vpop.permute.xlu0 %2528
      %2530 = vrot.lane.b32.xlu0 %v2451, 118
      %v2531 = vpop.permute.xlu0 %2530
      %2532 = vrot.lane.b32.xlu0 %v2515, 118
      %v2533 = vpop.permute.xlu0 %2532
      %v2534 = vsel %vm494, %v2517, %v2519
      %v2535 = vsel %vm494, %v2519, %v2521
      %v2536 = vsel %vm494, %v2521, %v2523
      %v2537 = vsel %vm494, %v2523, %v2525
      %v2538 = vsel %vm494, %v2525, %v2527
      %v2539 = vsel %vm494, %v2527, %v2529
      %v2540 = vsel %vm494, %v2529, %v2531
      %v2541 = vsel %vm494, %v2531, %v2533
      %2550 = vrot.lane.b32.xlu0 %v2426, 117
      %v2551 = vpop.permute.xlu0 %2550
      %2552 = vrot.lane.b32.xlu0 %v2427, 117
      %v2553 = vpop.permute.xlu0 %2552
      %2554 = vrot.lane.b32.xlu0 %v2428, 117
      %v2555 = vpop.permute.xlu0 %2554
      %2556 = vrot.lane.b32.xlu0 %v2429, 117
      %v2557 = vpop.permute.xlu0 %2556
      %2558 = vrot.lane.b32.xlu0 %v2430, 117
      %v2559 = vpop.permute.xlu0 %2558
      %2560 = vrot.lane.b32.xlu0 %v2431, 117
      %v2561 = vpop.permute.xlu0 %2560
      %2562 = vrot.lane.b32.xlu0 %v2432, 117
      %v2563 = vpop.permute.xlu0 %2562
      %2564 = vrot.lane.b32.xlu0 %v2433, 117
      %v2565 = vpop.permute.xlu0 %2564
      %2566 = vrot.lane.b32.xlu0 %v2434, 117
      %v2567 = vpop.permute.xlu0 %2566
      %v2568 = vsel %vm529, %v2551, %v2553
      %v2569 = vsel %vm529, %v2553, %v2555
      %v2570 = vsel %vm529, %v2555, %v2557
      %v2571 = vsel %vm529, %v2557, %v2559
      %v2572 = vsel %vm529, %v2559, %v2561
      %v2573 = vsel %vm529, %v2561, %v2563
      %v2574 = vsel %vm529, %v2563, %v2565
      %v2575 = vsel %vm529, %v2565, %v2567
      %2584 = vrot.lane.b32.xlu0 %v2444, 116
      %v2585 = vpop.permute.xlu0 %2584
      %2586 = vrot.lane.b32.xlu0 %v2445, 116
      %v2587 = vpop.permute.xlu0 %2586
      %2588 = vrot.lane.b32.xlu0 %v2446, 116
      %v2589 = vpop.permute.xlu0 %2588
      %2590 = vrot.lane.b32.xlu0 %v2447, 116
      %v2591 = vpop.permute.xlu0 %2590
      %2592 = vrot.lane.b32.xlu0 %v2448, 116
      %v2593 = vpop.permute.xlu0 %2592
      %2594 = vrot.lane.b32.xlu0 %v2449, 116
      %v2595 = vpop.permute.xlu0 %2594
      %2596 = vrot.lane.b32.xlu0 %v2450, 116
      %v2597 = vpop.permute.xlu0 %2596
      %2598 = vrot.lane.b32.xlu0 %v2451, 116
      %v2599 = vpop.permute.xlu0 %2598
      %2600 = vrot.lane.b32.xlu0 %v2515, 116
      %v2601 = vpop.permute.xlu0 %2600
      %v2602 = vsel %vm564, %v2585, %v2587
      %v2603 = vsel %vm564, %v2587, %v2589
      %v2604 = vsel %vm564, %v2589, %v2591
      %v2605 = vsel %vm564, %v2591, %v2593
      %v2606 = vsel %vm564, %v2593, %v2595
      %v2607 = vsel %vm564, %v2595, %v2597
      %v2608 = vsel %vm564, %v2597, %v2599
      %v2609 = vsel %vm564, %v2599, %v2601
      %2618 = vrot.lane.b32.xlu0 %v2426, 108
      %v2619 = vpop.permute.xlu0 %2618
      %2620 = vrot.lane.b32.xlu0 %v2427, 108
      %v2621 = vpop.permute.xlu0 %2620
      %2622 = vrot.lane.b32.xlu0 %v2428, 108
      %v2623 = vpop.permute.xlu0 %2622
      %2624 = vrot.lane.b32.xlu0 %v2429, 108
      %v2625 = vpop.permute.xlu0 %2624
      %2626 = vrot.lane.b32.xlu0 %v2430, 108
      %v2627 = vpop.permute.xlu0 %2626
      %2628 = vrot.lane.b32.xlu0 %v2431, 108
      %v2629 = vpop.permute.xlu0 %2628
      %2630 = vrot.lane.b32.xlu0 %v2432, 108
      %v2631 = vpop.permute.xlu0 %2630
      %2632 = vrot.lane.b32.xlu0 %v2433, 108
      %v2633 = vpop.permute.xlu0 %2632
      %2634 = vrot.lane.b32.xlu0 %v2434, 108
      %v2635 = vpop.permute.xlu0 %2634
      %v2636 = vsel %vm599, %v2619, %v2621
      %v2637 = vsel %vm599, %v2621, %v2623
      %v2638 = vsel %vm599, %v2623, %v2625
      %v2639 = vsel %vm599, %v2625, %v2627
      %v2640 = vsel %vm599, %v2627, %v2629
      %v2641 = vsel %vm599, %v2629, %v2631
      %v2642 = vsel %vm599, %v2631, %v2633
      %v2643 = vsel %vm599, %v2633, %v2635
      %2652 = vrot.lane.b32.xlu0 %v2444, 107
      %v2653 = vpop.permute.xlu0 %2652
      %2654 = vrot.lane.b32.xlu0 %v2445, 107
      %v2655 = vpop.permute.xlu0 %2654
      %2656 = vrot.lane.b32.xlu0 %v2446, 107
      %v2657 = vpop.permute.xlu0 %2656
      %2658 = vrot.lane.b32.xlu0 %v2447, 107
      %v2659 = vpop.permute.xlu0 %2658
      %2660 = vrot.lane.b32.xlu0 %v2448, 107
      %v2661 = vpop.permute.xlu0 %2660
      %2662 = vrot.lane.b32.xlu0 %v2449, 107
      %v2663 = vpop.permute.xlu0 %2662
      %2664 = vrot.lane.b32.xlu0 %v2450, 107
      %v2665 = vpop.permute.xlu0 %2664
      %2666 = vrot.lane.b32.xlu0 %v2451, 107
      %v2667 = vpop.permute.xlu0 %2666
      %2668 = vrot.lane.b32.xlu0 %v2515, 107
      %v2669 = vpop.permute.xlu0 %2668
      %v2670 = vsel %vm634, %v2653, %v2655
      %v2671 = vsel %vm634, %v2655, %v2657
      %v2672 = vsel %vm634, %v2657, %v2659
      %v2673 = vsel %vm634, %v2659, %v2661
      %v2674 = vsel %vm634, %v2661, %v2663
      %v2675 = vsel %vm634, %v2663, %v2665
      %v2676 = vsel %vm634, %v2665, %v2667
      %v2677 = vsel %vm634, %v2667, %v2669
      %2686 = vrot.lane.b32.xlu0 %v2426, 106
      %v2687 = vpop.permute.xlu0 %2686
      %2688 = vrot.lane.b32.xlu0 %v2427, 106
      %v2689 = vpop.permute.xlu0 %2688
      %2690 = vrot.lane.b32.xlu0 %v2428, 106
      %v2691 = vpop.permute.xlu0 %2690
      %2692 = vrot.lane.b32.xlu0 %v2429, 106
      %v2693 = vpop.permute.xlu0 %2692
      %2694 = vrot.lane.b32.xlu0 %v2430, 106
      %v2695 = vpop.permute.xlu0 %2694
      %2696 = vrot.lane.b32.xlu0 %v2431, 106
      %v2697 = vpop.permute.xlu0 %2696
      %2698 = vrot.lane.b32.xlu0 %v2432, 106
      %v2699 = vpop.permute.xlu0 %2698
      %2700 = vrot.lane.b32.xlu0 %v2433, 106
      %v2701 = vpop.permute.xlu0 %2700
      %2702 = vrot.lane.b32.xlu0 %v2434, 106
      %v2703 = vpop.permute.xlu0 %2702
      %v2704 = vsel %vm669, %v2687, %v2689
      %v2705 = vsel %vm669, %v2689, %v2691
      %v2706 = vsel %vm669, %v2691, %v2693
      %v2707 = vsel %vm669, %v2693, %v2695
      %v2708 = vsel %vm669, %v2695, %v2697
      %v2709 = vsel %vm669, %v2697, %v2699
      %v2710 = vsel %vm669, %v2699, %v2701
      %v2711 = vsel %vm669, %v2701, %v2703
      %2720 = vrot.lane.b32.xlu0 %v2444, 28
      %v2721 = vpop.permute.xlu0 %2720
      %2722 = vrot.lane.b32.xlu0 %v2445, 28
      %v2723 = vpop.permute.xlu0 %2722
      %2724 = vrot.lane.b32.xlu0 %v2446, 28
      %v2725 = vpop.permute.xlu0 %2724
      %2726 = vrot.lane.b32.xlu0 %v2447, 28
      %v2727 = vpop.permute.xlu0 %2726
      %2728 = vrot.lane.b32.xlu0 %v2448, 28
      %v2729 = vpop.permute.xlu0 %2728
      %2730 = vrot.lane.b32.xlu0 %v2449, 28
      %v2731 = vpop.permute.xlu0 %2730
      %2732 = vrot.lane.b32.xlu0 %v2450, 28
      %v2733 = vpop.permute.xlu0 %2732
      %2734 = vrot.lane.b32.xlu0 %v2451, 28
      %v2735 = vpop.permute.xlu0 %2734
      %2736 = vrot.lane.b32.xlu0 %v2515, 28
      %v2737 = vpop.permute.xlu0 %2736
      %v2738 = vsel %vm704, %v2721, %v2723
      %v2739 = vsel %vm704, %v2723, %v2725
      %v2740 = vsel %vm704, %v2725, %v2727
      %v2741 = vsel %vm704, %v2727, %v2729
      %v2742 = vsel %vm704, %v2729, %v2731
      %v2743 = vsel %vm704, %v2731, %v2733
      %v2744 = vsel %vm704, %v2733, %v2735
      %v2745 = vsel %vm704, %v2735, %v2737
      %2754 = vrot.lane.b32.xlu0 %v2426, 27
      %v2755 = vpop.permute.xlu0 %2754
      %2756 = vrot.lane.b32.xlu0 %v2427, 27
      %v2757 = vpop.permute.xlu0 %2756
      %2758 = vrot.lane.b32.xlu0 %v2428, 27
      %v2759 = vpop.permute.xlu0 %2758
      %2760 = vrot.lane.b32.xlu0 %v2429, 27
      %v2761 = vpop.permute.xlu0 %2760
      %2762 = vrot.lane.b32.xlu0 %v2430, 27
      %v2763 = vpop.permute.xlu0 %2762
      %2764 = vrot.lane.b32.xlu0 %v2431, 27
      %v2765 = vpop.permute.xlu0 %2764
      %2766 = vrot.lane.b32.xlu0 %v2432, 27
      %v2767 = vpop.permute.xlu0 %2766
      %2768 = vrot.lane.b32.xlu0 %v2433, 27
      %v2769 = vpop.permute.xlu0 %2768
      %2770 = vrot.lane.b32.xlu0 %v2434, 27
      %v2771 = vpop.permute.xlu0 %2770
      %v2772 = vsel %vm739, %v2755, %v2757
      %v2773 = vsel %vm739, %v2757, %v2759
      %v2774 = vsel %vm739, %v2759, %v2761
      %v2775 = vsel %vm739, %v2761, %v2763
      %v2776 = vsel %vm739, %v2763, %v2765
      %v2777 = vsel %vm739, %v2765, %v2767
      %v2778 = vsel %vm739, %v2767, %v2769
      %v2779 = vsel %vm739, %v2769, %v2771
      %2788 = vrot.lane.b32.xlu0 %v2444, 26
      %v2789 = vpop.permute.xlu0 %2788
      %2790 = vrot.lane.b32.xlu0 %v2445, 26
      %v2791 = vpop.permute.xlu0 %2790
      %2792 = vrot.lane.b32.xlu0 %v2446, 26
      %v2793 = vpop.permute.xlu0 %2792
      %2794 = vrot.lane.b32.xlu0 %v2447, 26
      %v2795 = vpop.permute.xlu0 %2794
      %2796 = vrot.lane.b32.xlu0 %v2448, 26
      %v2797 = vpop.permute.xlu0 %2796
      %2798 = vrot.lane.b32.xlu0 %v2449, 26
      %v2799 = vpop.permute.xlu0 %2798
      %2800 = vrot.lane.b32.xlu0 %v2450, 26
      %v2801 = vpop.permute.xlu0 %2800
      %2802 = vrot.lane.b32.xlu0 %v2451, 26
      %v2803 = vpop.permute.xlu0 %2802
      %2804 = vrot.lane.b32.xlu0 %v2515, 26
      %v2805 = vpop.permute.xlu0 %2804
      %v2806 = vsel %vm774, %v2789, %v2791
      %v2807 = vsel %vm774, %v2791, %v2793
      %v2808 = vsel %vm774, %v2793, %v2795
      %v2809 = vsel %vm774, %v2795, %v2797
      %v2810 = vsel %vm774, %v2797, %v2799
      %v2811 = vsel %vm774, %v2799, %v2801
      %v2812 = vsel %vm774, %v2801, %v2803
      %v2813 = vsel %vm774, %v2803, %v2805
      %2822 = vrot.lane.b32.xlu0 %v2426, 18
      %v2823 = vpop.permute.xlu0 %2822
      %2824 = vrot.lane.b32.xlu0 %v2427, 18
      %v2825 = vpop.permute.xlu0 %2824
      %2826 = vrot.lane.b32.xlu0 %v2428, 18
      %v2827 = vpop.permute.xlu0 %2826
      %2828 = vrot.lane.b32.xlu0 %v2429, 18
      %v2829 = vpop.permute.xlu0 %2828
      %2830 = vrot.lane.b32.xlu0 %v2430, 18
      %v2831 = vpop.permute.xlu0 %2830
      %2832 = vrot.lane.b32.xlu0 %v2431, 18
      %v2833 = vpop.permute.xlu0 %2832
      %2834 = vrot.lane.b32.xlu0 %v2432, 18
      %v2835 = vpop.permute.xlu0 %2834
      %2836 = vrot.lane.b32.xlu0 %v2433, 18
      %v2837 = vpop.permute.xlu0 %2836
      %2838 = vrot.lane.b32.xlu0 %v2434, 18
      %v2839 = vpop.permute.xlu0 %2838
      %v2840 = vsel %vm809, %v2823, %v2825
      %v2841 = vsel %vm809, %v2825, %v2827
      %v2842 = vsel %vm809, %v2827, %v2829
      %v2843 = vsel %vm809, %v2829, %v2831
      %v2844 = vsel %vm809, %v2831, %v2833
      %v2845 = vsel %vm809, %v2833, %v2835
      %v2846 = vsel %vm809, %v2835, %v2837
      %v2847 = vsel %vm809, %v2837, %v2839
      %2856 = vrot.lane.b32.xlu0 %v2445, 17
      %v2857 = vpop.permute.xlu0 %2856
      %2858 = vrot.lane.b32.xlu0 %v2446, 17
      %v2859 = vpop.permute.xlu0 %2858
      %2860 = vrot.lane.b32.xlu0 %v2447, 17
      %v2861 = vpop.permute.xlu0 %2860
      %2862 = vrot.lane.b32.xlu0 %v2448, 17
      %v2863 = vpop.permute.xlu0 %2862
      %2864 = vrot.lane.b32.xlu0 %v2449, 17
      %v2865 = vpop.permute.xlu0 %2864
      %2866 = vrot.lane.b32.xlu0 %v2450, 17
      %v2867 = vpop.permute.xlu0 %2866
      %2868 = vrot.lane.b32.xlu0 %v2451, 17
      %v2869 = vpop.permute.xlu0 %2868
      %2870 = vrot.lane.b32.xlu0 %v2515, 17
      %v2871 = vpop.permute.xlu0 %2870
      %v2872 = vsel %vm850, %v2857, %v2859
      %v2873 = vsel %vm850, %v2859, %v2861
      %v2874 = vsel %vm850, %v2861, %v2863
      %v2875 = vsel %vm850, %v2863, %v2865
      %v2876 = vsel %vm850, %v2865, %v2867
      %v2877 = vsel %vm850, %v2867, %v2869
      %v2878 = vsel %vm850, %v2869, %v2871
      %2887 = vrot.lane.b32.xlu0 %v2427, 16
      %v2888 = vpop.permute.xlu0 %2887
      %2889 = vrot.lane.b32.xlu0 %v2428, 16
      %v2890 = vpop.permute.xlu0 %2889
      %2891 = vrot.lane.b32.xlu0 %v2429, 16
      %v2892 = vpop.permute.xlu0 %2891
      %2893 = vrot.lane.b32.xlu0 %v2430, 16
      %v2894 = vpop.permute.xlu0 %2893
      %2895 = vrot.lane.b32.xlu0 %v2431, 16
      %v2896 = vpop.permute.xlu0 %2895
      %2897 = vrot.lane.b32.xlu0 %v2432, 16
      %v2898 = vpop.permute.xlu0 %2897
      %2899 = vrot.lane.b32.xlu0 %v2433, 16
      %v2900 = vpop.permute.xlu0 %2899
      %2901 = vrot.lane.b32.xlu0 %v2434, 16
      %v2902 = vpop.permute.xlu0 %2901
      %v2903 = vsel %vm886, %v2888, %v2890
      %v2904 = vsel %vm886, %v2890, %v2892
      %v2905 = vsel %vm886, %v2892, %v2894
      %v2906 = vsel %vm886, %v2894, %v2896
      %v2907 = vsel %vm886, %v2896, %v2898
      %v2908 = vsel %vm886, %v2898, %v2900
      %v2909 = vsel %vm886, %v2900, %v2902
      %2918 = vrot.lane.b32.xlu0 %v2445, 8
      %v2919 = vpop.permute.xlu0 %2918
      %2920 = vrot.lane.b32.xlu0 %v2446, 8
      %v2921 = vpop.permute.xlu0 %2920
      %2922 = vrot.lane.b32.xlu0 %v2447, 8
      %v2923 = vpop.permute.xlu0 %2922
      %2924 = vrot.lane.b32.xlu0 %v2448, 8
      %v2925 = vpop.permute.xlu0 %2924
      %2926 = vrot.lane.b32.xlu0 %v2449, 8
      %v2927 = vpop.permute.xlu0 %2926
      %2928 = vrot.lane.b32.xlu0 %v2450, 8
      %v2929 = vpop.permute.xlu0 %2928
      %2930 = vrot.lane.b32.xlu0 %v2451, 8
      %v2931 = vpop.permute.xlu0 %2930
      %2932 = vrot.lane.b32.xlu0 %v2515, 8
      %v2933 = vpop.permute.xlu0 %2932
      %v2934 = vsel %vm918, %v2919, %v2921
      %v2935 = vsel %vm918, %v2921, %v2923
      %v2936 = vsel %vm918, %v2923, %v2925
      %v2937 = vsel %vm918, %v2925, %v2927
      %v2938 = vsel %vm918, %v2927, %v2929
      %v2939 = vsel %vm918, %v2929, %v2931
      %v2940 = vsel %vm918, %v2931, %v2933
      %v2949 = vsel %vm934, %v2426, %v2468
      %v2950 = vsel %vm934, %v2427, %v2469
      %v2951 = vsel %vm934, %v2428, %v2470
      %v2952 = vsel %vm934, %v2429, %v2471
      %v2953 = vsel %vm934, %v2430, %v2472
      %v2954 = vsel %vm934, %v2431, %v2473
      %v2955 = vsel %vm934, %v2432, %v2474
      %v2956 = vsel %vm934, %v2433, %v2467
      %v2957 = vsel %vm934, %v2499, %v2534
      %v2958 = vsel %vm934, %v2500, %v2535
      %v2959 = vsel %vm934, %v2501, %v2536
      %v2960 = vsel %vm934, %v2502, %v2537
      %v2961 = vsel %vm934, %v2503, %v2538
      %v2962 = vsel %vm934, %v2504, %v2539
      %v2963 = vsel %vm934, %v2505, %v2540
      %v2964 = vsel %vm934, %v2498, %v2541
      %v2965 = vsel %vm934, %v2568, %v2602
      %v2966 = vsel %vm934, %v2569, %v2603
      %v2967 = vsel %vm934, %v2570, %v2604
      %v2968 = vsel %vm934, %v2571, %v2605
      %v2969 = vsel %vm934, %v2572, %v2606
      %v2970 = vsel %vm934, %v2573, %v2607
      %v2971 = vsel %vm934, %v2574, %v2608
      %v2972 = vsel %vm934, %v2575, %v2609
      %v2973 = vsel %vm934, %v2636, %v2670
      %v2974 = vsel %vm934, %v2637, %v2671
      %v2975 = vsel %vm934, %v2638, %v2672
      %v2976 = vsel %vm934, %v2639, %v2673
      %v2977 = vsel %vm934, %v2640, %v2674
      %v2978 = vsel %vm934, %v2641, %v2675
      %v2979 = vsel %vm934, %v2642, %v2676
      %v2980 = vsel %vm934, %v2643, %v2677
      %v2981 = vsel %vm934, %v2704, %v2738
      %v2982 = vsel %vm934, %v2705, %v2739
      %v2983 = vsel %vm934, %v2706, %v2740
      %v2984 = vsel %vm934, %v2707, %v2741
      %v2985 = vsel %vm934, %v2708, %v2742
      %v2986 = vsel %vm934, %v2709, %v2743
      %v2987 = vsel %vm934, %v2710, %v2744
      %v2988 = vsel %vm934, %v2711, %v2745
      %v2989 = vsel %vm934, %v2772, %v2806
      %v2990 = vsel %vm934, %v2773, %v2807
      %v2991 = vsel %vm934, %v2774, %v2808
      %v2992 = vsel %vm934, %v2775, %v2809
      %v2993 = vsel %vm934, %v2776, %v2810
      %v2994 = vsel %vm934, %v2777, %v2811
      %v2995 = vsel %vm934, %v2778, %v2812
      %v2996 = vsel %vm934, %v2779, %v2813
      %v2997 = vsel %vm934, %v2840, %v2857
      %v2998 = vsel %vm934, %v2841, %v2872
      %v2999 = vsel %vm934, %v2842, %v2873
      %v3000 = vsel %vm934, %v2843, %v2874
      %v3001 = vsel %vm934, %v2844, %v2875
      %v3002 = vsel %vm934, %v2845, %v2876
      %v3003 = vsel %vm934, %v2846, %v2877
      %v3004 = vsel %vm934, %v2847, %v2878
      %v3005 = vsel %vm934, %v2888, %v2919
      %v3006 = vsel %vm934, %v2903, %v2934
      %v3007 = vsel %vm934, %v2904, %v2935
      %v3008 = vsel %vm934, %v2905, %v2936
      %v3009 = vsel %vm934, %v2906, %v2937
      %v3010 = vsel %vm934, %v2907, %v2938
      %v3011 = vsel %vm934, %v2908, %v2939
      %v3012 = vsel %vm934, %v2909, %v2940
      %3013 = vrot.lane.b32.xlu0 %v2515, 127
      %v3014 = vpop.permute.xlu0 %3013
      %v3015 = vsel %vm426, %v2467, %v3014
      %3019 = vrot.lane.b32.xlu0 %v2427, 49
      %v3020 = vpop.permute.xlu0 %3019
      %3021 = vrot.lane.b32.xlu0 %v2428, 49
      %v3022 = vpop.permute.xlu0 %3021
      %3023 = vrot.lane.b32.xlu0 %v2429, 49
      %v3024 = vpop.permute.xlu0 %3023
      %3025 = vrot.lane.b32.xlu0 %v2430, 49
      %v3026 = vpop.permute.xlu0 %3025
      %3027 = vrot.lane.b32.xlu0 %v2431, 49
      %v3028 = vpop.permute.xlu0 %3027
      %3029 = vrot.lane.b32.xlu0 %v2432, 49
      %v3030 = vpop.permute.xlu0 %3029
      %3031 = vrot.lane.b32.xlu0 %v2433, 49
      %v3032 = vpop.permute.xlu0 %3031
      %3033 = vrot.lane.b32.xlu0 %v2434, 49
      %v3034 = vpop.permute.xlu0 %3033
      %3035 = vrot.lane.b32.xlu0 %v2435, 49
      %v3036 = vpop.permute.xlu0 %3035
      %v3037 = vsel %vm1053, %v3020, %v3022
      %v3038 = vsel %vm1053, %v3022, %v3024
      %v3039 = vsel %vm1053, %v3024, %v3026
      %v3040 = vsel %vm1053, %v3026, %v3028
      %v3041 = vsel %vm1053, %v3028, %v3030
      %v3042 = vsel %vm1053, %v3030, %v3032
      %v3043 = vsel %vm1053, %v3032, %v3034
      %v3044 = vsel %vm1053, %v3034, %v3036
      %v3053 = vrot.slane %v2435, 4
      %3054 = vrot.lane.b32.xlu0 %v2445, 48
      %v3055 = vpop.permute.xlu0 %3054
      %3056 = vrot.lane.b32.xlu0 %v2446, 48
      %v3057 = vpop.permute.xlu0 %3056
      %3058 = vrot.lane.b32.xlu0 %v2447, 48
      %v3059 = vpop.permute.xlu0 %3058
      %3060 = vrot.lane.b32.xlu0 %v2448, 48
      %v3061 = vpop.permute.xlu0 %3060
      %3062 = vrot.lane.b32.xlu0 %v2449, 48
      %v3063 = vpop.permute.xlu0 %3062
      %3064 = vrot.lane.b32.xlu0 %v2450, 48
      %v3065 = vpop.permute.xlu0 %3064
      %3066 = vrot.lane.b32.xlu0 %v2451, 48
      %v3067 = vpop.permute.xlu0 %3066
      %3068 = vrot.lane.b32.xlu0 %v2515, 48
      %v3069 = vpop.permute.xlu0 %3068
      %3070 = vrot.lane.b32.xlu0 %v3053, 48
      %v3071 = vpop.permute.xlu0 %3070
      %v3072 = vsel %vm1089, %v3055, %v3057
      %v3073 = vsel %vm1089, %v3057, %v3059
      %v3074 = vsel %vm1089, %v3059, %v3061
      %v3075 = vsel %vm1089, %v3061, %v3063
      %v3076 = vsel %vm1089, %v3063, %v3065
      %v3077 = vsel %vm1089, %v3065, %v3067
      %v3078 = vsel %vm1089, %v3067, %v3069
      %v3079 = vsel %vm1089, %v3069, %v3071
      %3088 = vrot.lane.b32.xlu0 %v2427, 47
      %v3089 = vpop.permute.xlu0 %3088
      %3090 = vrot.lane.b32.xlu0 %v2428, 47
      %v3091 = vpop.permute.xlu0 %3090
      %3092 = vrot.lane.b32.xlu0 %v2429, 47
      %v3093 = vpop.permute.xlu0 %3092
      %3094 = vrot.lane.b32.xlu0 %v2430, 47
      %v3095 = vpop.permute.xlu0 %3094
      %3096 = vrot.lane.b32.xlu0 %v2431, 47
      %v3097 = vpop.permute.xlu0 %3096
      %3098 = vrot.lane.b32.xlu0 %v2432, 47
      %v3099 = vpop.permute.xlu0 %3098
      %3100 = vrot.lane.b32.xlu0 %v2433, 47
      %v3101 = vpop.permute.xlu0 %3100
      %3102 = vrot.lane.b32.xlu0 %v2434, 47
      %v3103 = vpop.permute.xlu0 %3102
      %3104 = vrot.lane.b32.xlu0 %v2435, 47
      %v3105 = vpop.permute.xlu0 %3104
      %v3106 = vsel %vm1124, %v3089, %v3091
      %v3107 = vsel %vm1124, %v3091, %v3093
      %v3108 = vsel %vm1124, %v3093, %v3095
      %v3109 = vsel %vm1124, %v3095, %v3097
      %v3110 = vsel %vm1124, %v3097, %v3099
      %v3111 = vsel %vm1124, %v3099, %v3101
      %v3112 = vsel %vm1124, %v3101, %v3103
      %v3113 = vsel %vm1124, %v3103, %v3105
      %3122 = vrot.lane.b32.xlu0 %v2445, 39
      %v3123 = vpop.permute.xlu0 %3122
      %3124 = vrot.lane.b32.xlu0 %v2446, 39
      %v3125 = vpop.permute.xlu0 %3124
      %3126 = vrot.lane.b32.xlu0 %v2447, 39
      %v3127 = vpop.permute.xlu0 %3126
      %3128 = vrot.lane.b32.xlu0 %v2448, 39
      %v3129 = vpop.permute.xlu0 %3128
      %3130 = vrot.lane.b32.xlu0 %v2449, 39
      %v3131 = vpop.permute.xlu0 %3130
      %3132 = vrot.lane.b32.xlu0 %v2450, 39
      %v3133 = vpop.permute.xlu0 %3132
      %3134 = vrot.lane.b32.xlu0 %v2451, 39
      %v3135 = vpop.permute.xlu0 %3134
      %3136 = vrot.lane.b32.xlu0 %v2515, 39
      %v3137 = vpop.permute.xlu0 %3136
      %3138 = vrot.lane.b32.xlu0 %v3053, 39
      %v3139 = vpop.permute.xlu0 %3138
      %v3140 = vsel %vm1159, %v3123, %v3125
      %v3141 = vsel %vm1159, %v3125, %v3127
      %v3142 = vsel %vm1159, %v3127, %v3129
      %v3143 = vsel %vm1159, %v3129, %v3131
      %v3144 = vsel %vm1159, %v3131, %v3133
      %v3145 = vsel %vm1159, %v3133, %v3135
      %v3146 = vsel %vm1159, %v3135, %v3137
      %v3147 = vsel %vm1159, %v3137, %v3139
      %3156 = vrot.lane.b32.xlu0 %v2427, 38
      %v3157 = vpop.permute.xlu0 %3156
      %3158 = vrot.lane.b32.xlu0 %v2428, 38
      %v3159 = vpop.permute.xlu0 %3158
      %3160 = vrot.lane.b32.xlu0 %v2429, 38
      %v3161 = vpop.permute.xlu0 %3160
      %3162 = vrot.lane.b32.xlu0 %v2430, 38
      %v3163 = vpop.permute.xlu0 %3162
      %3164 = vrot.lane.b32.xlu0 %v2431, 38
      %v3165 = vpop.permute.xlu0 %3164
      %3166 = vrot.lane.b32.xlu0 %v2432, 38
      %v3167 = vpop.permute.xlu0 %3166
      %3168 = vrot.lane.b32.xlu0 %v2433, 38
      %v3169 = vpop.permute.xlu0 %3168
      %3170 = vrot.lane.b32.xlu0 %v2434, 38
      %v3171 = vpop.permute.xlu0 %3170
      %3172 = vrot.lane.b32.xlu0 %v2435, 38
      %v3173 = vpop.permute.xlu0 %3172
      %v3174 = vsel %vm1194, %v3157, %v3159
      %v3175 = vsel %vm1194, %v3159, %v3161
      %v3176 = vsel %vm1194, %v3161, %v3163
      %v3177 = vsel %vm1194, %v3163, %v3165
      %v3178 = vsel %vm1194, %v3165, %v3167
      %v3179 = vsel %vm1194, %v3167, %v3169
      %v3180 = vsel %vm1194, %v3169, %v3171
      %v3181 = vsel %vm1194, %v3171, %v3173
      %3190 = vrot.lane.b32.xlu0 %v2445, 37
      %v3191 = vpop.permute.xlu0 %3190
      %3192 = vrot.lane.b32.xlu0 %v2446, 37
      %v3193 = vpop.permute.xlu0 %3192
      %3194 = vrot.lane.b32.xlu0 %v2447, 37
      %v3195 = vpop.permute.xlu0 %3194
      %3196 = vrot.lane.b32.xlu0 %v2448, 37
      %v3197 = vpop.permute.xlu0 %3196
      %3198 = vrot.lane.b32.xlu0 %v2449, 37
      %v3199 = vpop.permute.xlu0 %3198
      %3200 = vrot.lane.b32.xlu0 %v2450, 37
      %v3201 = vpop.permute.xlu0 %3200
      %3202 = vrot.lane.b32.xlu0 %v2451, 37
      %v3203 = vpop.permute.xlu0 %3202
      %3204 = vrot.lane.b32.xlu0 %v2515, 37
      %v3205 = vpop.permute.xlu0 %3204
      %3206 = vrot.lane.b32.xlu0 %v3053, 37
      %v3207 = vpop.permute.xlu0 %3206
      %v3208 = vsel %vm1229, %v3191, %v3193
      %v3209 = vsel %vm1229, %v3193, %v3195
      %v3210 = vsel %vm1229, %v3195, %v3197
      %v3211 = vsel %vm1229, %v3197, %v3199
      %v3212 = vsel %vm1229, %v3199, %v3201
      %v3213 = vsel %vm1229, %v3201, %v3203
      %v3214 = vsel %vm1229, %v3203, %v3205
      %v3215 = vsel %vm1229, %v3205, %v3207
      %3224 = vrot.lane.b32.xlu0 %v2427, 29
      %v3225 = vpop.permute.xlu0 %3224
      %3226 = vrot.lane.b32.xlu0 %v2428, 29
      %v3227 = vpop.permute.xlu0 %3226
      %3228 = vrot.lane.b32.xlu0 %v2429, 29
      %v3229 = vpop.permute.xlu0 %3228
      %3230 = vrot.lane.b32.xlu0 %v2430, 29
      %v3231 = vpop.permute.xlu0 %3230
      %3232 = vrot.lane.b32.xlu0 %v2431, 29
      %v3233 = vpop.permute.xlu0 %3232
      %3234 = vrot.lane.b32.xlu0 %v2432, 29
      %v3235 = vpop.permute.xlu0 %3234
      %3236 = vrot.lane.b32.xlu0 %v2433, 29
      %v3237 = vpop.permute.xlu0 %3236
      %3238 = vrot.lane.b32.xlu0 %v2434, 29
      %v3239 = vpop.permute.xlu0 %3238
      %3240 = vrot.lane.b32.xlu0 %v2435, 29
      %v3241 = vpop.permute.xlu0 %3240
      %v3242 = vsel %vm1264, %v3225, %v3227
      %v3243 = vsel %vm1264, %v3227, %v3229
      %v3244 = vsel %vm1264, %v3229, %v3231
      %v3245 = vsel %vm1264, %v3231, %v3233
      %v3246 = vsel %vm1264, %v3233, %v3235
      %v3247 = vsel %vm1264, %v3235, %v3237
      %v3248 = vsel %vm1264, %v3237, %v3239
      %v3249 = vsel %vm1264, %v3239, %v3241
      %3258 = vrot.lane.b32.xlu0 %v3053, 28
      %v3259 = vpop.permute.xlu0 %3258
      %v3260 = vsel %vm704, %v2737, %v3259
      %3262 = vrot.lane.b32.xlu0 %v2435, 27
      %v3263 = vpop.permute.xlu0 %3262
      %v3264 = vsel %vm739, %v2771, %v3263
      %v3265 = vsel %vm934, %v2433, %v3015
      %v3266 = vsel %vm934, %v2434, %v3014
      %v3267 = vsel %vm934, %v3037, %v3072
      %v3268 = vsel %vm934, %v3038, %v3073
      %v3269 = vsel %vm934, %v3039, %v3074
      %v3270 = vsel %vm934, %v3040, %v3075
      %v3271 = vsel %vm934, %v3041, %v3076
      %v3272 = vsel %vm934, %v3042, %v3077
      %v3273 = vsel %vm934, %v3043, %v3078
      %v3274 = vsel %vm934, %v3044, %v3079
      %v3275 = vsel %vm934, %v3106, %v3140
      %v3276 = vsel %vm934, %v3107, %v3141
      %v3277 = vsel %vm934, %v3108, %v3142
      %v3278 = vsel %vm934, %v3109, %v3143
      %v3279 = vsel %vm934, %v3110, %v3144
      %v3280 = vsel %vm934, %v3111, %v3145
      %v3281 = vsel %vm934, %v3112, %v3146
      %v3282 = vsel %vm934, %v3113, %v3147
      %v3283 = vsel %vm934, %v3174, %v3208
      %v3284 = vsel %vm934, %v3175, %v3209
      %v3285 = vsel %vm934, %v3176, %v3210
      %v3286 = vsel %vm934, %v3177, %v3211
      %v3287 = vsel %vm934, %v3178, %v3212
      %v3288 = vsel %vm934, %v3179, %v3213
      %v3289 = vsel %vm934, %v3180, %v3214
      %v3290 = vsel %vm934, %v3181, %v3215
      %v3291 = vsel %vm934, %v3242, %v2739
      %v3292 = vsel %vm934, %v3243, %v2740
      %v3293 = vsel %vm934, %v3244, %v2741
      %v3294 = vsel %vm934, %v3245, %v2742
      %v3295 = vsel %vm934, %v3246, %v2743
      %v3296 = vsel %vm934, %v3247, %v2744
      %v3297 = vsel %vm934, %v3248, %v2745
      %v3298 = vsel %vm934, %v3249, %v3260
      %3339 = vrot.lane.b32.xlu0 %v2950, 7
      %v3340 = vpop.permute.xlu0 %3339
      %3341 = vrot.lane.b32.xlu0 %v2951, 7
      %v3342 = vpop.permute.xlu0 %3341
      %3343 = vrot.lane.b32.xlu0 %v2952, 7
      %v3344 = vpop.permute.xlu0 %3343
      %3345 = vrot.lane.b32.xlu0 %v2953, 7
      %v3346 = vpop.permute.xlu0 %3345
      %3347 = vrot.lane.b32.xlu0 %v2954, 7
      %v3348 = vpop.permute.xlu0 %3347
      %3349 = vrot.lane.b32.xlu0 %v2955, 7
      %v3350 = vpop.permute.xlu0 %3349
      %3351 = vrot.lane.b32.xlu0 %v3265, 7
      %v3352 = vpop.permute.xlu0 %3351
      %3353 = vrot.lane.b32.xlu0 %v3266, 7
      %v3354 = vpop.permute.xlu0 %3353
      %3355 = vrot.lane.b32.xlu0 %v3267, 7
      %v3356 = vpop.permute.xlu0 %3355
      %3357 = vrot.lane.b32.xlu0 %v3268, 7
      %v3358 = vpop.permute.xlu0 %3357
      %3359 = vrot.lane.b32.xlu0 %v3269, 7
      %v3360 = vpop.permute.xlu0 %3359
      %3361 = vrot.lane.b32.xlu0 %v3270, 7
      %v3362 = vpop.permute.xlu0 %3361
      %3363 = vrot.lane.b32.xlu0 %v3271, 7
      %v3364 = vpop.permute.xlu0 %3363
      %3365 = vrot.lane.b32.xlu0 %v3272, 7
      %v3366 = vpop.permute.xlu0 %3365
      %3367 = vrot.lane.b32.xlu0 %v3273, 7
      %v3368 = vpop.permute.xlu0 %3367
      %3369 = vrot.lane.b32.xlu0 %v3274, 7
      %v3370 = vpop.permute.xlu0 %3369
      %3371 = vrot.lane.b32.xlu0 %v3275, 7
      %v3372 = vpop.permute.xlu0 %3371
      %3373 = vrot.lane.b32.xlu0 %v3276, 7
      %v3374 = vpop.permute.xlu0 %3373
      %3375 = vrot.lane.b32.xlu0 %v3277, 7
      %v3376 = vpop.permute.xlu0 %3375
      %3377 = vrot.lane.b32.xlu0 %v3278, 7
      %v3378 = vpop.permute.xlu0 %3377
      %3379 = vrot.lane.b32.xlu0 %v3279, 7
      %v3380 = vpop.permute.xlu0 %3379
      %3381 = vrot.lane.b32.xlu0 %v3280, 7
      %v3382 = vpop.permute.xlu0 %3381
      %3383 = vrot.lane.b32.xlu0 %v3281, 7
      %v3384 = vpop.permute.xlu0 %3383
      %3385 = vrot.lane.b32.xlu0 %v3282, 7
      %v3386 = vpop.permute.xlu0 %3385
      %3387 = vrot.lane.b32.xlu0 %v3283, 7
      %v3388 = vpop.permute.xlu0 %3387
      %3389 = vrot.lane.b32.xlu0 %v3284, 7
      %v3390 = vpop.permute.xlu0 %3389
      %3391 = vrot.lane.b32.xlu0 %v3285, 7
      %v3392 = vpop.permute.xlu0 %3391
      %3393 = vrot.lane.b32.xlu0 %v3286, 7
      %v3394 = vpop.permute.xlu0 %3393
      %3395 = vrot.lane.b32.xlu0 %v3287, 7
      %v3396 = vpop.permute.xlu0 %3395
      %3397 = vrot.lane.b32.xlu0 %v3288, 7
      %v3398 = vpop.permute.xlu0 %3397
      %3399 = vrot.lane.b32.xlu0 %v3289, 7
      %v3400 = vpop.permute.xlu0 %3399
      %3401 = vrot.lane.b32.xlu0 %v3290, 7
      %v3402 = vpop.permute.xlu0 %3401
      %3403 = vrot.lane.b32.xlu0 %v3291, 7
      %v3404 = vpop.permute.xlu0 %3403
      %3405 = vrot.lane.b32.xlu0 %v3292, 7
      %v3406 = vpop.permute.xlu0 %3405
      %3407 = vrot.lane.b32.xlu0 %v3293, 7
      %v3408 = vpop.permute.xlu0 %3407
      %3409 = vrot.lane.b32.xlu0 %v3294, 7
      %v3410 = vpop.permute.xlu0 %3409
      %3411 = vrot.lane.b32.xlu0 %v3295, 7
      %v3412 = vpop.permute.xlu0 %3411
      %3413 = vrot.lane.b32.xlu0 %v3296, 7
      %v3414 = vpop.permute.xlu0 %3413
      %3415 = vrot.lane.b32.xlu0 %v3297, 7
      %v3416 = vpop.permute.xlu0 %3415
      %3417 = vrot.lane.b32.xlu0 %v3298, 7
      %v3418 = vpop.permute.xlu0 %3417
      %3419 = vrot.lane.b32.xlu0 %v2773, 7
      %v3420 = vpop.permute.xlu0 %3419
      %3421 = vrot.lane.b32.xlu0 %v2774, 7
      %v3422 = vpop.permute.xlu0 %3421
      %3423 = vrot.lane.b32.xlu0 %v2775, 7
      %v3424 = vpop.permute.xlu0 %3423
      %3425 = vrot.lane.b32.xlu0 %v2776, 7
      %v3426 = vpop.permute.xlu0 %3425
      %3427 = vrot.lane.b32.xlu0 %v2777, 7
      %v3428 = vpop.permute.xlu0 %3427
      %3429 = vrot.lane.b32.xlu0 %v2778, 7
      %v3430 = vpop.permute.xlu0 %3429
      %3431 = vrot.lane.b32.xlu0 %v2779, 7
      %v3432 = vpop.permute.xlu0 %3431
      %3433 = vrot.lane.b32.xlu0 %v3264, 7
      %v3434 = vpop.permute.xlu0 %3433
      %v3435 = vsel %vm1517, %v3340, %v3342
      %v3436 = vsel %vm1517, %v3342, %v3344
      %v3437 = vsel %vm1517, %v3344, %v3346
      %v3438 = vsel %vm1517, %v3346, %v3348
      %v3439 = vsel %vm1517, %v3348, %v3350
      %v3440 = vsel %vm1517, %v3350, %v3352
      %v3441 = vsel %vm1517, %v3352, %v3354
      %v3442 = vsel %vm1517, %v3356, %v3358
      %v3443 = vsel %vm1517, %v3358, %v3360
      %v3444 = vsel %vm1517, %v3360, %v3362
      %v3445 = vsel %vm1517, %v3362, %v3364
      %v3446 = vsel %vm1517, %v3364, %v3366
      %v3447 = vsel %vm1517, %v3366, %v3368
      %v3448 = vsel %vm1517, %v3368, %v3370
      %v3449 = vsel %vm1517, %v3372, %v3374
      %v3450 = vsel %vm1517, %v3374, %v3376
      %v3451 = vsel %vm1517, %v3376, %v3378
      %v3452 = vsel %vm1517, %v3378, %v3380
      %v3453 = vsel %vm1517, %v3380, %v3382
      %v3454 = vsel %vm1517, %v3382, %v3384
      %v3455 = vsel %vm1517, %v3384, %v3386
      %v3456 = vsel %vm1517, %v3388, %v3390
      %v3457 = vsel %vm1517, %v3390, %v3392
      %v3458 = vsel %vm1517, %v3392, %v3394
      %v3459 = vsel %vm1517, %v3394, %v3396
      %v3460 = vsel %vm1517, %v3396, %v3398
      %v3461 = vsel %vm1517, %v3398, %v3400
      %v3462 = vsel %vm1517, %v3400, %v3402
      %v3463 = vsel %vm1517, %v3404, %v3406
      %v3464 = vsel %vm1517, %v3406, %v3408
      %v3465 = vsel %vm1517, %v3408, %v3410
      %v3466 = vsel %vm1517, %v3410, %v3412
      %v3467 = vsel %vm1517, %v3412, %v3414
      %v3468 = vsel %vm1517, %v3414, %v3416
      %v3469 = vsel %vm1517, %v3416, %v3418
      %v3470 = vsel %vm1517, %v3420, %v3422
      %v3471 = vsel %vm1517, %v3422, %v3424
      %v3472 = vsel %vm1517, %v3424, %v3426
      %v3473 = vsel %vm1517, %v3426, %v3428
      %v3474 = vsel %vm1517, %v3428, %v3430
      %v3475 = vsel %vm1517, %v3430, %v3432
      %v3476 = vsel %vm1517, %v3432, %v3434
      %v3477 = vld [vmem:[%s4] sm:$0xf]
      %v3478 = vld [vmem:[%s5] sm:$0xf]
      %3480 = vset.pattern.permute.xlu0 0
      %3481 = vperm.xlu0 %3480, %v3478
      %v3482 = vpop.permute.xlu0 %3481
      %3542 = vrot.lane.b32.xlu0 %v2949, 111
      %v3543 = vpop.permute.xlu0 %3542
      %3544 = vrot.lane.b32.xlu0 %v2950, 111
      %v3545 = vpop.permute.xlu0 %3544
      %3546 = vrot.lane.b32.xlu0 %v2951, 111
      %v3547 = vpop.permute.xlu0 %3546
      %3548 = vrot.lane.b32.xlu0 %v2952, 111
      %v3549 = vpop.permute.xlu0 %3548
      %3550 = vrot.lane.b32.xlu0 %v2953, 111
      %v3551 = vpop.permute.xlu0 %3550
      %3552 = vrot.lane.b32.xlu0 %v2954, 111
      %v3553 = vpop.permute.xlu0 %3552
      %3554 = vrot.lane.b32.xlu0 %v2955, 111
      %v3555 = vpop.permute.xlu0 %3554
      %3556 = vrot.lane.b32.xlu0 %v2956, 111
      %v3557 = vpop.permute.xlu0 %3556
      %3558 = vrot.lane.b32.xlu0 %v2957, 111
      %v3559 = vpop.permute.xlu0 %3558
      %3560 = vrot.lane.b32.xlu0 %v2958, 111
      %v3561 = vpop.permute.xlu0 %3560
      %3562 = vrot.lane.b32.xlu0 %v2959, 111
      %v3563 = vpop.permute.xlu0 %3562
      %3564 = vrot.lane.b32.xlu0 %v2960, 111
      %v3565 = vpop.permute.xlu0 %3564
      %3566 = vrot.lane.b32.xlu0 %v2961, 111
      %v3567 = vpop.permute.xlu0 %3566
      %3568 = vrot.lane.b32.xlu0 %v2962, 111
      %v3569 = vpop.permute.xlu0 %3568
      %3570 = vrot.lane.b32.xlu0 %v2963, 111
      %v3571 = vpop.permute.xlu0 %3570
      %3572 = vrot.lane.b32.xlu0 %v2964, 111
      %v3573 = vpop.permute.xlu0 %3572
      %3574 = vrot.lane.b32.xlu0 %v2965, 111
      %v3575 = vpop.permute.xlu0 %3574
      %3576 = vrot.lane.b32.xlu0 %v2966, 111
      %v3577 = vpop.permute.xlu0 %3576
      %3578 = vrot.lane.b32.xlu0 %v2967, 111
      %v3579 = vpop.permute.xlu0 %3578
      %3580 = vrot.lane.b32.xlu0 %v2968, 111
      %v3581 = vpop.permute.xlu0 %3580
      %3582 = vrot.lane.b32.xlu0 %v2969, 111
      %v3583 = vpop.permute.xlu0 %3582
      %3584 = vrot.lane.b32.xlu0 %v2970, 111
      %v3585 = vpop.permute.xlu0 %3584
      %3586 = vrot.lane.b32.xlu0 %v2971, 111
      %v3587 = vpop.permute.xlu0 %3586
      %3588 = vrot.lane.b32.xlu0 %v2972, 111
      %v3589 = vpop.permute.xlu0 %3588
      %3590 = vrot.lane.b32.xlu0 %v2973, 111
      %v3591 = vpop.permute.xlu0 %3590
      %3592 = vrot.lane.b32.xlu0 %v2974, 111
      %v3593 = vpop.permute.xlu0 %3592
      %3594 = vrot.lane.b32.xlu0 %v2975, 111
      %v3595 = vpop.permute.xlu0 %3594
      %3596 = vrot.lane.b32.xlu0 %v2976, 111
      %v3597 = vpop.permute.xlu0 %3596
      %3598 = vrot.lane.b32.xlu0 %v2977, 111
      %v3599 = vpop.permute.xlu0 %3598
      %3600 = vrot.lane.b32.xlu0 %v2978, 111
      %v3601 = vpop.permute.xlu0 %3600
      %3602 = vrot.lane.b32.xlu0 %v2979, 111
      %v3603 = vpop.permute.xlu0 %3602
      %3604 = vrot.lane.b32.xlu0 %v2980, 111
      %v3605 = vpop.permute.xlu0 %3604
      %3606 = vrot.lane.b32.xlu0 %v2981, 111
      %v3607 = vpop.permute.xlu0 %3606
      %3608 = vrot.lane.b32.xlu0 %v2982, 111
      %v3609 = vpop.permute.xlu0 %3608
      %3610 = vrot.lane.b32.xlu0 %v2983, 111
      %v3611 = vpop.permute.xlu0 %3610
      %3612 = vrot.lane.b32.xlu0 %v2984, 111
      %v3613 = vpop.permute.xlu0 %3612
      %3614 = vrot.lane.b32.xlu0 %v2985, 111
      %v3615 = vpop.permute.xlu0 %3614
      %3616 = vrot.lane.b32.xlu0 %v2986, 111
      %v3617 = vpop.permute.xlu0 %3616
      %3618 = vrot.lane.b32.xlu0 %v2987, 111
      %v3619 = vpop.permute.xlu0 %3618
      %3620 = vrot.lane.b32.xlu0 %v2988, 111
      %v3621 = vpop.permute.xlu0 %3620
      %3622 = vrot.lane.b32.xlu0 %v2989, 111
      %v3623 = vpop.permute.xlu0 %3622
      %3624 = vrot.lane.b32.xlu0 %v2990, 111
      %v3625 = vpop.permute.xlu0 %3624
      %3626 = vrot.lane.b32.xlu0 %v2991, 111
      %v3627 = vpop.permute.xlu0 %3626
      %3628 = vrot.lane.b32.xlu0 %v2992, 111
      %v3629 = vpop.permute.xlu0 %3628
      %3630 = vrot.lane.b32.xlu0 %v2993, 111
      %v3631 = vpop.permute.xlu0 %3630
      %3632 = vrot.lane.b32.xlu0 %v2994, 111
      %v3633 = vpop.permute.xlu0 %3632
      %3634 = vrot.lane.b32.xlu0 %v2995, 111
      %v3635 = vpop.permute.xlu0 %3634
      %3636 = vrot.lane.b32.xlu0 %v2996, 111
      %v3637 = vpop.permute.xlu0 %3636
      %3638 = vrot.lane.b32.xlu0 %v2997, 111
      %v3639 = vpop.permute.xlu0 %3638
      %3640 = vrot.lane.b32.xlu0 %v2998, 111
      %v3641 = vpop.permute.xlu0 %3640
      %3642 = vrot.lane.b32.xlu0 %v2999, 111
      %v3643 = vpop.permute.xlu0 %3642
      %3644 = vrot.lane.b32.xlu0 %v3000, 111
      %v3645 = vpop.permute.xlu0 %3644
      %3646 = vrot.lane.b32.xlu0 %v3001, 111
      %v3647 = vpop.permute.xlu0 %3646
      %3648 = vrot.lane.b32.xlu0 %v3002, 111
      %v3649 = vpop.permute.xlu0 %3648
      %3650 = vrot.lane.b32.xlu0 %v3003, 111
      %v3651 = vpop.permute.xlu0 %3650
      %3652 = vrot.lane.b32.xlu0 %v3004, 111
      %v3653 = vpop.permute.xlu0 %3652
      %3654 = vrot.lane.b32.xlu0 %v3005, 111
      %v3655 = vpop.permute.xlu0 %3654
      %3656 = vrot.lane.b32.xlu0 %v3006, 111
      %v3657 = vpop.permute.xlu0 %3656
      %3658 = vrot.lane.b32.xlu0 %v3007, 111
      %v3659 = vpop.permute.xlu0 %3658
      %3660 = vrot.lane.b32.xlu0 %v3008, 111
      %v3661 = vpop.permute.xlu0 %3660
      %3662 = vrot.lane.b32.xlu0 %v3009, 111
      %v3663 = vpop.permute.xlu0 %3662
      %3664 = vrot.lane.b32.xlu0 %v3010, 111
      %v3665 = vpop.permute.xlu0 %3664
      %3666 = vrot.lane.b32.xlu0 %v3011, 111
      %v3667 = vpop.permute.xlu0 %3666
      %3668 = vrot.lane.b32.xlu0 %v3012, 111
      %v3669 = vpop.permute.xlu0 %3668
      %3670 = vrot.lane.b32.xlu0 %v3340, 111
      %v3671 = vpop.permute.xlu0 %3670
      %3672 = vrot.lane.b32.xlu0 %v3435, 111
      %v3673 = vpop.permute.xlu0 %3672
      %3674 = vrot.lane.b32.xlu0 %v3436, 111
      %v3675 = vpop.permute.xlu0 %3674
      %3676 = vrot.lane.b32.xlu0 %v3437, 111
      %v3677 = vpop.permute.xlu0 %3676
      %3678 = vrot.lane.b32.xlu0 %v3438, 111
      %v3679 = vpop.permute.xlu0 %3678
      %3680 = vrot.lane.b32.xlu0 %v3439, 111
      %v3681 = vpop.permute.xlu0 %3680
      %3682 = vrot.lane.b32.xlu0 %v3440, 111
      %v3683 = vpop.permute.xlu0 %3682
      %3684 = vrot.lane.b32.xlu0 %v3441, 111
      %v3685 = vpop.permute.xlu0 %3684
      %3686 = vrot.lane.b32.xlu0 %v3356, 111
      %v3687 = vpop.permute.xlu0 %3686
      %3688 = vrot.lane.b32.xlu0 %v3442, 111
      %v3689 = vpop.permute.xlu0 %3688
      %3690 = vrot.lane.b32.xlu0 %v3443, 111
      %v3691 = vpop.permute.xlu0 %3690
      %3692 = vrot.lane.b32.xlu0 %v3444, 111
      %v3693 = vpop.permute.xlu0 %3692
      %3694 = vrot.lane.b32.xlu0 %v3445, 111
      %v3695 = vpop.permute.xlu0 %3694
      %3696 = vrot.lane.b32.xlu0 %v3446, 111
      %v3697 = vpop.permute.xlu0 %3696
      %3698 = vrot.lane.b32.xlu0 %v3447, 111
      %v3699 = vpop.permute.xlu0 %3698
      %3700 = vrot.lane.b32.xlu0 %v3448, 111
      %v3701 = vpop.permute.xlu0 %3700
      %3702 = vrot.lane.b32.xlu0 %v3372, 111
      %v3703 = vpop.permute.xlu0 %3702
      %3704 = vrot.lane.b32.xlu0 %v3449, 111
      %v3705 = vpop.permute.xlu0 %3704
      %3706 = vrot.lane.b32.xlu0 %v3450, 111
      %v3707 = vpop.permute.xlu0 %3706
      %3708 = vrot.lane.b32.xlu0 %v3451, 111
      %v3709 = vpop.permute.xlu0 %3708
      %3710 = vrot.lane.b32.xlu0 %v3452, 111
      %v3711 = vpop.permute.xlu0 %3710
      %3712 = vrot.lane.b32.xlu0 %v3453, 111
      %v3713 = vpop.permute.xlu0 %3712
      %3714 = vrot.lane.b32.xlu0 %v3454, 111
      %v3715 = vpop.permute.xlu0 %3714
      %3716 = vrot.lane.b32.xlu0 %v3455, 111
      %v3717 = vpop.permute.xlu0 %3716
      %3718 = vrot.lane.b32.xlu0 %v3388, 111
      %v3719 = vpop.permute.xlu0 %3718
      %3720 = vrot.lane.b32.xlu0 %v3456, 111
      %v3721 = vpop.permute.xlu0 %3720
      %3722 = vrot.lane.b32.xlu0 %v3457, 111
      %v3723 = vpop.permute.xlu0 %3722
      %3724 = vrot.lane.b32.xlu0 %v3458, 111
      %v3725 = vpop.permute.xlu0 %3724
      %3726 = vrot.lane.b32.xlu0 %v3459, 111
      %v3727 = vpop.permute.xlu0 %3726
      %3728 = vrot.lane.b32.xlu0 %v3460, 111
      %v3729 = vpop.permute.xlu0 %3728
      %3730 = vrot.lane.b32.xlu0 %v3461, 111
      %v3731 = vpop.permute.xlu0 %3730
      %3732 = vrot.lane.b32.xlu0 %v3462, 111
      %v3733 = vpop.permute.xlu0 %3732
      %3734 = vrot.lane.b32.xlu0 %v3404, 111
      %v3735 = vpop.permute.xlu0 %3734
      %3736 = vrot.lane.b32.xlu0 %v3463, 111
      %v3737 = vpop.permute.xlu0 %3736
      %3738 = vrot.lane.b32.xlu0 %v3464, 111
      %v3739 = vpop.permute.xlu0 %3738
      %3740 = vrot.lane.b32.xlu0 %v3465, 111
      %v3741 = vpop.permute.xlu0 %3740
      %3742 = vrot.lane.b32.xlu0 %v3466, 111
      %v3743 = vpop.permute.xlu0 %3742
      %3744 = vrot.lane.b32.xlu0 %v3467, 111
      %v3745 = vpop.permute.xlu0 %3744
      %3746 = vrot.lane.b32.xlu0 %v3468, 111
      %v3747 = vpop.permute.xlu0 %3746
      %3748 = vrot.lane.b32.xlu0 %v3469, 111
      %v3749 = vpop.permute.xlu0 %3748
      %3750 = vrot.lane.b32.xlu0 %v3420, 111
      %v3751 = vpop.permute.xlu0 %3750
      %3752 = vrot.lane.b32.xlu0 %v3470, 111
      %v3753 = vpop.permute.xlu0 %3752
      %3754 = vrot.lane.b32.xlu0 %v3471, 111
      %v3755 = vpop.permute.xlu0 %3754
      %3756 = vrot.lane.b32.xlu0 %v3472, 111
      %v3757 = vpop.permute.xlu0 %3756
      %3758 = vrot.lane.b32.xlu0 %v3473, 111
      %v3759 = vpop.permute.xlu0 %3758
      %3760 = vrot.lane.b32.xlu0 %v3474, 111
      %v3761 = vpop.permute.xlu0 %3760
      %3762 = vrot.lane.b32.xlu0 %v3475, 111
      %v3763 = vpop.permute.xlu0 %3762
      %3764 = vrot.lane.b32.xlu0 %v3476, 111
      %v3765 = vpop.permute.xlu0 %3764
      %v3766 = vsel %vm1855, %v3543, %v3545
      %v3767 = vsel %vm1855, %v3545, %v3547
      %v3768 = vsel %vm1855, %v3547, %v3549
      %v3769 = vsel %vm1855, %v3549, %v3551
      %v3770 = vsel %vm1855, %v3551, %v3553
      %v3771 = vsel %vm1855, %v3553, %v3555
      %v3772 = vsel %vm1855, %v3555, %v3557
      %v3773 = vsel %vm1855, %v3559, %v3561
      %v3774 = vsel %vm1855, %v3561, %v3563
      %v3775 = vsel %vm1855, %v3563, %v3565
      %v3776 = vsel %vm1855, %v3565, %v3567
      %v3777 = vsel %vm1855, %v3567, %v3569
      %v3778 = vsel %vm1855, %v3569, %v3571
      %v3779 = vsel %vm1855, %v3571, %v3573
      %v3780 = vsel %vm1855, %v3575, %v3577
      %v3781 = vsel %vm1855, %v3577, %v3579
      %v3782 = vsel %vm1855, %v3579, %v3581
      %v3783 = vsel %vm1855, %v3581, %v3583
      %v3784 = vsel %vm1855, %v3583, %v3585
      %v3785 = vsel %vm1855, %v3585, %v3587
      %v3786 = vsel %vm1855, %v3587, %v3589
      %v3787 = vsel %vm1855, %v3591, %v3593
      %v3788 = vsel %vm1855, %v3593, %v3595
      %v3789 = vsel %vm1855, %v3595, %v3597
      %v3790 = vsel %vm1855, %v3597, %v3599
      %v3791 = vsel %vm1855, %v3599, %v3601
      %v3792 = vsel %vm1855, %v3601, %v3603
      %v3793 = vsel %vm1855, %v3603, %v3605
      %v3794 = vsel %vm1855, %v3607, %v3609
      %v3795 = vsel %vm1855, %v3609, %v3611
      %v3796 = vsel %vm1855, %v3611, %v3613
      %v3797 = vsel %vm1855, %v3613, %v3615
      %v3798 = vsel %vm1855, %v3615, %v3617
      %v3799 = vsel %vm1855, %v3617, %v3619
      %v3800 = vsel %vm1855, %v3619, %v3621
      %v3801 = vsel %vm1855, %v3623, %v3625
      %v3802 = vsel %vm1855, %v3625, %v3627
      %v3803 = vsel %vm1855, %v3627, %v3629
      %v3804 = vsel %vm1855, %v3629, %v3631
      %v3805 = vsel %vm1855, %v3631, %v3633
      %v3806 = vsel %vm1855, %v3633, %v3635
      %v3807 = vsel %vm1855, %v3635, %v3637
      %v3808 = vsel %vm1855, %v3639, %v3641
      %v3809 = vsel %vm1855, %v3641, %v3643
      %v3810 = vsel %vm1855, %v3643, %v3645
      %v3811 = vsel %vm1855, %v3645, %v3647
      %v3812 = vsel %vm1855, %v3647, %v3649
      %v3813 = vsel %vm1855, %v3649, %v3651
      %v3814 = vsel %vm1855, %v3651, %v3653
      %v3815 = vsel %vm1855, %v3655, %v3657
      %v3816 = vsel %vm1855, %v3657, %v3659
      %v3817 = vsel %vm1855, %v3659, %v3661
      %v3818 = vsel %vm1855, %v3661, %v3663
      %v3819 = vsel %vm1855, %v3663, %v3665
      %v3820 = vsel %vm1855, %v3665, %v3667
      %v3821 = vsel %vm1855, %v3667, %v3669
      %v3822 = vsel %vm1855, %v3671, %v3673
      %v3823 = vsel %vm1855, %v3673, %v3675
      %v3824 = vsel %vm1855, %v3675, %v3677
      %v3825 = vsel %vm1855, %v3677, %v3679
      %v3826 = vsel %vm1855, %v3679, %v3681
      %v3827 = vsel %vm1855, %v3681, %v3683
      %v3828 = vsel %vm1855, %v3683, %v3685
      %v3829 = vsel %vm1855, %v3687, %v3689
      %v3830 = vsel %vm1855, %v3689, %v3691
      %v3831 = vsel %vm1855, %v3691, %v3693
      %v3832 = vsel %vm1855, %v3693, %v3695
      %v3833 = vsel %vm1855, %v3695, %v3697
      %v3834 = vsel %vm1855, %v3697, %v3699
      %v3835 = vsel %vm1855, %v3699, %v3701
      %v3836 = vsel %vm1855, %v3703, %v3705
      %v3837 = vsel %vm1855, %v3705, %v3707
      %v3838 = vsel %vm1855, %v3707, %v3709
      %v3839 = vsel %vm1855, %v3709, %v3711
      %v3840 = vsel %vm1855, %v3711, %v3713
      %v3841 = vsel %vm1855, %v3713, %v3715
      %v3842 = vsel %vm1855, %v3715, %v3717
      %v3843 = vsel %vm1855, %v3719, %v3721
      %v3844 = vsel %vm1855, %v3721, %v3723
      %v3845 = vsel %vm1855, %v3723, %v3725
      %v3846 = vsel %vm1855, %v3725, %v3727
      %v3847 = vsel %vm1855, %v3727, %v3729
      %v3848 = vsel %vm1855, %v3729, %v3731
      %v3849 = vsel %vm1855, %v3731, %v3733
      %v3850 = vsel %vm1855, %v3735, %v3737
      %v3851 = vsel %vm1855, %v3737, %v3739
      %v3852 = vsel %vm1855, %v3739, %v3741
      %v3853 = vsel %vm1855, %v3741, %v3743
      %v3854 = vsel %vm1855, %v3743, %v3745
      %v3855 = vsel %vm1855, %v3745, %v3747
      %v3856 = vsel %vm1855, %v3747, %v3749
      %v3857 = vsel %vm1855, %v3751, %v3753
      %v3858 = vsel %vm1855, %v3753, %v3755
      %v3859 = vsel %vm1855, %v3755, %v3757
      %v3860 = vsel %vm1855, %v3757, %v3759
      %v3861 = vsel %vm1855, %v3759, %v3761
      %v3862 = vsel %vm1855, %v3761, %v3763
      %v3863 = vsel %vm1855, %v3763, %v3765
      %v3969 = vsel %vm599, %v3477, 0
      %v3971 = vsel %vm934, %v3857, 0
      %v3973 = vsel %vm934, %v3858, 0
      %v3975 = vsel %vm934, %v3859, 0
      %v3977 = vsel %vm934, %v3860, 0
      %v3979 = vsel %vm934, %v3861, 0
      %v3981 = vsel %vm934, %v3862, 0
      %v3983 = vsel %vm934, %v3863, 0
      %v3985 = vsel %vm934, %v3765, 0
      %3987 = vmatprep.subr.mxu0 0.0
      %3988 = vmatpush1.msra.mxu0 0.0
      %3989 = vmatprep.subr.mxu0 0.0
      %3990 = vmatpush1.msra.mxu0 0.0
      %3991 = vmatprep.subr.mxu0 %v3973
      %3992 = vmatpush1.msra.mxu0 %v3971
      %3993 = vmatprep.subr.mxu0 %v3851
      %3994 = vmatpush1.msra.mxu0 %v3850
      %3995 = vmatprep.subr.mxu0 %v3844
      %3996 = vmatpush1.msra.mxu0 %v3843
      %3997 = vmatprep.subr.mxu0 %v3837
      %3998 = vmatpush1.msra.mxu0 %v3836
      %3999 = vmatprep.subr.mxu0 %v3830
      %4000 = vmatpush1.msra.mxu0 %v3829
      %4001 = vmatprep.subr.mxu0 %v3823
      %4002 = vmatpush1.msra.mxu0 %v3822
      %4003 = vmatprep.subr.mxu0 %v3816
      %4004 = vmatpush1.msra.mxu0 %v3815
      %4005 = vmatprep.subr.mxu0 %v3809
      %4006 = vmatpush1.msra.mxu0 %v3808
      %4007 = vmatprep.subr.mxu0 %v3802
      %4008 = vmatpush1.msra.mxu0 %v3801
      %4009 = vmatprep.subr.mxu0 %v3795
      %4010 = vmatpush1.msra.mxu0 %v3794
      %4011 = vmatprep.subr.mxu0 %v3788
      %4012 = vmatpush1.msra.mxu0 %v3787
      %4013 = vmatprep.subr.mxu0 %v3781
      %4014 = vmatpush1.msra.mxu0 %v3780
      %4015 = vmatprep.subr.mxu0 %v3774
      %4016 = vmatpush1.msra.mxu0 %v3773
      %4017 = vmatprep.subr.mxu0 %v3767
      %4018 = vmatpush1.msra.mxu0 %v3766
      %4019 = vmatprep.subr.mxu0 0.0
      %4020 = vmatpush2.msra.mxu0 0.0
      %4021 = vmatprep.subr.mxu0 0.0
      %4022 = vmatpush2.msra.mxu0 0.0
      %4023 = vmatprep.subr.mxu0 0.0
      %4024 = vmatpush2.msra.mxu0 0.0
      %4025 = vmatprep.subr.mxu0 0.0
      %4026 = vmatpush2.msra.mxu0 0.0
      %4027 = vmatprep.subr.mxu0 0.0
      %4028 = vmatpush2.msra.mxu0 0.0
      %4029 = vmatprep.subr.mxu0 0.0
      %4030 = vmatpush2.msra.mxu0 0.0
      %4031 = vmatprep.subr.mxu0 0.0
      %4032 = vmatpush2.msra.mxu0 0.0
      %4033 = vmatprep.subr.mxu0 0.0
      %4034 = vmatpush2.msra.mxu0 0.0
      %4035 = vmatprep.subr.mxu0 0.0
      %4036 = vmatpush2.msra.mxu0 0.0
      %4037 = vmatprep.subr.mxu0 0.0
      %4038 = vmatpush2.msra.mxu0 0.0
      %4039 = vmatprep.subr.mxu0 0.0
      %4040 = vmatpush2.msra.mxu0 0.0
      %4041 = vmatprep.subr.mxu0 0.0
      %4042 = vmatpush2.msra.mxu0 0.0
      %4043 = vmatprep.subr.mxu0 0.0
      %4044 = vmatpush2.msra.mxu0 0.0
      %4045 = vmatprep.subr.mxu0 0.0
      %4046 = vmatpush2.msra.mxu0 0.0
      %4047 = vmatprep.subr.mxu0 0.0
      %4048 = vmatpush2.msra.mxu0 0.0
      %4049 = vmatprep.subr.mxu0 0.0
      %4050 = vmatpush2.msra.mxu0 0.0
      %4051 = vmatprep.mubr.f32.mxu0 0.0
      %4052 = vmatmul.mubr.f32.gmra.mxu0 %v3969
      %v4053 = vpop.f32.mrf.mxu0
      %v4054 = vadd.f32 %v3482, %v4053
      %v4055 = vpop.f32.mrf.mxu0
      %v4056 = vadd.f32 %v3482, %v4055
      %4057 = vdwg.mxu0
      %4058 = vmatprep.subr.mxu0 0.0
      %4059 = vmatpush1.msra.mxu0 0.0
      %4060 = vmatprep.subr.mxu0 0.0
      %4061 = vmatpush1.msra.mxu0 0.0
      %4062 = vmatprep.subr.mxu0 %v3977
      %4063 = vmatpush1.msra.mxu0 %v3975
      %4064 = vmatprep.subr.mxu0 %v3853
      %4065 = vmatpush1.msra.mxu0 %v3852
      %4066 = vmatprep.subr.mxu0 %v3846
      %4067 = vmatpush1.msra.mxu0 %v3845
      %4068 = vmatprep.subr.mxu0 %v3839
      %4069 = vmatpush1.msra.mxu0 %v3838
      %4070 = vmatprep.subr.mxu0 %v3832
      %4071 = vmatpush1.msra.mxu0 %v3831
      %4072 = vmatprep.subr.mxu0 %v3825
      %4073 = vmatpush1.msra.mxu0 %v3824
      %4074 = vmatprep.subr.mxu0 %v3818
      %4075 = vmatpush1.msra.mxu0 %v3817
      %4076 = vmatprep.subr.mxu0 %v3811
      %4077 = vmatpush1.msra.mxu0 %v3810
      %4078 = vmatprep.subr.mxu0 %v3804
      %4079 = vmatpush1.msra.mxu0 %v3803
      %4080 = vmatprep.subr.mxu0 %v3797
      %4081 = vmatpush1.msra.mxu0 %v3796
      %4082 = vmatprep.subr.mxu0 %v3790
      %4083 = vmatpush1.msra.mxu0 %v3789
      %4084 = vmatprep.subr.mxu0 %v3783
      %4085 = vmatpush1.msra.mxu0 %v3782
      %4086 = vmatprep.subr.mxu0 %v3776
      %4087 = vmatpush1.msra.mxu0 %v3775
      %4088 = vmatprep.subr.mxu0 %v3769
      %4089 = vmatpush1.msra.mxu0 %v3768
      %4090 = vmatprep.subr.mxu0 0.0
      %4091 = vmatpush2.msra.mxu0 0.0
      %4092 = vmatprep.subr.mxu0 0.0
      %4093 = vmatpush2.msra.mxu0 0.0
      %4094 = vmatprep.subr.mxu0 0.0
      %4095 = vmatpush2.msra.mxu0 0.0
      %4096 = vmatprep.subr.mxu0 0.0
      %4097 = vmatpush2.msra.mxu0 0.0
      %4098 = vmatprep.subr.mxu0 0.0
      %4099 = vmatpush2.msra.mxu0 0.0
      %4100 = vmatprep.subr.mxu0 0.0
      %4101 = vmatpush2.msra.mxu0 0.0
      %4102 = vmatprep.subr.mxu0 0.0
      %4103 = vmatpush2.msra.mxu0 0.0
      %4104 = vmatprep.subr.mxu0 0.0
      %4105 = vmatpush2.msra.mxu0 0.0
      %4106 = vmatprep.subr.mxu0 0.0
      %4107 = vmatpush2.msra.mxu0 0.0
      %4108 = vmatprep.subr.mxu0 0.0
      %4109 = vmatpush2.msra.mxu0 0.0
      %4110 = vmatprep.subr.mxu0 0.0
      %4111 = vmatpush2.msra.mxu0 0.0
      %4112 = vmatprep.subr.mxu0 0.0
      %4113 = vmatpush2.msra.mxu0 0.0
      %4114 = vmatprep.subr.mxu0 0.0
      %4115 = vmatpush2.msra.mxu0 0.0
      %4116 = vmatprep.subr.mxu0 0.0
      %4117 = vmatpush2.msra.mxu0 0.0
      %4118 = vmatprep.subr.mxu0 0.0
      %4119 = vmatpush2.msra.mxu0 0.0
      %4120 = vmatprep.subr.mxu0 0.0
      %4121 = vmatpush2.msra.mxu0 0.0
      %4122 = vmatprep.mubr.f32.mxu0 0.0
      %4123 = vmatmul.mubr.f32.gmra.mxu0 %v3969
      %v4124 = vpop.f32.mrf.mxu0
      %v4125 = vadd.f32 %v3482, %v4124
      %v4126 = vpop.f32.mrf.mxu0
      %v4127 = vadd.f32 %v3482, %v4126
      %4128 = vdwg.mxu0
      %4129 = vmatprep.subr.mxu0 0.0
      %4130 = vmatpush1.msra.mxu0 0.0
      %4131 = vmatprep.subr.mxu0 0.0
      %4132 = vmatpush1.msra.mxu0 0.0
      %4133 = vmatprep.subr.mxu0 %v3981
      %4134 = vmatpush1.msra.mxu0 %v3979
      %4135 = vmatprep.subr.mxu0 %v3855
      %4136 = vmatpush1.msra.mxu0 %v3854
      %4137 = vmatprep.subr.mxu0 %v3848
      %4138 = vmatpush1.msra.mxu0 %v3847
      %4139 = vmatprep.subr.mxu0 %v3841
      %4140 = vmatpush1.msra.mxu0 %v3840
      %4141 = vmatprep.subr.mxu0 %v3834
      %4142 = vmatpush1.msra.mxu0 %v3833
      %4143 = vmatprep.subr.mxu0 %v3827
      %4144 = vmatpush1.msra.mxu0 %v3826
      %4145 = vmatprep.subr.mxu0 %v3820
      %4146 = vmatpush1.msra.mxu0 %v3819
      %4147 = vmatprep.subr.mxu0 %v3813
      %4148 = vmatpush1.msra.mxu0 %v3812
      %4149 = vmatprep.subr.mxu0 %v3806
      %4150 = vmatpush1.msra.mxu0 %v3805
      %4151 = vmatprep.subr.mxu0 %v3799
      %4152 = vmatpush1.msra.mxu0 %v3798
      %4153 = vmatprep.subr.mxu0 %v3792
      %4154 = vmatpush1.msra.mxu0 %v3791
      %4155 = vmatprep.subr.mxu0 %v3785
      %4156 = vmatpush1.msra.mxu0 %v3784
      %4157 = vmatprep.subr.mxu0 %v3778
      %4158 = vmatpush1.msra.mxu0 %v3777
      %4159 = vmatprep.subr.mxu0 %v3771
      %4160 = vmatpush1.msra.mxu0 %v3770
      %4161 = vmatprep.subr.mxu0 0.0
      %4162 = vmatpush2.msra.mxu0 0.0
      %4163 = vmatprep.subr.mxu0 0.0
      %4164 = vmatpush2.msra.mxu0 0.0
      %4165 = vmatprep.subr.mxu0 0.0
      %4166 = vmatpush2.msra.mxu0 0.0
      %4167 = vmatprep.subr.mxu0 0.0
      %4168 = vmatpush2.msra.mxu0 0.0
      %4169 = vmatprep.subr.mxu0 0.0
      %4170 = vmatpush2.msra.mxu0 0.0
      %4171 = vmatprep.subr.mxu0 0.0
      %4172 = vmatpush2.msra.mxu0 0.0
      %4173 = vmatprep.subr.mxu0 0.0
      %4174 = vmatpush2.msra.mxu0 0.0
      %4175 = vmatprep.subr.mxu0 0.0
      %4176 = vmatpush2.msra.mxu0 0.0
      %4177 = vmatprep.subr.mxu0 0.0
      %4178 = vmatpush2.msra.mxu0 0.0
      %4179 = vmatprep.subr.mxu0 0.0
      %4180 = vmatpush2.msra.mxu0 0.0
      %4181 = vmatprep.subr.mxu0 0.0
      %4182 = vmatpush2.msra.mxu0 0.0
      %4183 = vmatprep.subr.mxu0 0.0
      %4184 = vmatpush2.msra.mxu0 0.0
      %4185 = vmatprep.subr.mxu0 0.0
      %4186 = vmatpush2.msra.mxu0 0.0
      %4187 = vmatprep.subr.mxu0 0.0
      %4188 = vmatpush2.msra.mxu0 0.0
      %4189 = vmatprep.subr.mxu0 0.0
      %4190 = vmatpush2.msra.mxu0 0.0
      %4191 = vmatprep.subr.mxu0 0.0
      %4192 = vmatpush2.msra.mxu0 0.0
      %4193 = vmatprep.mubr.f32.mxu0 0.0
      %4194 = vmatmul.mubr.f32.gmra.mxu0 %v3969
      %v4195 = vpop.f32.mrf.mxu0
      %v4196 = vadd.f32 %v3482, %v4195
      %v4197 = vpop.f32.mrf.mxu0
      %v4198 = vadd.f32 %v3482, %v4197
      %4199 = vdwg.mxu0
      %4200 = vmatprep.subr.mxu0 0.0
      %4201 = vmatpush1.msra.mxu0 0.0
      %4202 = vmatprep.subr.mxu0 0.0
      %4203 = vmatpush1.msra.mxu0 0.0
      %4204 = vmatprep.subr.mxu0 %v3985
      %4205 = vmatpush1.msra.mxu0 %v3983
      %4206 = vmatprep.subr.mxu0 %v3749
      %4207 = vmatpush1.msra.mxu0 %v3856
      %4208 = vmatprep.subr.mxu0 %v3733
      %4209 = vmatpush1.msra.mxu0 %v3849
      %4210 = vmatprep.subr.mxu0 %v3717
      %4211 = vmatpush1.msra.mxu0 %v3842
      %4212 = vmatprep.subr.mxu0 %v3701
      %4213 = vmatpush1.msra.mxu0 %v3835
      %4214 = vmatprep.subr.mxu0 %v3685
      %4215 = vmatpush1.msra.mxu0 %v3828
      %4216 = vmatprep.subr.mxu0 %v3669
      %4217 = vmatpush1.msra.mxu0 %v3821
      %4218 = vmatprep.subr.mxu0 %v3653
      %4219 = vmatpush1.msra.mxu0 %v3814
      %4220 = vmatprep.subr.mxu0 %v3637
      %4221 = vmatpush1.msra.mxu0 %v3807
      %4222 = vmatprep.subr.mxu0 %v3621
      %4223 = vmatpush1.msra.mxu0 %v3800
      %4224 = vmatprep.subr.mxu0 %v3605
      %4225 = vmatpush1.msra.mxu0 %v3793
      %4226 = vmatprep.subr.mxu0 %v3589
      %4227 = vmatpush1.msra.mxu0 %v3786
      %4228 = vmatprep.subr.mxu0 %v3573
      %4229 = vmatpush1.msra.mxu0 %v3779
      %4230 = vmatprep.subr.mxu0 %v3557
      %4231 = vmatpush1.msra.mxu0 %v3772
      %4232 = vmatprep.subr.mxu0 0.0
      %4233 = vmatpush2.msra.mxu0 0.0
      %4234 = vmatprep.subr.mxu0 0.0
      %4235 = vmatpush2.msra.mxu0 0.0
      %4236 = vmatprep.subr.mxu0 0.0
      %4237 = vmatpush2.msra.mxu0 0.0
      %4238 = vmatprep.subr.mxu0 0.0
      %4239 = vmatpush2.msra.mxu0 0.0
      %4240 = vmatprep.subr.mxu0 0.0
      %4241 = vmatpush2.msra.mxu0 0.0
      %4242 = vmatprep.subr.mxu0 0.0
      %4243 = vmatpush2.msra.mxu0 0.0
      %4244 = vmatprep.subr.mxu0 0.0
      %4245 = vmatpush2.msra.mxu0 0.0
      %4246 = vmatprep.subr.mxu0 0.0
      %4247 = vmatpush2.msra.mxu0 0.0
      %4248 = vmatprep.subr.mxu0 0.0
      %4249 = vmatpush2.msra.mxu0 0.0
      %4250 = vmatprep.subr.mxu0 0.0
      %4251 = vmatpush2.msra.mxu0 0.0
      %4252 = vmatprep.subr.mxu0 0.0
      %4253 = vmatpush2.msra.mxu0 0.0
      %4254 = vmatprep.subr.mxu0 0.0
      %4255 = vmatpush2.msra.mxu0 0.0
      %4256 = vmatprep.subr.mxu0 0.0
      %4257 = vmatpush2.msra.mxu0 0.0
      %4258 = vmatprep.subr.mxu0 0.0
      %4259 = vmatpush2.msra.mxu0 0.0
      %4260 = vmatprep.subr.mxu0 0.0
      %4261 = vmatpush2.msra.mxu0 0.0
      %4262 = vmatprep.subr.mxu0 0.0
      %4263 = vmatpush2.msra.mxu0 0.0
      %4264 = vmatprep.mubr.f32.mxu0 0.0
      %4265 = vmatmul.mubr.f32.gmra.mxu0 %v3969
      %v4266 = vpop.f32.mrf.mxu0
      %v4267 = vadd.f32 %v3482, %v4266
      %v4268 = vpop.f32.mrf.mxu0
      %v4269 = vadd.f32 %v3482, %v4268
      %4270 = vdwg.mxu0
      %v4271 = vmul.f32 %v4054, 0.2
      %v4272 = vmul.f32 %v4056, 0.2
      %v4273 = vmul.f32 %v4125, 0.2
      %v4274 = vmul.f32 %v4127, 0.2
      %v4275 = vmul.f32 %v4196, 0.2
      %v4276 = vmul.f32 %v4198, 0.2
      %v4277 = vmul.f32 %v4267, 0.2
      %v4278 = vmul.f32 %v4269, 0.2
      %v4279 = vmax.f32 %v4054, %v4271
      %v4280 = vmax.f32 %v4056, %v4272
      %v4281 = vmax.f32 %v4125, %v4273
      %v4282 = vmax.f32 %v4127, %v4274
      %v4283 = vmax.f32 %v4196, %v4275
      %v4284 = vmax.f32 %v4198, %v4276
      %v4285 = vmax.f32 %v4267, %v4277
      %v4286 = vmax.f32 %v4269, %v4278
      %v4287 = vmul.f32 %v4279, %v311
      %v4288 = vmul.f32 %v4280, %v315
      %v4289 = vmul.f32 %v4281, %v319
      %v4290 = vmul.f32 %v4282, %v323
      %v4291 = vmul.f32 %v4283, %v327
      %v4292 = vmul.f32 %v4284, %v331
      %v4293 = vmul.f32 %v4285, %v335
      %v4294 = vmul.f32 %v4286, %v339
      %4295 = vst [vmem:[%s305 + $0x40] sm:$0xf] %v4287
      %4296 = vst [vmem:[%s305 + $0x48] sm:$0xf] %v4288
      %4297 = vst [vmem:[%s305 + $0x50] sm:$0xf] %v4289
      %4298 = vst [vmem:[%s305 + $0x58] sm:$0xf] %v4290
      %4299 = vst [vmem:[%s305 + $0x60] sm:$0xf] %v4291
      %4300 = vst [vmem:[%s305 + $0x68] sm:$0xf] %v4292
      %4301 = vst [vmem:[%s305 + $0x70] sm:$0xf] %v4293
      %4302 = vst.msk [vmem:[%s305 + $0x78] sm:$0xf] %vm382, %v4294
      %v4311 = vrot.slane %v4287, 4
      %v4312 = vrot.slane %v4288, 4
      %v4313 = vrot.slane %v4289, 4
      %v4314 = vrot.slane %v4290, 4
      %v4315 = vrot.slane %v4291, 4
      %v4316 = vrot.slane %v4292, 4
      %v4317 = vrot.slane %v4293, 4
      %v4318 = vrot.slane %v4294, 4
      %4327 = vst [vmem:[#allocation2 + $0x8] sm:$0xf0] %v4311
      %4328 = vst [vmem:[#allocation2 + $0x10] sm:$0xf0] %v4312
      %4329 = vst [vmem:[#allocation2 + $0x18] sm:$0xf0] %v4313
      %4330 = vst [vmem:[#allocation2 + $0x20] sm:$0xf0] %v4314
      %4331 = vst [vmem:[#allocation2 + $0x28] sm:$0xf0] %v4315
      %4332 = vst [vmem:[#allocation2 + $0x30] sm:$0xf0] %v4316
      %4333 = vst [vmem:[#allocation2 + $0x38] sm:$0xf0] %v4317
      %4334 = vst.msk [vmem:[#allocation2 + $0x40] sm:$0xf0] %vm2416, %v4318
      %v4335 = vld [vmem:[#allocation2] sm:$0xff]
      %v4336 = vld [vmem:[#allocation2 + $0x8] sm:$0xff]
      %v4337 = vld [vmem:[#allocation2 + $0x10] sm:$0xff]
      %v4338 = vld [vmem:[#allocation2 + $0x18] sm:$0xff]
      %v4339 = vld [vmem:[#allocation2 + $0x20] sm:$0xff]
      %v4340 = vld [vmem:[#allocation2 + $0x28] sm:$0xff]
      %v4341 = vld [vmem:[#allocation2 + $0x30] sm:$0xff]
      %v4342 = vld [vmem:[#allocation2 + $0x38] sm:$0xff]
      %v4343 = vld [vmem:[#allocation2 + $0x40] sm:$0xff]
      %v4344 = vld [vmem:[#allocation2 + $0x48] sm:$0xff]
      %4353 = vrot.lane.b32.xlu0 %v4335, 127
      %v4354 = vpop.permute.xlu0 %4353
      %4355 = vrot.lane.b32.xlu0 %v4336, 127
      %v4356 = vpop.permute.xlu0 %4355
      %4357 = vrot.lane.b32.xlu0 %v4337, 127
      %v4358 = vpop.permute.xlu0 %4357
      %4359 = vrot.lane.b32.xlu0 %v4338, 127
      %v4360 = vpop.permute.xlu0 %4359
      %4361 = vrot.lane.b32.xlu0 %v4339, 127
      %v4362 = vpop.permute.xlu0 %4361
      %4363 = vrot.lane.b32.xlu0 %v4340, 127
      %v4364 = vpop.permute.xlu0 %4363
      %4365 = vrot.lane.b32.xlu0 %v4341, 127
      %v4366 = vpop.permute.xlu0 %4365
      %4367 = vrot.lane.b32.xlu0 %v4342, 127
      %v4368 = vpop.permute.xlu0 %4367
      %v4369 = vsel %vm426, %v4354, %v4356
      %v4370 = vsel %vm426, %v4356, %v4358
      %v4371 = vsel %vm426, %v4358, %v4360
      %v4372 = vsel %vm426, %v4360, %v4362
      %v4373 = vsel %vm426, %v4362, %v4364
      %v4374 = vsel %vm426, %v4364, %v4366
      %v4375 = vsel %vm426, %v4366, %v4368
      %4376 = vrot.lane.b32.xlu0 %v4335, 126
      %v4377 = vpop.permute.xlu0 %4376
      %4378 = vrot.lane.b32.xlu0 %v4336, 126
      %v4379 = vpop.permute.xlu0 %4378
      %4380 = vrot.lane.b32.xlu0 %v4337, 126
      %v4381 = vpop.permute.xlu0 %4380
      %4382 = vrot.lane.b32.xlu0 %v4338, 126
      %v4383 = vpop.permute.xlu0 %4382
      %4384 = vrot.lane.b32.xlu0 %v4339, 126
      %v4385 = vpop.permute.xlu0 %4384
      %4386 = vrot.lane.b32.xlu0 %v4340, 126
      %v4387 = vpop.permute.xlu0 %4386
      %4388 = vrot.lane.b32.xlu0 %v4341, 126
      %v4389 = vpop.permute.xlu0 %4388
      %4390 = vrot.lane.b32.xlu0 %v4342, 126
      %v4391 = vpop.permute.xlu0 %4390
      %v4392 = vsel %vm458, %v4377, %v4379
      %v4393 = vsel %vm458, %v4379, %v4381
      %v4394 = vsel %vm458, %v4381, %v4383
      %v4395 = vsel %vm458, %v4383, %v4385
      %v4396 = vsel %vm458, %v4385, %v4387
      %v4397 = vsel %vm458, %v4387, %v4389
      %v4398 = vsel %vm458, %v4389, %v4391
      %4400 = vrot.lane.b32.xlu0 %v4335, 118
      %v4401 = vpop.permute.xlu0 %4400
      %4402 = vrot.lane.b32.xlu0 %v4336, 118
      %v4403 = vpop.permute.xlu0 %4402
      %4404 = vrot.lane.b32.xlu0 %v4337, 118
      %v4405 = vpop.permute.xlu0 %4404
      %4406 = vrot.lane.b32.xlu0 %v4338, 118
      %v4407 = vpop.permute.xlu0 %4406
      %4408 = vrot.lane.b32.xlu0 %v4339, 118
      %v4409 = vpop.permute.xlu0 %4408
      %4410 = vrot.lane.b32.xlu0 %v4340, 118
      %v4411 = vpop.permute.xlu0 %4410
      %4412 = vrot.lane.b32.xlu0 %v4341, 118
      %v4413 = vpop.permute.xlu0 %4412
      %4414 = vrot.lane.b32.xlu0 %v4342, 118
      %v4415 = vpop.permute.xlu0 %4414
      %4416 = vrot.lane.b32.xlu0 %v4343, 118
      %v4417 = vpop.permute.xlu0 %4416
      %v4418 = vsel %vm494, %v4401, %v4403
      %v4419 = vsel %vm494, %v4403, %v4405
      %v4420 = vsel %vm494, %v4405, %v4407
      %v4421 = vsel %vm494, %v4407, %v4409
      %v4422 = vsel %vm494, %v4409, %v4411
      %v4423 = vsel %vm494, %v4411, %v4413
      %v4424 = vsel %vm494, %v4413, %v4415
      %v4425 = vsel %vm494, %v4415, %v4417
      %4426 = vrot.lane.b32.xlu0 %v4335, 117
      %v4427 = vpop.permute.xlu0 %4426
      %4428 = vrot.lane.b32.xlu0 %v4336, 117
      %v4429 = vpop.permute.xlu0 %4428
      %4430 = vrot.lane.b32.xlu0 %v4337, 117
      %v4431 = vpop.permute.xlu0 %4430
      %4432 = vrot.lane.b32.xlu0 %v4338, 117
      %v4433 = vpop.permute.xlu0 %4432
      %4434 = vrot.lane.b32.xlu0 %v4339, 117
      %v4435 = vpop.permute.xlu0 %4434
      %4436 = vrot.lane.b32.xlu0 %v4340, 117
      %v4437 = vpop.permute.xlu0 %4436
      %4438 = vrot.lane.b32.xlu0 %v4341, 117
      %v4439 = vpop.permute.xlu0 %4438
      %4440 = vrot.lane.b32.xlu0 %v4342, 117
      %v4441 = vpop.permute.xlu0 %4440
      %4442 = vrot.lane.b32.xlu0 %v4343, 117
      %v4443 = vpop.permute.xlu0 %4442
      %v4444 = vsel %vm529, %v4427, %v4429
      %v4445 = vsel %vm529, %v4429, %v4431
      %v4446 = vsel %vm529, %v4431, %v4433
      %v4447 = vsel %vm529, %v4433, %v4435
      %v4448 = vsel %vm529, %v4435, %v4437
      %v4449 = vsel %vm529, %v4437, %v4439
      %v4450 = vsel %vm529, %v4439, %v4441
      %v4451 = vsel %vm529, %v4441, %v4443
      %4452 = vrot.lane.b32.xlu0 %v4335, 116
      %v4453 = vpop.permute.xlu0 %4452
      %4454 = vrot.lane.b32.xlu0 %v4336, 116
      %v4455 = vpop.permute.xlu0 %4454
      %4456 = vrot.lane.b32.xlu0 %v4337, 116
      %v4457 = vpop.permute.xlu0 %4456
      %4458 = vrot.lane.b32.xlu0 %v4338, 116
      %v4459 = vpop.permute.xlu0 %4458
      %4460 = vrot.lane.b32.xlu0 %v4339, 116
      %v4461 = vpop.permute.xlu0 %4460
      %4462 = vrot.lane.b32.xlu0 %v4340, 116
      %v4463 = vpop.permute.xlu0 %4462
      %4464 = vrot.lane.b32.xlu0 %v4341, 116
      %v4465 = vpop.permute.xlu0 %4464
      %4466 = vrot.lane.b32.xlu0 %v4342, 116
      %v4467 = vpop.permute.xlu0 %4466
      %4468 = vrot.lane.b32.xlu0 %v4343, 116
      %v4469 = vpop.permute.xlu0 %4468
      %v4470 = vsel %vm564, %v4453, %v4455
      %v4471 = vsel %vm564, %v4455, %v4457
      %v4472 = vsel %vm564, %v4457, %v4459
      %v4473 = vsel %vm564, %v4459, %v4461
      %v4474 = vsel %vm564, %v4461, %v4463
      %v4475 = vsel %vm564, %v4463, %v4465
      %v4476 = vsel %vm564, %v4465, %v4467
      %v4477 = vsel %vm564, %v4467, %v4469
      %4478 = vrot.lane.b32.xlu0 %v4335, 108
      %v4479 = vpop.permute.xlu0 %4478
      %4480 = vrot.lane.b32.xlu0 %v4336, 108
      %v4481 = vpop.permute.xlu0 %4480
      %4482 = vrot.lane.b32.xlu0 %v4337, 108
      %v4483 = vpop.permute.xlu0 %4482
      %4484 = vrot.lane.b32.xlu0 %v4338, 108
      %v4485 = vpop.permute.xlu0 %4484
      %4486 = vrot.lane.b32.xlu0 %v4339, 108
      %v4487 = vpop.permute.xlu0 %4486
      %4488 = vrot.lane.b32.xlu0 %v4340, 108
      %v4489 = vpop.permute.xlu0 %4488
      %4490 = vrot.lane.b32.xlu0 %v4341, 108
      %v4491 = vpop.permute.xlu0 %4490
      %4492 = vrot.lane.b32.xlu0 %v4342, 108
      %v4493 = vpop.permute.xlu0 %4492
      %4494 = vrot.lane.b32.xlu0 %v4343, 108
      %v4495 = vpop.permute.xlu0 %4494
      %v4496 = vsel %vm599, %v4479, %v4481
      %v4497 = vsel %vm599, %v4481, %v4483
      %v4498 = vsel %vm599, %v4483, %v4485
      %v4499 = vsel %vm599, %v4485, %v4487
      %v4500 = vsel %vm599, %v4487, %v4489
      %v4501 = vsel %vm599, %v4489, %v4491
      %v4502 = vsel %vm599, %v4491, %v4493
      %v4503 = vsel %vm599, %v4493, %v4495
      %4504 = vrot.lane.b32.xlu0 %v4335, 107
      %v4505 = vpop.permute.xlu0 %4504
      %4506 = vrot.lane.b32.xlu0 %v4336, 107
      %v4507 = vpop.permute.xlu0 %4506
      %4508 = vrot.lane.b32.xlu0 %v4337, 107
      %v4509 = vpop.permute.xlu0 %4508
      %4510 = vrot.lane.b32.xlu0 %v4338, 107
      %v4511 = vpop.permute.xlu0 %4510
      %4512 = vrot.lane.b32.xlu0 %v4339, 107
      %v4513 = vpop.permute.xlu0 %4512
      %4514 = vrot.lane.b32.xlu0 %v4340, 107
      %v4515 = vpop.permute.xlu0 %4514
      %4516 = vrot.lane.b32.xlu0 %v4341, 107
      %v4517 = vpop.permute.xlu0 %4516
      %4518 = vrot.lane.b32.xlu0 %v4342, 107
      %v4519 = vpop.permute.xlu0 %4518
      %4520 = vrot.lane.b32.xlu0 %v4343, 107
      %v4521 = vpop.permute.xlu0 %4520
      %v4522 = vsel %vm634, %v4505, %v4507
      %v4523 = vsel %vm634, %v4507, %v4509
      %v4524 = vsel %vm634, %v4509, %v4511
      %v4525 = vsel %vm634, %v4511, %v4513
      %v4526 = vsel %vm634, %v4513, %v4515
      %v4527 = vsel %vm634, %v4515, %v4517
      %v4528 = vsel %vm634, %v4517, %v4519
      %v4529 = vsel %vm634, %v4519, %v4521
      %4530 = vrot.lane.b32.xlu0 %v4335, 106
      %v4531 = vpop.permute.xlu0 %4530
      %4532 = vrot.lane.b32.xlu0 %v4336, 106
      %v4533 = vpop.permute.xlu0 %4532
      %4534 = vrot.lane.b32.xlu0 %v4337, 106
      %v4535 = vpop.permute.xlu0 %4534
      %4536 = vrot.lane.b32.xlu0 %v4338, 106
      %v4537 = vpop.permute.xlu0 %4536
      %4538 = vrot.lane.b32.xlu0 %v4339, 106
      %v4539 = vpop.permute.xlu0 %4538
      %4540 = vrot.lane.b32.xlu0 %v4340, 106
      %v4541 = vpop.permute.xlu0 %4540
      %4542 = vrot.lane.b32.xlu0 %v4341, 106
      %v4543 = vpop.permute.xlu0 %4542
      %4544 = vrot.lane.b32.xlu0 %v4342, 106
      %v4545 = vpop.permute.xlu0 %4544
      %4546 = vrot.lane.b32.xlu0 %v4343, 106
      %v4547 = vpop.permute.xlu0 %4546
      %v4548 = vsel %vm669, %v4531, %v4533
      %v4549 = vsel %vm669, %v4533, %v4535
      %v4550 = vsel %vm669, %v4535, %v4537
      %v4551 = vsel %vm669, %v4537, %v4539
      %v4552 = vsel %vm669, %v4539, %v4541
      %v4553 = vsel %vm669, %v4541, %v4543
      %v4554 = vsel %vm669, %v4543, %v4545
      %v4555 = vsel %vm669, %v4545, %v4547
      %4556 = vrot.lane.b32.xlu0 %v4335, 28
      %v4557 = vpop.permute.xlu0 %4556
      %4558 = vrot.lane.b32.xlu0 %v4336, 28
      %v4559 = vpop.permute.xlu0 %4558
      %4560 = vrot.lane.b32.xlu0 %v4337, 28
      %v4561 = vpop.permute.xlu0 %4560
      %4562 = vrot.lane.b32.xlu0 %v4338, 28
      %v4563 = vpop.permute.xlu0 %4562
      %4564 = vrot.lane.b32.xlu0 %v4339, 28
      %v4565 = vpop.permute.xlu0 %4564
      %4566 = vrot.lane.b32.xlu0 %v4340, 28
      %v4567 = vpop.permute.xlu0 %4566
      %4568 = vrot.lane.b32.xlu0 %v4341, 28
      %v4569 = vpop.permute.xlu0 %4568
      %4570 = vrot.lane.b32.xlu0 %v4342, 28
      %v4571 = vpop.permute.xlu0 %4570
      %4572 = vrot.lane.b32.xlu0 %v4343, 28
      %v4573 = vpop.permute.xlu0 %4572
      %v4574 = vsel %vm704, %v4557, %v4559
      %v4575 = vsel %vm704, %v4559, %v4561
      %v4576 = vsel %vm704, %v4561, %v4563
      %v4577 = vsel %vm704, %v4563, %v4565
      %v4578 = vsel %vm704, %v4565, %v4567
      %v4579 = vsel %vm704, %v4567, %v4569
      %v4580 = vsel %vm704, %v4569, %v4571
      %v4581 = vsel %vm704, %v4571, %v4573
      %4582 = vrot.lane.b32.xlu0 %v4335, 27
      %v4583 = vpop.permute.xlu0 %4582
      %4584 = vrot.lane.b32.xlu0 %v4336, 27
      %v4585 = vpop.permute.xlu0 %4584
      %4586 = vrot.lane.b32.xlu0 %v4337, 27
      %v4587 = vpop.permute.xlu0 %4586
      %4588 = vrot.lane.b32.xlu0 %v4338, 27
      %v4589 = vpop.permute.xlu0 %4588
      %4590 = vrot.lane.b32.xlu0 %v4339, 27
      %v4591 = vpop.permute.xlu0 %4590
      %4592 = vrot.lane.b32.xlu0 %v4340, 27
      %v4593 = vpop.permute.xlu0 %4592
      %4594 = vrot.lane.b32.xlu0 %v4341, 27
      %v4595 = vpop.permute.xlu0 %4594
      %4596 = vrot.lane.b32.xlu0 %v4342, 27
      %v4597 = vpop.permute.xlu0 %4596
      %4598 = vrot.lane.b32.xlu0 %v4343, 27
      %v4599 = vpop.permute.xlu0 %4598
      %v4600 = vsel %vm739, %v4583, %v4585
      %v4601 = vsel %vm739, %v4585, %v4587
      %v4602 = vsel %vm739, %v4587, %v4589
      %v4603 = vsel %vm739, %v4589, %v4591
      %v4604 = vsel %vm739, %v4591, %v4593
      %v4605 = vsel %vm739, %v4593, %v4595
      %v4606 = vsel %vm739, %v4595, %v4597
      %v4607 = vsel %vm739, %v4597, %v4599
      %4608 = vrot.lane.b32.xlu0 %v4335, 26
      %v4609 = vpop.permute.xlu0 %4608
      %4610 = vrot.lane.b32.xlu0 %v4336, 26
      %v4611 = vpop.permute.xlu0 %4610
      %4612 = vrot.lane.b32.xlu0 %v4337, 26
      %v4613 = vpop.permute.xlu0 %4612
      %4614 = vrot.lane.b32.xlu0 %v4338, 26
      %v4615 = vpop.permute.xlu0 %4614
      %4616 = vrot.lane.b32.xlu0 %v4339, 26
      %v4617 = vpop.permute.xlu0 %4616
      %4618 = vrot.lane.b32.xlu0 %v4340, 26
      %v4619 = vpop.permute.xlu0 %4618
      %4620 = vrot.lane.b32.xlu0 %v4341, 26
      %v4621 = vpop.permute.xlu0 %4620
      %4622 = vrot.lane.b32.xlu0 %v4342, 26
      %v4623 = vpop.permute.xlu0 %4622
      %4624 = vrot.lane.b32.xlu0 %v4343, 26
      %v4625 = vpop.permute.xlu0 %4624
      %v4626 = vsel %vm774, %v4609, %v4611
      %v4627 = vsel %vm774, %v4611, %v4613
      %v4628 = vsel %vm774, %v4613, %v4615
      %v4629 = vsel %vm774, %v4615, %v4617
      %v4630 = vsel %vm774, %v4617, %v4619
      %v4631 = vsel %vm774, %v4619, %v4621
      %v4632 = vsel %vm774, %v4621, %v4623
      %v4633 = vsel %vm774, %v4623, %v4625
      %4634 = vrot.lane.b32.xlu0 %v4335, 18
      %v4635 = vpop.permute.xlu0 %4634
      %4636 = vrot.lane.b32.xlu0 %v4336, 18
      %v4637 = vpop.permute.xlu0 %4636
      %4638 = vrot.lane.b32.xlu0 %v4337, 18
      %v4639 = vpop.permute.xlu0 %4638
      %4640 = vrot.lane.b32.xlu0 %v4338, 18
      %v4641 = vpop.permute.xlu0 %4640
      %4642 = vrot.lane.b32.xlu0 %v4339, 18
      %v4643 = vpop.permute.xlu0 %4642
      %4644 = vrot.lane.b32.xlu0 %v4340, 18
      %v4645 = vpop.permute.xlu0 %4644
      %4646 = vrot.lane.b32.xlu0 %v4341, 18
      %v4647 = vpop.permute.xlu0 %4646
      %4648 = vrot.lane.b32.xlu0 %v4342, 18
      %v4649 = vpop.permute.xlu0 %4648
      %4650 = vrot.lane.b32.xlu0 %v4343, 18
      %v4651 = vpop.permute.xlu0 %4650
      %v4652 = vsel %vm809, %v4635, %v4637
      %v4653 = vsel %vm809, %v4637, %v4639
      %v4654 = vsel %vm809, %v4639, %v4641
      %v4655 = vsel %vm809, %v4641, %v4643
      %v4656 = vsel %vm809, %v4643, %v4645
      %v4657 = vsel %vm809, %v4645, %v4647
      %v4658 = vsel %vm809, %v4647, %v4649
      %v4659 = vsel %vm809, %v4649, %v4651
      %4660 = vrot.lane.b32.xlu0 %v4336, 17
      %v4661 = vpop.permute.xlu0 %4660
      %4662 = vrot.lane.b32.xlu0 %v4337, 17
      %v4663 = vpop.permute.xlu0 %4662
      %4664 = vrot.lane.b32.xlu0 %v4338, 17
      %v4665 = vpop.permute.xlu0 %4664
      %4666 = vrot.lane.b32.xlu0 %v4339, 17
      %v4667 = vpop.permute.xlu0 %4666
      %4668 = vrot.lane.b32.xlu0 %v4340, 17
      %v4669 = vpop.permute.xlu0 %4668
      %4670 = vrot.lane.b32.xlu0 %v4341, 17
      %v4671 = vpop.permute.xlu0 %4670
      %4672 = vrot.lane.b32.xlu0 %v4342, 17
      %v4673 = vpop.permute.xlu0 %4672
      %4674 = vrot.lane.b32.xlu0 %v4343, 17
      %v4675 = vpop.permute.xlu0 %4674
      %v4676 = vsel %vm850, %v4661, %v4663
      %v4677 = vsel %vm850, %v4663, %v4665
      %v4678 = vsel %vm850, %v4665, %v4667
      %v4679 = vsel %vm850, %v4667, %v4669
      %v4680 = vsel %vm850, %v4669, %v4671
      %v4681 = vsel %vm850, %v4671, %v4673
      %v4682 = vsel %vm850, %v4673, %v4675
      %4683 = vrot.lane.b32.xlu0 %v4336, 16
      %v4684 = vpop.permute.xlu0 %4683
      %4685 = vrot.lane.b32.xlu0 %v4337, 16
      %v4686 = vpop.permute.xlu0 %4685
      %4687 = vrot.lane.b32.xlu0 %v4338, 16
      %v4688 = vpop.permute.xlu0 %4687
      %4689 = vrot.lane.b32.xlu0 %v4339, 16
      %v4690 = vpop.permute.xlu0 %4689
      %4691 = vrot.lane.b32.xlu0 %v4340, 16
      %v4692 = vpop.permute.xlu0 %4691
      %4693 = vrot.lane.b32.xlu0 %v4341, 16
      %v4694 = vpop.permute.xlu0 %4693
      %4695 = vrot.lane.b32.xlu0 %v4342, 16
      %v4696 = vpop.permute.xlu0 %4695
      %4697 = vrot.lane.b32.xlu0 %v4343, 16
      %v4698 = vpop.permute.xlu0 %4697
      %v4699 = vsel %vm886, %v4684, %v4686
      %v4700 = vsel %vm886, %v4686, %v4688
      %v4701 = vsel %vm886, %v4688, %v4690
      %v4702 = vsel %vm886, %v4690, %v4692
      %v4703 = vsel %vm886, %v4692, %v4694
      %v4704 = vsel %vm886, %v4694, %v4696
      %v4705 = vsel %vm886, %v4696, %v4698
      %4706 = vrot.lane.b32.xlu0 %v4336, 8
      %v4707 = vpop.permute.xlu0 %4706
      %4708 = vrot.lane.b32.xlu0 %v4337, 8
      %v4709 = vpop.permute.xlu0 %4708
      %4710 = vrot.lane.b32.xlu0 %v4338, 8
      %v4711 = vpop.permute.xlu0 %4710
      %4712 = vrot.lane.b32.xlu0 %v4339, 8
      %v4713 = vpop.permute.xlu0 %4712
      %4714 = vrot.lane.b32.xlu0 %v4340, 8
      %v4715 = vpop.permute.xlu0 %4714
      %4716 = vrot.lane.b32.xlu0 %v4341, 8
      %v4717 = vpop.permute.xlu0 %4716
      %4718 = vrot.lane.b32.xlu0 %v4342, 8
      %v4719 = vpop.permute.xlu0 %4718
      %4720 = vrot.lane.b32.xlu0 %v4343, 8
      %v4721 = vpop.permute.xlu0 %4720
      %v4722 = vsel %vm918, %v4707, %v4709
      %v4723 = vsel %vm918, %v4709, %v4711
      %v4724 = vsel %vm918, %v4711, %v4713
      %v4725 = vsel %vm918, %v4713, %v4715
      %v4726 = vsel %vm918, %v4715, %v4717
      %v4727 = vsel %vm918, %v4717, %v4719
      %v4728 = vsel %vm918, %v4719, %v4721
      %4729 = vrot.lane.b32.xlu0 %v4343, 127
      %v4730 = vpop.permute.xlu0 %4729
      %v4731 = vsel %vm426, %v4368, %v4730
      %4733 = vrot.lane.b32.xlu0 %v4336, 49
      %v4734 = vpop.permute.xlu0 %4733
      %4735 = vrot.lane.b32.xlu0 %v4337, 49
      %v4736 = vpop.permute.xlu0 %4735
      %4737 = vrot.lane.b32.xlu0 %v4338, 49
      %v4738 = vpop.permute.xlu0 %4737
      %4739 = vrot.lane.b32.xlu0 %v4339, 49
      %v4740 = vpop.permute.xlu0 %4739
      %4741 = vrot.lane.b32.xlu0 %v4340, 49
      %v4742 = vpop.permute.xlu0 %4741
      %4743 = vrot.lane.b32.xlu0 %v4341, 49
      %v4744 = vpop.permute.xlu0 %4743
      %4745 = vrot.lane.b32.xlu0 %v4342, 49
      %v4746 = vpop.permute.xlu0 %4745
      %4747 = vrot.lane.b32.xlu0 %v4343, 49
      %v4748 = vpop.permute.xlu0 %4747
      %4749 = vrot.lane.b32.xlu0 %v4344, 49
      %v4750 = vpop.permute.xlu0 %4749
      %v4751 = vsel %vm1053, %v4734, %v4736
      %v4752 = vsel %vm1053, %v4736, %v4738
      %v4753 = vsel %vm1053, %v4738, %v4740
      %v4754 = vsel %vm1053, %v4740, %v4742
      %v4755 = vsel %vm1053, %v4742, %v4744
      %v4756 = vsel %vm1053, %v4744, %v4746
      %v4757 = vsel %vm1053, %v4746, %v4748
      %v4758 = vsel %vm1053, %v4748, %v4750
      %4759 = vrot.lane.b32.xlu0 %v4336, 48
      %v4760 = vpop.permute.xlu0 %4759
      %4761 = vrot.lane.b32.xlu0 %v4337, 48
      %v4762 = vpop.permute.xlu0 %4761
      %4763 = vrot.lane.b32.xlu0 %v4338, 48
      %v4764 = vpop.permute.xlu0 %4763
      %4765 = vrot.lane.b32.xlu0 %v4339, 48
      %v4766 = vpop.permute.xlu0 %4765
      %4767 = vrot.lane.b32.xlu0 %v4340, 48
      %v4768 = vpop.permute.xlu0 %4767
      %4769 = vrot.lane.b32.xlu0 %v4341, 48
      %v4770 = vpop.permute.xlu0 %4769
      %4771 = vrot.lane.b32.xlu0 %v4342, 48
      %v4772 = vpop.permute.xlu0 %4771
      %4773 = vrot.lane.b32.xlu0 %v4343, 48
      %v4774 = vpop.permute.xlu0 %4773
      %4775 = vrot.lane.b32.xlu0 %v4344, 48
      %v4776 = vpop.permute.xlu0 %4775
      %v4777 = vsel %vm1089, %v4760, %v4762
      %v4778 = vsel %vm1089, %v4762, %v4764
      %v4779 = vsel %vm1089, %v4764, %v4766
      %v4780 = vsel %vm1089, %v4766, %v4768
      %v4781 = vsel %vm1089, %v4768, %v4770
      %v4782 = vsel %vm1089, %v4770, %v4772
      %v4783 = vsel %vm1089, %v4772, %v4774
      %v4784 = vsel %vm1089, %v4774, %v4776
      %4785 = vrot.lane.b32.xlu0 %v4336, 47
      %v4786 = vpop.permute.xlu0 %4785
      %4787 = vrot.lane.b32.xlu0 %v4337, 47
      %v4788 = vpop.permute.xlu0 %4787
      %4789 = vrot.lane.b32.xlu0 %v4338, 47
      %v4790 = vpop.permute.xlu0 %4789
      %4791 = vrot.lane.b32.xlu0 %v4339, 47
      %v4792 = vpop.permute.xlu0 %4791
      %4793 = vrot.lane.b32.xlu0 %v4340, 47
      %v4794 = vpop.permute.xlu0 %4793
      %4795 = vrot.lane.b32.xlu0 %v4341, 47
      %v4796 = vpop.permute.xlu0 %4795
      %4797 = vrot.lane.b32.xlu0 %v4342, 47
      %v4798 = vpop.permute.xlu0 %4797
      %4799 = vrot.lane.b32.xlu0 %v4343, 47
      %v4800 = vpop.permute.xlu0 %4799
      %4801 = vrot.lane.b32.xlu0 %v4344, 47
      %v4802 = vpop.permute.xlu0 %4801
      %v4803 = vsel %vm1124, %v4786, %v4788
      %v4804 = vsel %vm1124, %v4788, %v4790
      %v4805 = vsel %vm1124, %v4790, %v4792
      %v4806 = vsel %vm1124, %v4792, %v4794
      %v4807 = vsel %vm1124, %v4794, %v4796
      %v4808 = vsel %vm1124, %v4796, %v4798
      %v4809 = vsel %vm1124, %v4798, %v4800
      %v4810 = vsel %vm1124, %v4800, %v4802
      %4811 = vrot.lane.b32.xlu0 %v4336, 39
      %v4812 = vpop.permute.xlu0 %4811
      %4813 = vrot.lane.b32.xlu0 %v4337, 39
      %v4814 = vpop.permute.xlu0 %4813
      %4815 = vrot.lane.b32.xlu0 %v4338, 39
      %v4816 = vpop.permute.xlu0 %4815
      %4817 = vrot.lane.b32.xlu0 %v4339, 39
      %v4818 = vpop.permute.xlu0 %4817
      %4819 = vrot.lane.b32.xlu0 %v4340, 39
      %v4820 = vpop.permute.xlu0 %4819
      %4821 = vrot.lane.b32.xlu0 %v4341, 39
      %v4822 = vpop.permute.xlu0 %4821
      %4823 = vrot.lane.b32.xlu0 %v4342, 39
      %v4824 = vpop.permute.xlu0 %4823
      %4825 = vrot.lane.b32.xlu0 %v4343, 39
      %v4826 = vpop.permute.xlu0 %4825
      %4827 = vrot.lane.b32.xlu0 %v4344, 39
      %v4828 = vpop.permute.xlu0 %4827
      %v4829 = vsel %vm1159, %v4812, %v4814
      %v4830 = vsel %vm1159, %v4814, %v4816
      %v4831 = vsel %vm1159, %v4816, %v4818
      %v4832 = vsel %vm1159, %v4818, %v4820
      %v4833 = vsel %vm1159, %v4820, %v4822
      %v4834 = vsel %vm1159, %v4822, %v4824
      %v4835 = vsel %vm1159, %v4824, %v4826
      %v4836 = vsel %vm1159, %v4826, %v4828
      %4837 = vrot.lane.b32.xlu0 %v4336, 38
      %v4838 = vpop.permute.xlu0 %4837
      %4839 = vrot.lane.b32.xlu0 %v4337, 38
      %v4840 = vpop.permute.xlu0 %4839
      %4841 = vrot.lane.b32.xlu0 %v4338, 38
      %v4842 = vpop.permute.xlu0 %4841
      %4843 = vrot.lane.b32.xlu0 %v4339, 38
      %v4844 = vpop.permute.xlu0 %4843
      %4845 = vrot.lane.b32.xlu0 %v4340, 38
      %v4846 = vpop.permute.xlu0 %4845
      %4847 = vrot.lane.b32.xlu0 %v4341, 38
      %v4848 = vpop.permute.xlu0 %4847
      %4849 = vrot.lane.b32.xlu0 %v4342, 38
      %v4850 = vpop.permute.xlu0 %4849
      %4851 = vrot.lane.b32.xlu0 %v4343, 38
      %v4852 = vpop.permute.xlu0 %4851
      %4853 = vrot.lane.b32.xlu0 %v4344, 38
      %v4854 = vpop.permute.xlu0 %4853
      %v4855 = vsel %vm1194, %v4838, %v4840
      %v4856 = vsel %vm1194, %v4840, %v4842
      %v4857 = vsel %vm1194, %v4842, %v4844
      %v4858 = vsel %vm1194, %v4844, %v4846
      %v4859 = vsel %vm1194, %v4846, %v4848
      %v4860 = vsel %vm1194, %v4848, %v4850
      %v4861 = vsel %vm1194, %v4850, %v4852
      %v4862 = vsel %vm1194, %v4852, %v4854
      %4863 = vrot.lane.b32.xlu0 %v4336, 37
      %v4864 = vpop.permute.xlu0 %4863
      %4865 = vrot.lane.b32.xlu0 %v4337, 37
      %v4866 = vpop.permute.xlu0 %4865
      %4867 = vrot.lane.b32.xlu0 %v4338, 37
      %v4868 = vpop.permute.xlu0 %4867
      %4869 = vrot.lane.b32.xlu0 %v4339, 37
      %v4870 = vpop.permute.xlu0 %4869
      %4871 = vrot.lane.b32.xlu0 %v4340, 37
      %v4872 = vpop.permute.xlu0 %4871
      %4873 = vrot.lane.b32.xlu0 %v4341, 37
      %v4874 = vpop.permute.xlu0 %4873
      %4875 = vrot.lane.b32.xlu0 %v4342, 37
      %v4876 = vpop.permute.xlu0 %4875
      %4877 = vrot.lane.b32.xlu0 %v4343, 37
      %v4878 = vpop.permute.xlu0 %4877
      %4879 = vrot.lane.b32.xlu0 %v4344, 37
      %v4880 = vpop.permute.xlu0 %4879
      %v4881 = vsel %vm1229, %v4864, %v4866
      %v4882 = vsel %vm1229, %v4866, %v4868
      %v4883 = vsel %vm1229, %v4868, %v4870
      %v4884 = vsel %vm1229, %v4870, %v4872
      %v4885 = vsel %vm1229, %v4872, %v4874
      %v4886 = vsel %vm1229, %v4874, %v4876
      %v4887 = vsel %vm1229, %v4876, %v4878
      %v4888 = vsel %vm1229, %v4878, %v4880
      %4889 = vrot.lane.b32.xlu0 %v4336, 29
      %v4890 = vpop.permute.xlu0 %4889
      %4891 = vrot.lane.b32.xlu0 %v4337, 29
      %v4892 = vpop.permute.xlu0 %4891
      %4893 = vrot.lane.b32.xlu0 %v4338, 29
      %v4894 = vpop.permute.xlu0 %4893
      %4895 = vrot.lane.b32.xlu0 %v4339, 29
      %v4896 = vpop.permute.xlu0 %4895
      %4897 = vrot.lane.b32.xlu0 %v4340, 29
      %v4898 = vpop.permute.xlu0 %4897
      %4899 = vrot.lane.b32.xlu0 %v4341, 29
      %v4900 = vpop.permute.xlu0 %4899
      %4901 = vrot.lane.b32.xlu0 %v4342, 29
      %v4902 = vpop.permute.xlu0 %4901
      %4903 = vrot.lane.b32.xlu0 %v4343, 29
      %v4904 = vpop.permute.xlu0 %4903
      %4905 = vrot.lane.b32.xlu0 %v4344, 29
      %v4906 = vpop.permute.xlu0 %4905
      %v4907 = vsel %vm1264, %v4890, %v4892
      %v4908 = vsel %vm1264, %v4892, %v4894
      %v4909 = vsel %vm1264, %v4894, %v4896
      %v4910 = vsel %vm1264, %v4896, %v4898
      %v4911 = vsel %vm1264, %v4898, %v4900
      %v4912 = vsel %vm1264, %v4900, %v4902
      %v4913 = vsel %vm1264, %v4902, %v4904
      %v4914 = vsel %vm1264, %v4904, %v4906
      %4915 = vrot.lane.b32.xlu0 %v4344, 28
      %v4916 = vpop.permute.xlu0 %4915
      %v4917 = vsel %vm704, %v4573, %v4916
      %4918 = vrot.lane.b32.xlu0 %v4344, 27
      %v4919 = vpop.permute.xlu0 %4918
      %v4920 = vsel %vm739, %v4599, %v4919
      %4921 = vrot.lane.b32.xlu0 %v4336, 7
      %v4922 = vpop.permute.xlu0 %4921
      %4923 = vrot.lane.b32.xlu0 %v4337, 7
      %v4924 = vpop.permute.xlu0 %4923
      %4925 = vrot.lane.b32.xlu0 %v4338, 7
      %v4926 = vpop.permute.xlu0 %4925
      %4927 = vrot.lane.b32.xlu0 %v4339, 7
      %v4928 = vpop.permute.xlu0 %4927
      %4929 = vrot.lane.b32.xlu0 %v4340, 7
      %v4930 = vpop.permute.xlu0 %4929
      %4931 = vrot.lane.b32.xlu0 %v4341, 7
      %v4932 = vpop.permute.xlu0 %4931
      %4933 = vrot.lane.b32.xlu0 %v4342, 7
      %v4934 = vpop.permute.xlu0 %4933
      %4935 = vrot.lane.b32.xlu0 %v4343, 7
      %v4936 = vpop.permute.xlu0 %4935
      %4937 = vrot.lane.b32.xlu0 %v4370, 7
      %v4938 = vpop.permute.xlu0 %4937
      %4939 = vrot.lane.b32.xlu0 %v4371, 7
      %v4940 = vpop.permute.xlu0 %4939
      %4941 = vrot.lane.b32.xlu0 %v4372, 7
      %v4942 = vpop.permute.xlu0 %4941
      %4943 = vrot.lane.b32.xlu0 %v4373, 7
      %v4944 = vpop.permute.xlu0 %4943
      %4945 = vrot.lane.b32.xlu0 %v4374, 7
      %v4946 = vpop.permute.xlu0 %4945
      %4947 = vrot.lane.b32.xlu0 %v4375, 7
      %v4948 = vpop.permute.xlu0 %4947
      %4949 = vrot.lane.b32.xlu0 %v4731, 7
      %v4950 = vpop.permute.xlu0 %4949
      %4951 = vrot.lane.b32.xlu0 %v4730, 7
      %v4952 = vpop.permute.xlu0 %4951
      %4953 = vrot.lane.b32.xlu0 %v4751, 7
      %v4954 = vpop.permute.xlu0 %4953
      %4955 = vrot.lane.b32.xlu0 %v4752, 7
      %v4956 = vpop.permute.xlu0 %4955
      %4957 = vrot.lane.b32.xlu0 %v4753, 7
      %v4958 = vpop.permute.xlu0 %4957
      %4959 = vrot.lane.b32.xlu0 %v4754, 7
      %v4960 = vpop.permute.xlu0 %4959
      %4961 = vrot.lane.b32.xlu0 %v4755, 7
      %v4962 = vpop.permute.xlu0 %4961
      %4963 = vrot.lane.b32.xlu0 %v4756, 7
      %v4964 = vpop.permute.xlu0 %4963
      %4965 = vrot.lane.b32.xlu0 %v4757, 7
      %v4966 = vpop.permute.xlu0 %4965
      %4967 = vrot.lane.b32.xlu0 %v4758, 7
      %v4968 = vpop.permute.xlu0 %4967
      %4969 = vrot.lane.b32.xlu0 %v4777, 7
      %v4970 = vpop.permute.xlu0 %4969
      %4971 = vrot.lane.b32.xlu0 %v4778, 7
      %v4972 = vpop.permute.xlu0 %4971
      %4973 = vrot.lane.b32.xlu0 %v4779, 7
      %v4974 = vpop.permute.xlu0 %4973
      %4975 = vrot.lane.b32.xlu0 %v4780, 7
      %v4976 = vpop.permute.xlu0 %4975
      %4977 = vrot.lane.b32.xlu0 %v4781, 7
      %v4978 = vpop.permute.xlu0 %4977
      %4979 = vrot.lane.b32.xlu0 %v4782, 7
      %v4980 = vpop.permute.xlu0 %4979
      %4981 = vrot.lane.b32.xlu0 %v4783, 7
      %v4982 = vpop.permute.xlu0 %4981
      %4983 = vrot.lane.b32.xlu0 %v4784, 7
      %v4984 = vpop.permute.xlu0 %4983
      %4985 = vrot.lane.b32.xlu0 %v4803, 7
      %v4986 = vpop.permute.xlu0 %4985
      %4987 = vrot.lane.b32.xlu0 %v4804, 7
      %v4988 = vpop.permute.xlu0 %4987
      %4989 = vrot.lane.b32.xlu0 %v4805, 7
      %v4990 = vpop.permute.xlu0 %4989
      %4991 = vrot.lane.b32.xlu0 %v4806, 7
      %v4992 = vpop.permute.xlu0 %4991
      %4993 = vrot.lane.b32.xlu0 %v4807, 7
      %v4994 = vpop.permute.xlu0 %4993
      %4995 = vrot.lane.b32.xlu0 %v4808, 7
      %v4996 = vpop.permute.xlu0 %4995
      %4997 = vrot.lane.b32.xlu0 %v4809, 7
      %v4998 = vpop.permute.xlu0 %4997
      %4999 = vrot.lane.b32.xlu0 %v4810, 7
      %v5000 = vpop.permute.xlu0 %4999
      %5001 = vrot.lane.b32.xlu0 %v4829, 7
      %v5002 = vpop.permute.xlu0 %5001
      %5003 = vrot.lane.b32.xlu0 %v4830, 7
      %v5004 = vpop.permute.xlu0 %5003
      %5005 = vrot.lane.b32.xlu0 %v4831, 7
      %v5006 = vpop.permute.xlu0 %5005
      %5007 = vrot.lane.b32.xlu0 %v4832, 7
      %v5008 = vpop.permute.xlu0 %5007
      %5009 = vrot.lane.b32.xlu0 %v4833, 7
      %v5010 = vpop.permute.xlu0 %5009
      %5011 = vrot.lane.b32.xlu0 %v4834, 7
      %v5012 = vpop.permute.xlu0 %5011
      %5013 = vrot.lane.b32.xlu0 %v4835, 7
      %v5014 = vpop.permute.xlu0 %5013
      %5015 = vrot.lane.b32.xlu0 %v4836, 7
      %v5016 = vpop.permute.xlu0 %5015
      %5017 = vrot.lane.b32.xlu0 %v4855, 7
      %v5018 = vpop.permute.xlu0 %5017
      %5019 = vrot.lane.b32.xlu0 %v4856, 7
      %v5020 = vpop.permute.xlu0 %5019
      %5021 = vrot.lane.b32.xlu0 %v4857, 7
      %v5022 = vpop.permute.xlu0 %5021
      %5023 = vrot.lane.b32.xlu0 %v4858, 7
      %v5024 = vpop.permute.xlu0 %5023
      %5025 = vrot.lane.b32.xlu0 %v4859, 7
      %v5026 = vpop.permute.xlu0 %5025
      %5027 = vrot.lane.b32.xlu0 %v4860, 7
      %v5028 = vpop.permute.xlu0 %5027
      %5029 = vrot.lane.b32.xlu0 %v4861, 7
      %v5030 = vpop.permute.xlu0 %5029
      %5031 = vrot.lane.b32.xlu0 %v4862, 7
      %v5032 = vpop.permute.xlu0 %5031
      %5033 = vrot.lane.b32.xlu0 %v4881, 7
      %v5034 = vpop.permute.xlu0 %5033
      %5035 = vrot.lane.b32.xlu0 %v4882, 7
      %v5036 = vpop.permute.xlu0 %5035
      %5037 = vrot.lane.b32.xlu0 %v4883, 7
      %v5038 = vpop.permute.xlu0 %5037
      %5039 = vrot.lane.b32.xlu0 %v4884, 7
      %v5040 = vpop.permute.xlu0 %5039
      %5041 = vrot.lane.b32.xlu0 %v4885, 7
      %v5042 = vpop.permute.xlu0 %5041
      %5043 = vrot.lane.b32.xlu0 %v4886, 7
      %v5044 = vpop.permute.xlu0 %5043
      %5045 = vrot.lane.b32.xlu0 %v4887, 7
      %v5046 = vpop.permute.xlu0 %5045
      %5047 = vrot.lane.b32.xlu0 %v4888, 7
      %v5048 = vpop.permute.xlu0 %5047
      %5049 = vrot.lane.b32.xlu0 %v4907, 7
      %v5050 = vpop.permute.xlu0 %5049
      %5051 = vrot.lane.b32.xlu0 %v4908, 7
      %v5052 = vpop.permute.xlu0 %5051
      %5053 = vrot.lane.b32.xlu0 %v4909, 7
      %v5054 = vpop.permute.xlu0 %5053
      %5055 = vrot.lane.b32.xlu0 %v4910, 7
      %v5056 = vpop.permute.xlu0 %5055
      %5057 = vrot.lane.b32.xlu0 %v4911, 7
      %v5058 = vpop.permute.xlu0 %5057
      %5059 = vrot.lane.b32.xlu0 %v4912, 7
      %v5060 = vpop.permute.xlu0 %5059
      %5061 = vrot.lane.b32.xlu0 %v4913, 7
      %v5062 = vpop.permute.xlu0 %5061
      %5063 = vrot.lane.b32.xlu0 %v4914, 7
      %v5064 = vpop.permute.xlu0 %5063
      %5065 = vrot.lane.b32.xlu0 %v4575, 7
      %v5066 = vpop.permute.xlu0 %5065
      %5067 = vrot.lane.b32.xlu0 %v4576, 7
      %v5068 = vpop.permute.xlu0 %5067
      %5069 = vrot.lane.b32.xlu0 %v4577, 7
      %v5070 = vpop.permute.xlu0 %5069
      %5071 = vrot.lane.b32.xlu0 %v4578, 7
      %v5072 = vpop.permute.xlu0 %5071
      %5073 = vrot.lane.b32.xlu0 %v4579, 7
      %v5074 = vpop.permute.xlu0 %5073
      %5075 = vrot.lane.b32.xlu0 %v4580, 7
      %v5076 = vpop.permute.xlu0 %5075
      %5077 = vrot.lane.b32.xlu0 %v4581, 7
      %v5078 = vpop.permute.xlu0 %5077
      %5079 = vrot.lane.b32.xlu0 %v4917, 7
      %v5080 = vpop.permute.xlu0 %5079
      %5081 = vrot.lane.b32.xlu0 %v4601, 7
      %v5082 = vpop.permute.xlu0 %5081
      %5083 = vrot.lane.b32.xlu0 %v4602, 7
      %v5084 = vpop.permute.xlu0 %5083
      %5085 = vrot.lane.b32.xlu0 %v4603, 7
      %v5086 = vpop.permute.xlu0 %5085
      %5087 = vrot.lane.b32.xlu0 %v4604, 7
      %v5088 = vpop.permute.xlu0 %5087
      %5089 = vrot.lane.b32.xlu0 %v4605, 7
      %v5090 = vpop.permute.xlu0 %5089
      %5091 = vrot.lane.b32.xlu0 %v4606, 7
      %v5092 = vpop.permute.xlu0 %5091
      %5093 = vrot.lane.b32.xlu0 %v4607, 7
      %v5094 = vpop.permute.xlu0 %5093
      %5095 = vrot.lane.b32.xlu0 %v4920, 7
      %v5096 = vpop.permute.xlu0 %5095
      %v5097 = vsel %vm1517, %v4922, %v4924
      %v5098 = vsel %vm1517, %v4924, %v4926
      %v5099 = vsel %vm1517, %v4926, %v4928
      %v5100 = vsel %vm1517, %v4928, %v4930
      %v5101 = vsel %vm1517, %v4930, %v4932
      %v5102 = vsel %vm1517, %v4932, %v4934
      %v5103 = vsel %vm1517, %v4934, %v4936
      %v5104 = vsel %vm1517, %v4938, %v4940
      %v5105 = vsel %vm1517, %v4940, %v4942
      %v5106 = vsel %vm1517, %v4942, %v4944
      %v5107 = vsel %vm1517, %v4944, %v4946
      %v5108 = vsel %vm1517, %v4946, %v4948
      %v5109 = vsel %vm1517, %v4948, %v4950
      %v5110 = vsel %vm1517, %v4950, %v4952
      %v5111 = vsel %vm1517, %v4954, %v4956
      %v5112 = vsel %vm1517, %v4956, %v4958
      %v5113 = vsel %vm1517, %v4958, %v4960
      %v5114 = vsel %vm1517, %v4960, %v4962
      %v5115 = vsel %vm1517, %v4962, %v4964
      %v5116 = vsel %vm1517, %v4964, %v4966
      %v5117 = vsel %vm1517, %v4966, %v4968
      %v5118 = vsel %vm1517, %v4970, %v4972
      %v5119 = vsel %vm1517, %v4972, %v4974
      %v5120 = vsel %vm1517, %v4974, %v4976
      %v5121 = vsel %vm1517, %v4976, %v4978
      %v5122 = vsel %vm1517, %v4978, %v4980
      %v5123 = vsel %vm1517, %v4980, %v4982
      %v5124 = vsel %vm1517, %v4982, %v4984
      %v5125 = vsel %vm1517, %v4986, %v4988
      %v5126 = vsel %vm1517, %v4988, %v4990
      %v5127 = vsel %vm1517, %v4990, %v4992
      %v5128 = vsel %vm1517, %v4992, %v4994
      %v5129 = vsel %vm1517, %v4994, %v4996
      %v5130 = vsel %vm1517, %v4996, %v4998
      %v5131 = vsel %vm1517, %v4998, %v5000
      %v5132 = vsel %vm1517, %v5002, %v5004
      %v5133 = vsel %vm1517, %v5004, %v5006
      %v5134 = vsel %vm1517, %v5006, %v5008
      %v5135 = vsel %vm1517, %v5008, %v5010
      %v5136 = vsel %vm1517, %v5010, %v5012
      %v5137 = vsel %vm1517, %v5012, %v5014
      %v5138 = vsel %vm1517, %v5014, %v5016
      %v5139 = vsel %vm1517, %v5018, %v5020
      %v5140 = vsel %vm1517, %v5020, %v5022
      %v5141 = vsel %vm1517, %v5022, %v5024
      %v5142 = vsel %vm1517, %v5024, %v5026
      %v5143 = vsel %vm1517, %v5026, %v5028
      %v5144 = vsel %vm1517, %v5028, %v5030
      %v5145 = vsel %vm1517, %v5030, %v5032
      %v5146 = vsel %vm1517, %v5034, %v5036
      %v5147 = vsel %vm1517, %v5036, %v5038
      %v5148 = vsel %vm1517, %v5038, %v5040
      %v5149 = vsel %vm1517, %v5040, %v5042
      %v5150 = vsel %vm1517, %v5042, %v5044
      %v5151 = vsel %vm1517, %v5044, %v5046
      %v5152 = vsel %vm1517, %v5046, %v5048
      %v5153 = vsel %vm1517, %v5050, %v5052
      %v5154 = vsel %vm1517, %v5052, %v5054
      %v5155 = vsel %vm1517, %v5054, %v5056
      %v5156 = vsel %vm1517, %v5056, %v5058
      %v5157 = vsel %vm1517, %v5058, %v5060
      %v5158 = vsel %vm1517, %v5060, %v5062
      %v5159 = vsel %vm1517, %v5062, %v5064
      %v5160 = vsel %vm1517, %v5066, %v5068
      %v5161 = vsel %vm1517, %v5068, %v5070
      %v5162 = vsel %vm1517, %v5070, %v5072
      %v5163 = vsel %vm1517, %v5072, %v5074
      %v5164 = vsel %vm1517, %v5074, %v5076
      %v5165 = vsel %vm1517, %v5076, %v5078
      %v5166 = vsel %vm1517, %v5078, %v5080
      %v5167 = vsel %vm1517, %v5082, %v5084
      %v5168 = vsel %vm1517, %v5084, %v5086
      %v5169 = vsel %vm1517, %v5086, %v5088
      %v5170 = vsel %vm1517, %v5088, %v5090
      %v5171 = vsel %vm1517, %v5090, %v5092
      %v5172 = vsel %vm1517, %v5092, %v5094
      %v5173 = vsel %vm1517, %v5094, %v5096
      %v5174 = vld [vmem:[%s6] sm:$0xff]
      %v5175 = vld [vmem:[%s7] sm:$0xf]
      %5177 = vset.pattern.permute.xlu0 0
      %5178 = vperm.xlu0 %5177, %v5175
      %v5179 = vpop.permute.xlu0 %5178
      %v5182 = vcombine.high %v5174, %v5174
      %5183 = vrot.lane.b32.xlu0 %v4335, 111
      %v5184 = vpop.permute.xlu0 %5183
      %5185 = vrot.lane.b32.xlu0 %v4336, 111
      %v5186 = vpop.permute.xlu0 %5185
      %5187 = vrot.lane.b32.xlu0 %v4337, 111
      %v5188 = vpop.permute.xlu0 %5187
      %5189 = vrot.lane.b32.xlu0 %v4338, 111
      %v5190 = vpop.permute.xlu0 %5189
      %5191 = vrot.lane.b32.xlu0 %v4339, 111
      %v5192 = vpop.permute.xlu0 %5191
      %5193 = vrot.lane.b32.xlu0 %v4340, 111
      %v5194 = vpop.permute.xlu0 %5193
      %5195 = vrot.lane.b32.xlu0 %v4341, 111
      %v5196 = vpop.permute.xlu0 %5195
      %5197 = vrot.lane.b32.xlu0 %v4342, 111
      %v5198 = vpop.permute.xlu0 %5197
      %5199 = vrot.lane.b32.xlu0 %v4369, 111
      %v5200 = vpop.permute.xlu0 %5199
      %5201 = vrot.lane.b32.xlu0 %v4370, 111
      %v5202 = vpop.permute.xlu0 %5201
      %5203 = vrot.lane.b32.xlu0 %v4371, 111
      %v5204 = vpop.permute.xlu0 %5203
      %5205 = vrot.lane.b32.xlu0 %v4372, 111
      %v5206 = vpop.permute.xlu0 %5205
      %5207 = vrot.lane.b32.xlu0 %v4373, 111
      %v5208 = vpop.permute.xlu0 %5207
      %5209 = vrot.lane.b32.xlu0 %v4374, 111
      %v5210 = vpop.permute.xlu0 %5209
      %5211 = vrot.lane.b32.xlu0 %v4375, 111
      %v5212 = vpop.permute.xlu0 %5211
      %5213 = vrot.lane.b32.xlu0 %v4368, 111
      %v5214 = vpop.permute.xlu0 %5213
      %5215 = vrot.lane.b32.xlu0 %v4392, 111
      %v5216 = vpop.permute.xlu0 %5215
      %5217 = vrot.lane.b32.xlu0 %v4393, 111
      %v5218 = vpop.permute.xlu0 %5217
      %5219 = vrot.lane.b32.xlu0 %v4394, 111
      %v5220 = vpop.permute.xlu0 %5219
      %5221 = vrot.lane.b32.xlu0 %v4395, 111
      %v5222 = vpop.permute.xlu0 %5221
      %5223 = vrot.lane.b32.xlu0 %v4396, 111
      %v5224 = vpop.permute.xlu0 %5223
      %5225 = vrot.lane.b32.xlu0 %v4397, 111
      %v5226 = vpop.permute.xlu0 %5225
      %5227 = vrot.lane.b32.xlu0 %v4398, 111
      %v5228 = vpop.permute.xlu0 %5227
      %5229 = vrot.lane.b32.xlu0 %v4391, 111
      %v5230 = vpop.permute.xlu0 %5229
      %5231 = vrot.lane.b32.xlu0 %v4418, 111
      %v5232 = vpop.permute.xlu0 %5231
      %5233 = vrot.lane.b32.xlu0 %v4419, 111
      %v5234 = vpop.permute.xlu0 %5233
      %5235 = vrot.lane.b32.xlu0 %v4420, 111
      %v5236 = vpop.permute.xlu0 %5235
      %5237 = vrot.lane.b32.xlu0 %v4421, 111
      %v5238 = vpop.permute.xlu0 %5237
      %5239 = vrot.lane.b32.xlu0 %v4422, 111
      %v5240 = vpop.permute.xlu0 %5239
      %5241 = vrot.lane.b32.xlu0 %v4423, 111
      %v5242 = vpop.permute.xlu0 %5241
      %5243 = vrot.lane.b32.xlu0 %v4424, 111
      %v5244 = vpop.permute.xlu0 %5243
      %5245 = vrot.lane.b32.xlu0 %v4425, 111
      %v5246 = vpop.permute.xlu0 %5245
      %5247 = vrot.lane.b32.xlu0 %v4444, 111
      %v5248 = vpop.permute.xlu0 %5247
      %5249 = vrot.lane.b32.xlu0 %v4445, 111
      %v5250 = vpop.permute.xlu0 %5249
      %5251 = vrot.lane.b32.xlu0 %v4446, 111
      %v5252 = vpop.permute.xlu0 %5251
      %5253 = vrot.lane.b32.xlu0 %v4447, 111
      %v5254 = vpop.permute.xlu0 %5253
      %5255 = vrot.lane.b32.xlu0 %v4448, 111
      %v5256 = vpop.permute.xlu0 %5255
      %5257 = vrot.lane.b32.xlu0 %v4449, 111
      %v5258 = vpop.permute.xlu0 %5257
      %5259 = vrot.lane.b32.xlu0 %v4450, 111
      %v5260 = vpop.permute.xlu0 %5259
      %5261 = vrot.lane.b32.xlu0 %v4451, 111
      %v5262 = vpop.permute.xlu0 %5261
      %5263 = vrot.lane.b32.xlu0 %v4470, 111
      %v5264 = vpop.permute.xlu0 %5263
      %5265 = vrot.lane.b32.xlu0 %v4471, 111
      %v5266 = vpop.permute.xlu0 %5265
      %5267 = vrot.lane.b32.xlu0 %v4472, 111
      %v5268 = vpop.permute.xlu0 %5267
      %5269 = vrot.lane.b32.xlu0 %v4473, 111
      %v5270 = vpop.permute.xlu0 %5269
      %5271 = vrot.lane.b32.xlu0 %v4474, 111
      %v5272 = vpop.permute.xlu0 %5271
      %5273 = vrot.lane.b32.xlu0 %v4475, 111
      %v5274 = vpop.permute.xlu0 %5273
      %5275 = vrot.lane.b32.xlu0 %v4476, 111
      %v5276 = vpop.permute.xlu0 %5275
      %5277 = vrot.lane.b32.xlu0 %v4477, 111
      %v5278 = vpop.permute.xlu0 %5277
      %5279 = vrot.lane.b32.xlu0 %v4496, 111
      %v5280 = vpop.permute.xlu0 %5279
      %5281 = vrot.lane.b32.xlu0 %v4497, 111
      %v5282 = vpop.permute.xlu0 %5281
      %5283 = vrot.lane.b32.xlu0 %v4498, 111
      %v5284 = vpop.permute.xlu0 %5283
      %5285 = vrot.lane.b32.xlu0 %v4499, 111
      %v5286 = vpop.permute.xlu0 %5285
      %5287 = vrot.lane.b32.xlu0 %v4500, 111
      %v5288 = vpop.permute.xlu0 %5287
      %5289 = vrot.lane.b32.xlu0 %v4501, 111
      %v5290 = vpop.permute.xlu0 %5289
      %5291 = vrot.lane.b32.xlu0 %v4502, 111
      %v5292 = vpop.permute.xlu0 %5291
      %5293 = vrot.lane.b32.xlu0 %v4503, 111
      %v5294 = vpop.permute.xlu0 %5293
      %5295 = vrot.lane.b32.xlu0 %v4522, 111
      %v5296 = vpop.permute.xlu0 %5295
      %5297 = vrot.lane.b32.xlu0 %v4523, 111
      %v5298 = vpop.permute.xlu0 %5297
      %5299 = vrot.lane.b32.xlu0 %v4524, 111
      %v5300 = vpop.permute.xlu0 %5299
      %5301 = vrot.lane.b32.xlu0 %v4525, 111
      %v5302 = vpop.permute.xlu0 %5301
      %5303 = vrot.lane.b32.xlu0 %v4526, 111
      %v5304 = vpop.permute.xlu0 %5303
      %5305 = vrot.lane.b32.xlu0 %v4527, 111
      %v5306 = vpop.permute.xlu0 %5305
      %5307 = vrot.lane.b32.xlu0 %v4528, 111
      %v5308 = vpop.permute.xlu0 %5307
      %5309 = vrot.lane.b32.xlu0 %v4529, 111
      %v5310 = vpop.permute.xlu0 %5309
      %5311 = vrot.lane.b32.xlu0 %v4548, 111
      %v5312 = vpop.permute.xlu0 %5311
      %5313 = vrot.lane.b32.xlu0 %v4549, 111
      %v5314 = vpop.permute.xlu0 %5313
      %5315 = vrot.lane.b32.xlu0 %v4550, 111
      %v5316 = vpop.permute.xlu0 %5315
      %5317 = vrot.lane.b32.xlu0 %v4551, 111
      %v5318 = vpop.permute.xlu0 %5317
      %5319 = vrot.lane.b32.xlu0 %v4552, 111
      %v5320 = vpop.permute.xlu0 %5319
      %5321 = vrot.lane.b32.xlu0 %v4553, 111
      %v5322 = vpop.permute.xlu0 %5321
      %5323 = vrot.lane.b32.xlu0 %v4554, 111
      %v5324 = vpop.permute.xlu0 %5323
      %5325 = vrot.lane.b32.xlu0 %v4555, 111
      %v5326 = vpop.permute.xlu0 %5325
      %5327 = vrot.lane.b32.xlu0 %v4574, 111
      %v5328 = vpop.permute.xlu0 %5327
      %5329 = vrot.lane.b32.xlu0 %v4575, 111
      %v5330 = vpop.permute.xlu0 %5329
      %5331 = vrot.lane.b32.xlu0 %v4576, 111
      %v5332 = vpop.permute.xlu0 %5331
      %5333 = vrot.lane.b32.xlu0 %v4577, 111
      %v5334 = vpop.permute.xlu0 %5333
      %5335 = vrot.lane.b32.xlu0 %v4578, 111
      %v5336 = vpop.permute.xlu0 %5335
      %5337 = vrot.lane.b32.xlu0 %v4579, 111
      %v5338 = vpop.permute.xlu0 %5337
      %5339 = vrot.lane.b32.xlu0 %v4580, 111
      %v5340 = vpop.permute.xlu0 %5339
      %5341 = vrot.lane.b32.xlu0 %v4581, 111
      %v5342 = vpop.permute.xlu0 %5341
      %5343 = vrot.lane.b32.xlu0 %v4600, 111
      %v5344 = vpop.permute.xlu0 %5343
      %5345 = vrot.lane.b32.xlu0 %v4601, 111
      %v5346 = vpop.permute.xlu0 %5345
      %5347 = vrot.lane.b32.xlu0 %v4602, 111
      %v5348 = vpop.permute.xlu0 %5347
      %5349 = vrot.lane.b32.xlu0 %v4603, 111
      %v5350 = vpop.permute.xlu0 %5349
      %5351 = vrot.lane.b32.xlu0 %v4604, 111
      %v5352 = vpop.permute.xlu0 %5351
      %5353 = vrot.lane.b32.xlu0 %v4605, 111
      %v5354 = vpop.permute.xlu0 %5353
      %5355 = vrot.lane.b32.xlu0 %v4606, 111
      %v5356 = vpop.permute.xlu0 %5355
      %5357 = vrot.lane.b32.xlu0 %v4607, 111
      %v5358 = vpop.permute.xlu0 %5357
      %5359 = vrot.lane.b32.xlu0 %v4626, 111
      %v5360 = vpop.permute.xlu0 %5359
      %5361 = vrot.lane.b32.xlu0 %v4627, 111
      %v5362 = vpop.permute.xlu0 %5361
      %5363 = vrot.lane.b32.xlu0 %v4628, 111
      %v5364 = vpop.permute.xlu0 %5363
      %5365 = vrot.lane.b32.xlu0 %v4629, 111
      %v5366 = vpop.permute.xlu0 %5365
      %5367 = vrot.lane.b32.xlu0 %v4630, 111
      %v5368 = vpop.permute.xlu0 %5367
      %5369 = vrot.lane.b32.xlu0 %v4631, 111
      %v5370 = vpop.permute.xlu0 %5369
      %5371 = vrot.lane.b32.xlu0 %v4632, 111
      %v5372 = vpop.permute.xlu0 %5371
      %5373 = vrot.lane.b32.xlu0 %v4633, 111
      %v5374 = vpop.permute.xlu0 %5373
      %5375 = vrot.lane.b32.xlu0 %v4652, 111
      %v5376 = vpop.permute.xlu0 %5375
      %5377 = vrot.lane.b32.xlu0 %v4653, 111
      %v5378 = vpop.permute.xlu0 %5377
      %5379 = vrot.lane.b32.xlu0 %v4654, 111
      %v5380 = vpop.permute.xlu0 %5379
      %5381 = vrot.lane.b32.xlu0 %v4655, 111
      %v5382 = vpop.permute.xlu0 %5381
      %5383 = vrot.lane.b32.xlu0 %v4656, 111
      %v5384 = vpop.permute.xlu0 %5383
      %5385 = vrot.lane.b32.xlu0 %v4657, 111
      %v5386 = vpop.permute.xlu0 %5385
      %5387 = vrot.lane.b32.xlu0 %v4658, 111
      %v5388 = vpop.permute.xlu0 %5387
      %5389 = vrot.lane.b32.xlu0 %v4659, 111
      %v5390 = vpop.permute.xlu0 %5389
      %5391 = vrot.lane.b32.xlu0 %v4661, 111
      %v5392 = vpop.permute.xlu0 %5391
      %5393 = vrot.lane.b32.xlu0 %v4676, 111
      %v5394 = vpop.permute.xlu0 %5393
      %5395 = vrot.lane.b32.xlu0 %v4677, 111
      %v5396 = vpop.permute.xlu0 %5395
      %5397 = vrot.lane.b32.xlu0 %v4678, 111
      %v5398 = vpop.permute.xlu0 %5397
      %5399 = vrot.lane.b32.xlu0 %v4679, 111
      %v5400 = vpop.permute.xlu0 %5399
      %5401 = vrot.lane.b32.xlu0 %v4680, 111
      %v5402 = vpop.permute.xlu0 %5401
      %5403 = vrot.lane.b32.xlu0 %v4681, 111
      %v5404 = vpop.permute.xlu0 %5403
      %5405 = vrot.lane.b32.xlu0 %v4682, 111
      %v5406 = vpop.permute.xlu0 %5405
      %5407 = vrot.lane.b32.xlu0 %v4684, 111
      %v5408 = vpop.permute.xlu0 %5407
      %5409 = vrot.lane.b32.xlu0 %v4699, 111
      %v5410 = vpop.permute.xlu0 %5409
      %5411 = vrot.lane.b32.xlu0 %v4700, 111
      %v5412 = vpop.permute.xlu0 %5411
      %5413 = vrot.lane.b32.xlu0 %v4701, 111
      %v5414 = vpop.permute.xlu0 %5413
      %5415 = vrot.lane.b32.xlu0 %v4702, 111
      %v5416 = vpop.permute.xlu0 %5415
      %5417 = vrot.lane.b32.xlu0 %v4703, 111
      %v5418 = vpop.permute.xlu0 %5417
      %5419 = vrot.lane.b32.xlu0 %v4704, 111
      %v5420 = vpop.permute.xlu0 %5419
      %5421 = vrot.lane.b32.xlu0 %v4705, 111
      %v5422 = vpop.permute.xlu0 %5421
      %5423 = vrot.lane.b32.xlu0 %v4707, 111
      %v5424 = vpop.permute.xlu0 %5423
      %5425 = vrot.lane.b32.xlu0 %v4722, 111
      %v5426 = vpop.permute.xlu0 %5425
      %5427 = vrot.lane.b32.xlu0 %v4723, 111
      %v5428 = vpop.permute.xlu0 %5427
      %5429 = vrot.lane.b32.xlu0 %v4724, 111
      %v5430 = vpop.permute.xlu0 %5429
      %5431 = vrot.lane.b32.xlu0 %v4725, 111
      %v5432 = vpop.permute.xlu0 %5431
      %5433 = vrot.lane.b32.xlu0 %v4726, 111
      %v5434 = vpop.permute.xlu0 %5433
      %5435 = vrot.lane.b32.xlu0 %v4727, 111
      %v5436 = vpop.permute.xlu0 %5435
      %5437 = vrot.lane.b32.xlu0 %v4728, 111
      %v5438 = vpop.permute.xlu0 %5437
      %5439 = vrot.lane.b32.xlu0 %v4922, 111
      %v5440 = vpop.permute.xlu0 %5439
      %5441 = vrot.lane.b32.xlu0 %v5097, 111
      %v5442 = vpop.permute.xlu0 %5441
      %5443 = vrot.lane.b32.xlu0 %v5098, 111
      %v5444 = vpop.permute.xlu0 %5443
      %5445 = vrot.lane.b32.xlu0 %v5099, 111
      %v5446 = vpop.permute.xlu0 %5445
      %5447 = vrot.lane.b32.xlu0 %v5100, 111
      %v5448 = vpop.permute.xlu0 %5447
      %5449 = vrot.lane.b32.xlu0 %v5101, 111
      %v5450 = vpop.permute.xlu0 %5449
      %5451 = vrot.lane.b32.xlu0 %v5102, 111
      %v5452 = vpop.permute.xlu0 %5451
      %5453 = vrot.lane.b32.xlu0 %v5103, 111
      %v5454 = vpop.permute.xlu0 %5453
      %5455 = vrot.lane.b32.xlu0 %v4938, 111
      %v5456 = vpop.permute.xlu0 %5455
      %5457 = vrot.lane.b32.xlu0 %v5104, 111
      %v5458 = vpop.permute.xlu0 %5457
      %5459 = vrot.lane.b32.xlu0 %v5105, 111
      %v5460 = vpop.permute.xlu0 %5459
      %5461 = vrot.lane.b32.xlu0 %v5106, 111
      %v5462 = vpop.permute.xlu0 %5461
      %5463 = vrot.lane.b32.xlu0 %v5107, 111
      %v5464 = vpop.permute.xlu0 %5463
      %5465 = vrot.lane.b32.xlu0 %v5108, 111
      %v5466 = vpop.permute.xlu0 %5465
      %5467 = vrot.lane.b32.xlu0 %v5109, 111
      %v5468 = vpop.permute.xlu0 %5467
      %5469 = vrot.lane.b32.xlu0 %v5110, 111
      %v5470 = vpop.permute.xlu0 %5469
      %5471 = vrot.lane.b32.xlu0 %v4954, 111
      %v5472 = vpop.permute.xlu0 %5471
      %5473 = vrot.lane.b32.xlu0 %v5111, 111
      %v5474 = vpop.permute.xlu0 %5473
      %5475 = vrot.lane.b32.xlu0 %v5112, 111
      %v5476 = vpop.permute.xlu0 %5475
      %5477 = vrot.lane.b32.xlu0 %v5113, 111
      %v5478 = vpop.permute.xlu0 %5477
      %5479 = vrot.lane.b32.xlu0 %v5114, 111
      %v5480 = vpop.permute.xlu0 %5479
      %5481 = vrot.lane.b32.xlu0 %v5115, 111
      %v5482 = vpop.permute.xlu0 %5481
      %5483 = vrot.lane.b32.xlu0 %v5116, 111
      %v5484 = vpop.permute.xlu0 %5483
      %5485 = vrot.lane.b32.xlu0 %v5117, 111
      %v5486 = vpop.permute.xlu0 %5485
      %5487 = vrot.lane.b32.xlu0 %v4970, 111
      %v5488 = vpop.permute.xlu0 %5487
      %5489 = vrot.lane.b32.xlu0 %v5118, 111
      %v5490 = vpop.permute.xlu0 %5489
      %5491 = vrot.lane.b32.xlu0 %v5119, 111
      %v5492 = vpop.permute.xlu0 %5491
      %5493 = vrot.lane.b32.xlu0 %v5120, 111
      %v5494 = vpop.permute.xlu0 %5493
      %5495 = vrot.lane.b32.xlu0 %v5121, 111
      %v5496 = vpop.permute.xlu0 %5495
      %5497 = vrot.lane.b32.xlu0 %v5122, 111
      %v5498 = vpop.permute.xlu0 %5497
      %5499 = vrot.lane.b32.xlu0 %v5123, 111
      %v5500 = vpop.permute.xlu0 %5499
      %5501 = vrot.lane.b32.xlu0 %v5124, 111
      %v5502 = vpop.permute.xlu0 %5501
      %5503 = vrot.lane.b32.xlu0 %v4986, 111
      %v5504 = vpop.permute.xlu0 %5503
      %5505 = vrot.lane.b32.xlu0 %v5125, 111
      %v5506 = vpop.permute.xlu0 %5505
      %5507 = vrot.lane.b32.xlu0 %v5126, 111
      %v5508 = vpop.permute.xlu0 %5507
      %5509 = vrot.lane.b32.xlu0 %v5127, 111
      %v5510 = vpop.permute.xlu0 %5509
      %5511 = vrot.lane.b32.xlu0 %v5128, 111
      %v5512 = vpop.permute.xlu0 %5511
      %5513 = vrot.lane.b32.xlu0 %v5129, 111
      %v5514 = vpop.permute.xlu0 %5513
      %5515 = vrot.lane.b32.xlu0 %v5130, 111
      %v5516 = vpop.permute.xlu0 %5515
      %5517 = vrot.lane.b32.xlu0 %v5131, 111
      %v5518 = vpop.permute.xlu0 %5517
      %5519 = vrot.lane.b32.xlu0 %v5002, 111
      %v5520 = vpop.permute.xlu0 %5519
      %5521 = vrot.lane.b32.xlu0 %v5132, 111
      %v5522 = vpop.permute.xlu0 %5521
      %5523 = vrot.lane.b32.xlu0 %v5133, 111
      %v5524 = vpop.permute.xlu0 %5523
      %5525 = vrot.lane.b32.xlu0 %v5134, 111
      %v5526 = vpop.permute.xlu0 %5525
      %5527 = vrot.lane.b32.xlu0 %v5135, 111
      %v5528 = vpop.permute.xlu0 %5527
      %5529 = vrot.lane.b32.xlu0 %v5136, 111
      %v5530 = vpop.permute.xlu0 %5529
      %5531 = vrot.lane.b32.xlu0 %v5137, 111
      %v5532 = vpop.permute.xlu0 %5531
      %5533 = vrot.lane.b32.xlu0 %v5138, 111
      %v5534 = vpop.permute.xlu0 %5533
      %5535 = vrot.lane.b32.xlu0 %v5018, 111
      %v5536 = vpop.permute.xlu0 %5535
      %5537 = vrot.lane.b32.xlu0 %v5139, 111
      %v5538 = vpop.permute.xlu0 %5537
      %5539 = vrot.lane.b32.xlu0 %v5140, 111
      %v5540 = vpop.permute.xlu0 %5539
      %5541 = vrot.lane.b32.xlu0 %v5141, 111
      %v5542 = vpop.permute.xlu0 %5541
      %5543 = vrot.lane.b32.xlu0 %v5142, 111
      %v5544 = vpop.permute.xlu0 %5543
      %5545 = vrot.lane.b32.xlu0 %v5143, 111
      %v5546 = vpop.permute.xlu0 %5545
      %5547 = vrot.lane.b32.xlu0 %v5144, 111
      %v5548 = vpop.permute.xlu0 %5547
      %5549 = vrot.lane.b32.xlu0 %v5145, 111
      %v5550 = vpop.permute.xlu0 %5549
      %5551 = vrot.lane.b32.xlu0 %v5034, 111
      %v5552 = vpop.permute.xlu0 %5551
      %5553 = vrot.lane.b32.xlu0 %v5146, 111
      %v5554 = vpop.permute.xlu0 %5553
      %5555 = vrot.lane.b32.xlu0 %v5147, 111
      %v5556 = vpop.permute.xlu0 %5555
      %5557 = vrot.lane.b32.xlu0 %v5148, 111
      %v5558 = vpop.permute.xlu0 %5557
      %5559 = vrot.lane.b32.xlu0 %v5149, 111
      %v5560 = vpop.permute.xlu0 %5559
      %5561 = vrot.lane.b32.xlu0 %v5150, 111
      %v5562 = vpop.permute.xlu0 %5561
      %5563 = vrot.lane.b32.xlu0 %v5151, 111
      %v5564 = vpop.permute.xlu0 %5563
      %5565 = vrot.lane.b32.xlu0 %v5152, 111
      %v5566 = vpop.permute.xlu0 %5565
      %5567 = vrot.lane.b32.xlu0 %v5050, 111
      %v5568 = vpop.permute.xlu0 %5567
      %5569 = vrot.lane.b32.xlu0 %v5153, 111
      %v5570 = vpop.permute.xlu0 %5569
      %5571 = vrot.lane.b32.xlu0 %v5154, 111
      %v5572 = vpop.permute.xlu0 %5571
      %5573 = vrot.lane.b32.xlu0 %v5155, 111
      %v5574 = vpop.permute.xlu0 %5573
      %5575 = vrot.lane.b32.xlu0 %v5156, 111
      %v5576 = vpop.permute.xlu0 %5575
      %5577 = vrot.lane.b32.xlu0 %v5157, 111
      %v5578 = vpop.permute.xlu0 %5577
      %5579 = vrot.lane.b32.xlu0 %v5158, 111
      %v5580 = vpop.permute.xlu0 %5579
      %5581 = vrot.lane.b32.xlu0 %v5159, 111
      %v5582 = vpop.permute.xlu0 %5581
      %5583 = vrot.lane.b32.xlu0 %v5066, 111
      %v5584 = vpop.permute.xlu0 %5583
      %5585 = vrot.lane.b32.xlu0 %v5160, 111
      %v5586 = vpop.permute.xlu0 %5585
      %5587 = vrot.lane.b32.xlu0 %v5161, 111
      %v5588 = vpop.permute.xlu0 %5587
      %5589 = vrot.lane.b32.xlu0 %v5162, 111
      %v5590 = vpop.permute.xlu0 %5589
      %5591 = vrot.lane.b32.xlu0 %v5163, 111
      %v5592 = vpop.permute.xlu0 %5591
      %5593 = vrot.lane.b32.xlu0 %v5164, 111
      %v5594 = vpop.permute.xlu0 %5593
      %5595 = vrot.lane.b32.xlu0 %v5165, 111
      %v5596 = vpop.permute.xlu0 %5595
      %5597 = vrot.lane.b32.xlu0 %v5166, 111
      %v5598 = vpop.permute.xlu0 %5597
      %5599 = vrot.lane.b32.xlu0 %v5082, 111
      %v5600 = vpop.permute.xlu0 %5599
      %5601 = vrot.lane.b32.xlu0 %v5167, 111
      %v5602 = vpop.permute.xlu0 %5601
      %5603 = vrot.lane.b32.xlu0 %v5168, 111
      %v5604 = vpop.permute.xlu0 %5603
      %5605 = vrot.lane.b32.xlu0 %v5169, 111
      %v5606 = vpop.permute.xlu0 %5605
      %5607 = vrot.lane.b32.xlu0 %v5170, 111
      %v5608 = vpop.permute.xlu0 %5607
      %5609 = vrot.lane.b32.xlu0 %v5171, 111
      %v5610 = vpop.permute.xlu0 %5609
      %5611 = vrot.lane.b32.xlu0 %v5172, 111
      %v5612 = vpop.permute.xlu0 %5611
      %5613 = vrot.lane.b32.xlu0 %v5173, 111
      %v5614 = vpop.permute.xlu0 %5613
      %v5615 = vsel %vm1855, %v5184, %v5186
      %v5616 = vsel %vm1855, %v5186, %v5188
      %v5617 = vsel %vm1855, %v5188, %v5190
      %v5618 = vsel %vm1855, %v5190, %v5192
      %v5619 = vsel %vm1855, %v5192, %v5194
      %v5620 = vsel %vm1855, %v5194, %v5196
      %v5621 = vsel %vm1855, %v5196, %v5198
      %v5622 = vsel %vm1855, %v5200, %v5202
      %v5623 = vsel %vm1855, %v5202, %v5204
      %v5624 = vsel %vm1855, %v5204, %v5206
      %v5625 = vsel %vm1855, %v5206, %v5208
      %v5626 = vsel %vm1855, %v5208, %v5210
      %v5627 = vsel %vm1855, %v5210, %v5212
      %v5628 = vsel %vm1855, %v5212, %v5214
      %v5629 = vsel %vm1855, %v5216, %v5218
      %v5630 = vsel %vm1855, %v5218, %v5220
      %v5631 = vsel %vm1855, %v5220, %v5222
      %v5632 = vsel %vm1855, %v5222, %v5224
      %v5633 = vsel %vm1855, %v5224, %v5226
      %v5634 = vsel %vm1855, %v5226, %v5228
      %v5635 = vsel %vm1855, %v5228, %v5230
      %v5636 = vsel %vm1855, %v5232, %v5234
      %v5637 = vsel %vm1855, %v5234, %v5236
      %v5638 = vsel %vm1855, %v5236, %v5238
      %v5639 = vsel %vm1855, %v5238, %v5240
      %v5640 = vsel %vm1855, %v5240, %v5242
      %v5641 = vsel %vm1855, %v5242, %v5244
      %v5642 = vsel %vm1855, %v5244, %v5246
      %v5643 = vsel %vm1855, %v5248, %v5250
      %v5644 = vsel %vm1855, %v5250, %v5252
      %v5645 = vsel %vm1855, %v5252, %v5254
      %v5646 = vsel %vm1855, %v5254, %v5256
      %v5647 = vsel %vm1855, %v5256, %v5258
      %v5648 = vsel %vm1855, %v5258, %v5260
      %v5649 = vsel %vm1855, %v5260, %v5262
      %v5650 = vsel %vm1855, %v5264, %v5266
      %v5651 = vsel %vm1855, %v5266, %v5268
      %v5652 = vsel %vm1855, %v5268, %v5270
      %v5653 = vsel %vm1855, %v5270, %v5272
      %v5654 = vsel %vm1855, %v5272, %v5274
      %v5655 = vsel %vm1855, %v5274, %v5276
      %v5656 = vsel %vm1855, %v5276, %v5278
      %v5657 = vsel %vm1855, %v5280, %v5282
      %v5658 = vsel %vm1855, %v5282, %v5284
      %v5659 = vsel %vm1855, %v5284, %v5286
      %v5660 = vsel %vm1855, %v5286, %v5288
      %v5661 = vsel %vm1855, %v5288, %v5290
      %v5662 = vsel %vm1855, %v5290, %v5292
      %v5663 = vsel %vm1855, %v5292, %v5294
      %v5664 = vsel %vm1855, %v5296, %v5298
      %v5665 = vsel %vm1855, %v5298, %v5300
      %v5666 = vsel %vm1855, %v5300, %v5302
      %v5667 = vsel %vm1855, %v5302, %v5304
      %v5668 = vsel %vm1855, %v5304, %v5306
      %v5669 = vsel %vm1855, %v5306, %v5308
      %v5670 = vsel %vm1855, %v5308, %v5310
      %v5671 = vsel %vm1855, %v5312, %v5314
      %v5672 = vsel %vm1855, %v5314, %v5316
      %v5673 = vsel %vm1855, %v5316, %v5318
      %v5674 = vsel %vm1855, %v5318, %v5320
      %v5675 = vsel %vm1855, %v5320, %v5322
      %v5676 = vsel %vm1855, %v5322, %v5324
      %v5677 = vsel %vm1855, %v5324, %v5326
      %v5678 = vsel %vm1855, %v5328, %v5330
      %v5679 = vsel %vm1855, %v5330, %v5332
      %v5680 = vsel %vm1855, %v5332, %v5334
      %v5681 = vsel %vm1855, %v5334, %v5336
      %v5682 = vsel %vm1855, %v5336, %v5338
      %v5683 = vsel %vm1855, %v5338, %v5340
      %v5684 = vsel %vm1855, %v5340, %v5342
      %v5685 = vsel %vm1855, %v5344, %v5346
      %v5686 = vsel %vm1855, %v5346, %v5348
      %v5687 = vsel %vm1855, %v5348, %v5350
      %v5688 = vsel %vm1855, %v5350, %v5352
      %v5689 = vsel %vm1855, %v5352, %v5354
      %v5690 = vsel %vm1855, %v5354, %v5356
      %v5691 = vsel %vm1855, %v5356, %v5358
      %v5692 = vsel %vm1855, %v5360, %v5362
      %v5693 = vsel %vm1855, %v5362, %v5364
      %v5694 = vsel %vm1855, %v5364, %v5366
      %v5695 = vsel %vm1855, %v5366, %v5368
      %v5696 = vsel %vm1855, %v5368, %v5370
      %v5697 = vsel %vm1855, %v5370, %v5372
      %v5698 = vsel %vm1855, %v5372, %v5374
      %v5699 = vsel %vm1855, %v5376, %v5378
      %v5700 = vsel %vm1855, %v5378, %v5380
      %v5701 = vsel %vm1855, %v5380, %v5382
      %v5702 = vsel %vm1855, %v5382, %v5384
      %v5703 = vsel %vm1855, %v5384, %v5386
      %v5704 = vsel %vm1855, %v5386, %v5388
      %v5705 = vsel %vm1855, %v5388, %v5390
      %v5706 = vsel %vm1855, %v5392, %v5394
      %v5707 = vsel %vm1855, %v5394, %v5396
      %v5708 = vsel %vm1855, %v5396, %v5398
      %v5709 = vsel %vm1855, %v5398, %v5400
      %v5710 = vsel %vm1855, %v5400, %v5402
      %v5711 = vsel %vm1855, %v5402, %v5404
      %v5712 = vsel %vm1855, %v5404, %v5406
      %v5713 = vsel %vm1855, %v5408, %v5410
      %v5714 = vsel %vm1855, %v5410, %v5412
      %v5715 = vsel %vm1855, %v5412, %v5414
      %v5716 = vsel %vm1855, %v5414, %v5416
      %v5717 = vsel %vm1855, %v5416, %v5418
      %v5718 = vsel %vm1855, %v5418, %v5420
      %v5719 = vsel %vm1855, %v5420, %v5422
      %v5720 = vsel %vm1855, %v5424, %v5426
      %v5721 = vsel %vm1855, %v5426, %v5428
      %v5722 = vsel %vm1855, %v5428, %v5430
      %v5723 = vsel %vm1855, %v5430, %v5432
      %v5724 = vsel %vm1855, %v5432, %v5434
      %v5725 = vsel %vm1855, %v5434, %v5436
      %v5726 = vsel %vm1855, %v5436, %v5438
      %v5727 = vsel %vm1855, %v5440, %v5442
      %v5728 = vsel %vm1855, %v5442, %v5444
      %v5729 = vsel %vm1855, %v5444, %v5446
      %v5730 = vsel %vm1855, %v5446, %v5448
      %v5731 = vsel %vm1855, %v5448, %v5450
      %v5732 = vsel %vm1855, %v5450, %v5452
      %v5733 = vsel %vm1855, %v5452, %v5454
      %v5734 = vsel %vm1855, %v5456, %v5458
      %v5735 = vsel %vm1855, %v5458, %v5460
      %v5736 = vsel %vm1855, %v5460, %v5462
      %v5737 = vsel %vm1855, %v5462, %v5464
      %v5738 = vsel %vm1855, %v5464, %v5466
      %v5739 = vsel %vm1855, %v5466, %v5468
      %v5740 = vsel %vm1855, %v5468, %v5470
      %v5741 = vsel %vm1855, %v5472, %v5474
      %v5742 = vsel %vm1855, %v5474, %v5476
      %v5743 = vsel %vm1855, %v5476, %v5478
      %v5744 = vsel %vm1855, %v5478, %v5480
      %v5745 = vsel %vm1855, %v5480, %v5482
      %v5746 = vsel %vm1855, %v5482, %v5484
      %v5747 = vsel %vm1855, %v5484, %v5486
      %v5748 = vsel %vm1855, %v5488, %v5490
      %v5749 = vsel %vm1855, %v5490, %v5492
      %v5750 = vsel %vm1855, %v5492, %v5494
      %v5751 = vsel %vm1855, %v5494, %v5496
      %v5752 = vsel %vm1855, %v5496, %v5498
      %v5753 = vsel %vm1855, %v5498, %v5500
      %v5754 = vsel %vm1855, %v5500, %v5502
      %v5755 = vsel %vm1855, %v5504, %v5506
      %v5756 = vsel %vm1855, %v5506, %v5508
      %v5757 = vsel %vm1855, %v5508, %v5510
      %v5758 = vsel %vm1855, %v5510, %v5512
      %v5759 = vsel %vm1855, %v5512, %v5514
      %v5760 = vsel %vm1855, %v5514, %v5516
      %v5761 = vsel %vm1855, %v5516, %v5518
      %v5762 = vsel %vm1855, %v5520, %v5522
      %v5763 = vsel %vm1855, %v5522, %v5524
      %v5764 = vsel %vm1855, %v5524, %v5526
      %v5765 = vsel %vm1855, %v5526, %v5528
      %v5766 = vsel %vm1855, %v5528, %v5530
      %v5767 = vsel %vm1855, %v5530, %v5532
      %v5768 = vsel %vm1855, %v5532, %v5534
      %v5769 = vsel %vm1855, %v5536, %v5538
      %v5770 = vsel %vm1855, %v5538, %v5540
      %v5771 = vsel %vm1855, %v5540, %v5542
      %v5772 = vsel %vm1855, %v5542, %v5544
      %v5773 = vsel %vm1855, %v5544, %v5546
      %v5774 = vsel %vm1855, %v5546, %v5548
      %v5775 = vsel %vm1855, %v5548, %v5550
      %v5776 = vsel %vm1855, %v5552, %v5554
      %v5777 = vsel %vm1855, %v5554, %v5556
      %v5778 = vsel %vm1855, %v5556, %v5558
      %v5779 = vsel %vm1855, %v5558, %v5560
      %v5780 = vsel %vm1855, %v5560, %v5562
      %v5781 = vsel %vm1855, %v5562, %v5564
      %v5782 = vsel %vm1855, %v5564, %v5566
      %v5783 = vsel %vm1855, %v5568, %v5570
      %v5784 = vsel %vm1855, %v5570, %v5572
      %v5785 = vsel %vm1855, %v5572, %v5574
      %v5786 = vsel %vm1855, %v5574, %v5576
      %v5787 = vsel %vm1855, %v5576, %v5578
      %v5788 = vsel %vm1855, %v5578, %v5580
      %v5789 = vsel %vm1855, %v5580, %v5582
      %v5790 = vsel %vm1855, %v5584, %v5586
      %v5791 = vsel %vm1855, %v5586, %v5588
      %v5792 = vsel %vm1855, %v5588, %v5590
      %v5793 = vsel %vm1855, %v5590, %v5592
      %v5794 = vsel %vm1855, %v5592, %v5594
      %v5795 = vsel %vm1855, %v5594, %v5596
      %v5796 = vsel %vm1855, %v5596, %v5598
      %v5797 = vsel %vm1855, %v5600, %v5602
      %v5798 = vsel %vm1855, %v5602, %v5604
      %v5799 = vsel %vm1855, %v5604, %v5606
      %v5800 = vsel %vm1855, %v5606, %v5608
      %v5801 = vsel %vm1855, %v5608, %v5610
      %v5802 = vsel %vm1855, %v5610, %v5612
      %v5803 = vsel %vm1855, %v5612, %v5614
      %vm6020 = vcmask 719872
      %v6021 = vsel %vm6020, %v5182, 0
      %6023 = vmatprep.subr.mxu0 %v5721
      %6024 = vmatpush1.msra.mxu0 %v5720
      %6025 = vmatprep.subr.mxu0 %v5714
      %6026 = vmatpush1.msra.mxu0 %v5713
      %6027 = vmatprep.subr.mxu0 %v5707
      %6028 = vmatpush1.msra.mxu0 %v5706
      %6029 = vmatprep.subr.mxu0 %v5700
      %6030 = vmatpush1.msra.mxu0 %v5699
      %6031 = vmatprep.subr.mxu0 %v5693
      %6032 = vmatpush1.msra.mxu0 %v5692
      %6033 = vmatprep.subr.mxu0 %v5686
      %6034 = vmatpush1.msra.mxu0 %v5685
      %6035 = vmatprep.subr.mxu0 %v5679
      %6036 = vmatpush1.msra.mxu0 %v5678
      %6037 = vmatprep.subr.mxu0 %v5672
      %6038 = vmatpush1.msra.mxu0 %v5671
      %6039 = vmatprep.subr.mxu0 %v5665
      %6040 = vmatpush1.msra.mxu0 %v5664
      %6041 = vmatprep.subr.mxu0 %v5658
      %6042 = vmatpush1.msra.mxu0 %v5657
      %6043 = vmatprep.subr.mxu0 %v5651
      %6044 = vmatpush1.msra.mxu0 %v5650
      %6045 = vmatprep.subr.mxu0 %v5644
      %6046 = vmatpush1.msra.mxu0 %v5643
      %6047 = vmatprep.subr.mxu0 %v5637
      %6048 = vmatpush1.msra.mxu0 %v5636
      %6049 = vmatprep.subr.mxu0 %v5630
      %6050 = vmatpush1.msra.mxu0 %v5629
      %6051 = vmatprep.subr.mxu0 %v5623
      %6052 = vmatpush1.msra.mxu0 %v5622
      %6053 = vmatprep.subr.mxu0 %v5616
      %6054 = vmatpush1.msra.mxu0 %v5615
      %6055 = vmatprep.subr.mxu0 0.0
      %6056 = vmatpush2.msra.mxu0 0.0
      %6057 = vmatprep.subr.mxu0 0.0
      %6058 = vmatpush2.msra.mxu0 0.0
      %6059 = vmatprep.subr.mxu0 0.0
      %6060 = vmatpush2.msra.mxu0 0.0
      %6061 = vmatprep.subr.mxu0 0.0
      %6062 = vmatpush2.msra.mxu0 0.0
      %6063 = vmatprep.subr.mxu0 0.0
      %6064 = vmatpush2.msra.mxu0 0.0
      %6065 = vmatprep.subr.mxu0 %v5798
      %6066 = vmatpush2.msra.mxu0 %v5797
      %6067 = vmatprep.subr.mxu0 %v5791
      %6068 = vmatpush2.msra.mxu0 %v5790
      %6069 = vmatprep.subr.mxu0 %v5784
      %6070 = vmatpush2.msra.mxu0 %v5783
      %6071 = vmatprep.subr.mxu0 %v5777
      %6072 = vmatpush2.msra.mxu0 %v5776
      %6073 = vmatprep.subr.mxu0 %v5770
      %6074 = vmatpush2.msra.mxu0 %v5769
      %6075 = vmatprep.subr.mxu0 %v5763
      %6076 = vmatpush2.msra.mxu0 %v5762
      %6077 = vmatprep.subr.mxu0 %v5756
      %6078 = vmatpush2.msra.mxu0 %v5755
      %6079 = vmatprep.subr.mxu0 %v5749
      %6080 = vmatpush2.msra.mxu0 %v5748
      %6081 = vmatprep.subr.mxu0 %v5742
      %6082 = vmatpush2.msra.mxu0 %v5741
      %6083 = vmatprep.subr.mxu0 %v5735
      %6084 = vmatpush2.msra.mxu0 %v5734
      %6085 = vmatprep.subr.mxu0 %v5728
      %6086 = vmatpush2.msra.mxu0 %v5727
      %6087 = vmatprep.mubr.f32.mxu0 %v6021
      %6088 = vmatmul.mubr.f32.gmra.mxu0 %v5174
      %v6089 = vpop.f32.mrf.mxu0
      %v6090 = vadd.f32 %v5179, %v6089
      %v6091 = vpop.f32.mrf.mxu0
      %v6092 = vadd.f32 %v5179, %v6091
      %6093 = vdwg.mxu0
      %6094 = vmatprep.subr.mxu0 %v5723
      %6095 = vmatpush1.msra.mxu0 %v5722
      %6096 = vmatprep.subr.mxu0 %v5716
      %6097 = vmatpush1.msra.mxu0 %v5715
      %6098 = vmatprep.subr.mxu0 %v5709
      %6099 = vmatpush1.msra.mxu0 %v5708
      %6100 = vmatprep.subr.mxu0 %v5702
      %6101 = vmatpush1.msra.mxu0 %v5701
      %6102 = vmatprep.subr.mxu0 %v5695
      %6103 = vmatpush1.msra.mxu0 %v5694
      %6104 = vmatprep.subr.mxu0 %v5688
      %6105 = vmatpush1.msra.mxu0 %v5687
      %6106 = vmatprep.subr.mxu0 %v5681
      %6107 = vmatpush1.msra.mxu0 %v5680
      %6108 = vmatprep.subr.mxu0 %v5674
      %6109 = vmatpush1.msra.mxu0 %v5673
      %6110 = vmatprep.subr.mxu0 %v5667
      %6111 = vmatpush1.msra.mxu0 %v5666
      %6112 = vmatprep.subr.mxu0 %v5660
      %6113 = vmatpush1.msra.mxu0 %v5659
      %6114 = vmatprep.subr.mxu0 %v5653
      %6115 = vmatpush1.msra.mxu0 %v5652
      %6116 = vmatprep.subr.mxu0 %v5646
      %6117 = vmatpush1.msra.mxu0 %v5645
      %6118 = vmatprep.subr.mxu0 %v5639
      %6119 = vmatpush1.msra.mxu0 %v5638
      %6120 = vmatprep.subr.mxu0 %v5632
      %6121 = vmatpush1.msra.mxu0 %v5631
      %6122 = vmatprep.subr.mxu0 %v5625
      %6123 = vmatpush1.msra.mxu0 %v5624
      %6124 = vmatprep.subr.mxu0 %v5618
      %6125 = vmatpush1.msra.mxu0 %v5617
      %6126 = vmatprep.subr.mxu0 0.0
      %6127 = vmatpush2.msra.mxu0 0.0
      %6128 = vmatprep.subr.mxu0 0.0
      %6129 = vmatpush2.msra.mxu0 0.0
      %6130 = vmatprep.subr.mxu0 0.0
      %6131 = vmatpush2.msra.mxu0 0.0
      %6132 = vmatprep.subr.mxu0 0.0
      %6133 = vmatpush2.msra.mxu0 0.0
      %6134 = vmatprep.subr.mxu0 0.0
      %6135 = vmatpush2.msra.mxu0 0.0
      %6136 = vmatprep.subr.mxu0 %v5800
      %6137 = vmatpush2.msra.mxu0 %v5799
      %6138 = vmatprep.subr.mxu0 %v5793
      %6139 = vmatpush2.msra.mxu0 %v5792
      %6140 = vmatprep.subr.mxu0 %v5786
      %6141 = vmatpush2.msra.mxu0 %v5785
      %6142 = vmatprep.subr.mxu0 %v5779
      %6143 = vmatpush2.msra.mxu0 %v5778
      %6144 = vmatprep.subr.mxu0 %v5772
      %6145 = vmatpush2.msra.mxu0 %v5771
      %6146 = vmatprep.subr.mxu0 %v5765
      %6147 = vmatpush2.msra.mxu0 %v5764
      %6148 = vmatprep.subr.mxu0 %v5758
      %6149 = vmatpush2.msra.mxu0 %v5757
      %6150 = vmatprep.subr.mxu0 %v5751
      %6151 = vmatpush2.msra.mxu0 %v5750
      %6152 = vmatprep.subr.mxu0 %v5744
      %6153 = vmatpush2.msra.mxu0 %v5743
      %6154 = vmatprep.subr.mxu0 %v5737
      %6155 = vmatpush2.msra.mxu0 %v5736
      %6156 = vmatprep.subr.mxu0 %v5730
      %6157 = vmatpush2.msra.mxu0 %v5729
      %6158 = vmatprep.mubr.f32.mxu0 %v6021
      %6159 = vmatmul.mubr.f32.gmra.mxu0 %v5174
      %v6160 = vpop.f32.mrf.mxu0
      %v6161 = vadd.f32 %v5179, %v6160
      %v6162 = vpop.f32.mrf.mxu0
      %v6163 = vadd.f32 %v5179, %v6162
      %6164 = vdwg.mxu0
      %6165 = vmatprep.subr.mxu0 %v5725
      %6166 = vmatpush1.msra.mxu0 %v5724
      %6167 = vmatprep.subr.mxu0 %v5718
      %6168 = vmatpush1.msra.mxu0 %v5717
      %6169 = vmatprep.subr.mxu0 %v5711
      %6170 = vmatpush1.msra.mxu0 %v5710
      %6171 = vmatprep.subr.mxu0 %v5704
      %6172 = vmatpush1.msra.mxu0 %v5703
      %6173 = vmatprep.subr.mxu0 %v5697
      %6174 = vmatpush1.msra.mxu0 %v5696
      %6175 = vmatprep.subr.mxu0 %v5690
      %6176 = vmatpush1.msra.mxu0 %v5689
      %6177 = vmatprep.subr.mxu0 %v5683
      %6178 = vmatpush1.msra.mxu0 %v5682
      %6179 = vmatprep.subr.mxu0 %v5676
      %6180 = vmatpush1.msra.mxu0 %v5675
      %6181 = vmatprep.subr.mxu0 %v5669
      %6182 = vmatpush1.msra.mxu0 %v5668
      %6183 = vmatprep.subr.mxu0 %v5662
      %6184 = vmatpush1.msra.mxu0 %v5661
      %6185 = vmatprep.subr.mxu0 %v5655
      %6186 = vmatpush1.msra.mxu0 %v5654
      %6187 = vmatprep.subr.mxu0 %v5648
      %6188 = vmatpush1.msra.mxu0 %v5647
      %6189 = vmatprep.subr.mxu0 %v5641
      %6190 = vmatpush1.msra.mxu0 %v5640
      %6191 = vmatprep.subr.mxu0 %v5634
      %6192 = vmatpush1.msra.mxu0 %v5633
      %6193 = vmatprep.subr.mxu0 %v5627
      %6194 = vmatpush1.msra.mxu0 %v5626
      %6195 = vmatprep.subr.mxu0 %v5620
      %6196 = vmatpush1.msra.mxu0 %v5619
      %6197 = vmatprep.subr.mxu0 0.0
      %6198 = vmatpush2.msra.mxu0 0.0
      %6199 = vmatprep.subr.mxu0 0.0
      %6200 = vmatpush2.msra.mxu0 0.0
      %6201 = vmatprep.subr.mxu0 0.0
      %6202 = vmatpush2.msra.mxu0 0.0
      %6203 = vmatprep.subr.mxu0 0.0
      %6204 = vmatpush2.msra.mxu0 0.0
      %6205 = vmatprep.subr.mxu0 0.0
      %6206 = vmatpush2.msra.mxu0 0.0
      %6207 = vmatprep.subr.mxu0 %v5802
      %6208 = vmatpush2.msra.mxu0 %v5801
      %6209 = vmatprep.subr.mxu0 %v5795
      %6210 = vmatpush2.msra.mxu0 %v5794
      %6211 = vmatprep.subr.mxu0 %v5788
      %6212 = vmatpush2.msra.mxu0 %v5787
      %6213 = vmatprep.subr.mxu0 %v5781
      %6214 = vmatpush2.msra.mxu0 %v5780
      %6215 = vmatprep.subr.mxu0 %v5774
      %6216 = vmatpush2.msra.mxu0 %v5773
      %6217 = vmatprep.subr.mxu0 %v5767
      %6218 = vmatpush2.msra.mxu0 %v5766
      %6219 = vmatprep.subr.mxu0 %v5760
      %6220 = vmatpush2.msra.mxu0 %v5759
      %6221 = vmatprep.subr.mxu0 %v5753
      %6222 = vmatpush2.msra.mxu0 %v5752
      %6223 = vmatprep.subr.mxu0 %v5746
      %6224 = vmatpush2.msra.mxu0 %v5745
      %6225 = vmatprep.subr.mxu0 %v5739
      %6226 = vmatpush2.msra.mxu0 %v5738
      %6227 = vmatprep.subr.mxu0 %v5732
      %6228 = vmatpush2.msra.mxu0 %v5731
      %6229 = vmatprep.mubr.f32.mxu0 %v6021
      %6230 = vmatmul.mubr.f32.gmra.mxu0 %v5174
      %v6231 = vpop.f32.mrf.mxu0
      %v6232 = vadd.f32 %v5179, %v6231
      %v6233 = vpop.f32.mrf.mxu0
      %v6234 = vadd.f32 %v5179, %v6233
      %6235 = vdwg.mxu0
      %6236 = vmatprep.subr.mxu0 %v5438
      %6237 = vmatpush1.msra.mxu0 %v5726
      %6238 = vmatprep.subr.mxu0 %v5422
      %6239 = vmatpush1.msra.mxu0 %v5719
      %6240 = vmatprep.subr.mxu0 %v5406
      %6241 = vmatpush1.msra.mxu0 %v5712
      %6242 = vmatprep.subr.mxu0 %v5390
      %6243 = vmatpush1.msra.mxu0 %v5705
      %6244 = vmatprep.subr.mxu0 %v5374
      %6245 = vmatpush1.msra.mxu0 %v5698
      %6246 = vmatprep.subr.mxu0 %v5358
      %6247 = vmatpush1.msra.mxu0 %v5691
      %6248 = vmatprep.subr.mxu0 %v5342
      %6249 = vmatpush1.msra.mxu0 %v5684
      %6250 = vmatprep.subr.mxu0 %v5326
      %6251 = vmatpush1.msra.mxu0 %v5677
      %6252 = vmatprep.subr.mxu0 %v5310
      %6253 = vmatpush1.msra.mxu0 %v5670
      %6254 = vmatprep.subr.mxu0 %v5294
      %6255 = vmatpush1.msra.mxu0 %v5663
      %6256 = vmatprep.subr.mxu0 %v5278
      %6257 = vmatpush1.msra.mxu0 %v5656
      %6258 = vmatprep.subr.mxu0 %v5262
      %6259 = vmatpush1.msra.mxu0 %v5649
      %6260 = vmatprep.subr.mxu0 %v5246
      %6261 = vmatpush1.msra.mxu0 %v5642
      %6262 = vmatprep.subr.mxu0 %v5230
      %6263 = vmatpush1.msra.mxu0 %v5635
      %6264 = vmatprep.subr.mxu0 %v5214
      %6265 = vmatpush1.msra.mxu0 %v5628
      %6266 = vmatprep.subr.mxu0 %v5198
      %6267 = vmatpush1.msra.mxu0 %v5621
      %6268 = vmatprep.subr.mxu0 0.0
      %6269 = vmatpush2.msra.mxu0 0.0
      %6270 = vmatprep.subr.mxu0 0.0
      %6271 = vmatpush2.msra.mxu0 0.0
      %6272 = vmatprep.subr.mxu0 0.0
      %6273 = vmatpush2.msra.mxu0 0.0
      %6274 = vmatprep.subr.mxu0 0.0
      %6275 = vmatpush2.msra.mxu0 0.0
      %6276 = vmatprep.subr.mxu0 0.0
      %6277 = vmatpush2.msra.mxu0 0.0
      %6278 = vmatprep.subr.mxu0 %v5614
      %6279 = vmatpush2.msra.mxu0 %v5803
      %6280 = vmatprep.subr.mxu0 %v5598
      %6281 = vmatpush2.msra.mxu0 %v5796
      %6282 = vmatprep.subr.mxu0 %v5582
      %6283 = vmatpush2.msra.mxu0 %v5789
      %6284 = vmatprep.subr.mxu0 %v5566
      %6285 = vmatpush2.msra.mxu0 %v5782
      %6286 = vmatprep.subr.mxu0 %v5550
      %6287 = vmatpush2.msra.mxu0 %v5775
      %6288 = vmatprep.subr.mxu0 %v5534
      %6289 = vmatpush2.msra.mxu0 %v5768
      %6290 = vmatprep.subr.mxu0 %v5518
      %6291 = vmatpush2.msra.mxu0 %v5761
      %6292 = vmatprep.subr.mxu0 %v5502
      %6293 = vmatpush2.msra.mxu0 %v5754
      %6294 = vmatprep.subr.mxu0 %v5486
      %6295 = vmatpush2.msra.mxu0 %v5747
      %6296 = vmatprep.subr.mxu0 %v5470
      %6297 = vmatpush2.msra.mxu0 %v5740
      %6298 = vmatprep.subr.mxu0 %v5454
      %6299 = vmatpush2.msra.mxu0 %v5733
      %6300 = vmatprep.mubr.f32.mxu0 %v6021
      %6301 = vmatmul.mubr.f32.gmra.mxu0 %v5174
      %v6302 = vpop.f32.mrf.mxu0
      %v6303 = vadd.f32 %v5179, %v6302
      %v6304 = vpop.f32.mrf.mxu0
      %v6305 = vadd.f32 %v5179, %v6304
      %6306 = vdwg.mxu0
      %v6307 = vmul.f32 %v6090, 0.2
      %v6308 = vmul.f32 %v6092, 0.2
      %v6309 = vmul.f32 %v6161, 0.2
      %v6310 = vmul.f32 %v6163, 0.2
      %v6311 = vmul.f32 %v6232, 0.2
      %v6312 = vmul.f32 %v6234, 0.2
      %v6313 = vmul.f32 %v6303, 0.2
      %v6314 = vmul.f32 %v6305, 0.2
      %v6315 = vmax.f32 %v6090, %v6307
      %v6316 = vmax.f32 %v6092, %v6308
      %v6317 = vmax.f32 %v6161, %v6309
      %v6318 = vmax.f32 %v6163, %v6310
      %v6319 = vmax.f32 %v6232, %v6311
      %v6320 = vmax.f32 %v6234, %v6312
      %v6321 = vmax.f32 %v6303, %v6313
      %v6322 = vmax.f32 %v6305, %v6314
      %v6323 = vmul.f32 %v6315, %v311
      %v6324 = vmul.f32 %v6316, %v315
      %v6325 = vmul.f32 %v6317, %v319
      %v6326 = vmul.f32 %v6318, %v323
      %v6327 = vmul.f32 %v6319, %v327
      %v6328 = vmul.f32 %v6320, %v331
      %v6329 = vmul.f32 %v6321, %v335
      %v6330 = vmul.f32 %v6322, %v339
      %v6339 = vrot.slane %v6323, 4
      %v6340 = vrot.slane %v6324, 4
      %v6341 = vrot.slane %v6325, 4
      %v6342 = vrot.slane %v6326, 4
      %v6343 = vrot.slane %v6327, 4
      %v6344 = vrot.slane %v6328, 4
      %v6345 = vrot.slane %v6329, 4
      %v6346 = vrot.slane %v6330, 4
      %6355 = vst [vmem:[%s305 + $0x40] sm:$0xf0] %v6339
      %6356 = vst [vmem:[%s305 + $0x48] sm:$0xf0] %v6340
      %6357 = vst [vmem:[%s305 + $0x50] sm:$0xf0] %v6341
      %6358 = vst [vmem:[%s305 + $0x58] sm:$0xf0] %v6342
      %6359 = vst [vmem:[%s305 + $0x60] sm:$0xf0] %v6343
      %6360 = vst [vmem:[%s305 + $0x68] sm:$0xf0] %v6344
      %6361 = vst [vmem:[%s305 + $0x70] sm:$0xf0] %v6345
      %6362 = vst.msk [vmem:[%s305 + $0x78] sm:$0xf0] %vm2416, %v6346
      %p6363 = scmp.lt.s32.totalorder %s19, 1
      %s6364 = scalar_select %p6363, %s19, 1
      %s6365 = smul.addr %s6364, 16
      %s6366 = smul.addr %s6365, 8
      %s6367 = scalar_lea.vmem %s8, %s6366
      // Predicated region
      $region53: #{dense_block_forward.1} parent=51 // pred_check
        %p6368 = pneg %p210
      $region54: #{dense_block_forward.1} parent=51 // pred_check_branch
        %6370 = sbr.rel (%p6368) target = $region56
      $region55: #{dense_block_forward.1} parent=51 // pred_region
        _
      $region56: #{dense_block_forward.1} parent=51 // pred_fallthru
        _
    $region52: #{dense_block_forward.1} parent=5 // pred_fallthru
      _
    %p6371 = scmp.le.s32.totalorder 2, %s14
    // Predicated region
    $region57: #{dense_block_forward.1} parent=5 // pred_check
      %p6372 = pneg %p6371
    $region58: #{dense_block_forward.1} parent=5 // pred_check_branch
      %6374 = sbr.rel (%p6372) target = $region60
    $region59: #{dense_block_forward.1} parent=5 // pred_region
      %s6375 = ssub.s32 %s14, 2
      // Predicated region
      $region61: #{dense_block_forward.1} parent=59 // pred_check
        %p6376 = pneg %p216
      $region62: #{dense_block_forward.1} parent=59 // pred_check_branch
        %6378 = sbr.rel (%p6376) target = $region64
      $region63: #{dense_block_forward.1} parent=59 // pred_region
        %p6379 = scmp.lt.s32.totalorder %s20, 1
        %s6380 = scalar_select %p6379, %s20, 1
        %s6381 = smul.addr %s6380, 16
        %s6382 = smul.addr %s6381, 8
        %s6383 = scalar_lea.vmem %s8, %s6382
      $region64: #{dense_block_forward.1} parent=59 // pred_fallthru
        _
    $region60: #{dense_block_forward.1} parent=5 // pred_fallthru
      _
  $region6: #{dense_block_forward.1} parent=0 // loop_footer
    %s18 = sadd.s32 1, %s14
  $region7: #{dense_block_forward.1} parent=0 // loop_footer_branch
    %13 = sbr.rel target = $region3
  $region8: #{dense_block_forward.1} parent=0 // loop_exit
    _

</llo_original>
